<compile_context>
chip_gen: v7x
topology: tpu7x:2x2x1
jax: 0.10.0
libtpu: 0.0.40
codegen_flags: <defaults>
</compile_context>

<pallas_src>
import functools

import jax
import jax.numpy as jnp
from jax.experimental import pallas as pl
from jax.experimental.pallas import tpu as pltpu


def _round_up(x, m):
    return ((x + m - 1) // m) * m


def _sigmoid(z):
    # One EUP transcendental per gate (tanh); the extra mul/add rides on the
    # VALU slots.  Mathematically exact sigmoid.
    return 0.5 * jnp.tanh(0.5 * z) + 0.5


def lstm_sum_mlp_kernel(x_ref, wih_ref, whh_ref, b_ref,
                        w1_ref, b1_ref, w2_ref, b2_ref, w3_ref, b3_ref,
                        out_ref,
                        gx_ref, h_ref, c_ref, s_ref,
                        *, seq_len):
    # x_ref:   (Tc, TB, E)  bf16   -- one time chunk of one batch tile
    # wih_ref: (E, 4Hp) bf16       whh_ref: (Hp, 4Hp) bf16
    # b_ref:   (1, 4Hp) f32        w1/w2/w3 bf16 padded, b1/b2/b3 f32 padded
    # out_ref: (TB, Cp) f32
    # gx_ref:  (Tc, TB, 4Hp) bf16  -- hoisted input projection for this chunk
    # h_ref:   (TB, Hp) bf16       c_ref/s_ref: (TB, Hp) f32  (carries)
    Tc, TB, E = x_ref.shape
    Hp = whh_ref.shape[0]
    t_chunk = pl.program_id(1)
    padded = (seq_len % Tc) != 0          # static: is the time axis zero-padded?

    # ---- (1) Initialize carries at the first time chunk of each batch tile.
    @pl.when(t_chunk == 0)
    def _():
        h_ref[...] = jnp.zeros_like(h_ref)
        c_ref[...] = jnp.zeros_like(c_ref)
        s_ref[...] = jnp.zeros_like(s_ref)

    # ---- (2) Hoisted input projection: ONE large MXU matmul for the chunk.
    #          (Tc, TB) -> Tc*TB merge is layout-free (TB multiple of 16, bf16).
    xf = x_ref[...].reshape(Tc * TB, E)
    gx = jnp.dot(xf, wih_ref[...], preferred_element_type=jnp.float32) + b_ref[...]
    gx_ref[...] = gx.astype(jnp.bfloat16).reshape(Tc, TB, 4 * Hp)

    # ---- (3) Serial LSTM recurrence over the chunk.
    #          Per-gate (Hp, Hp) matmuls + per-gate gx loads keep vreg pressure
    #          low; each gate is consumed before the next is produced.
    def gate_pre(tt, k, h_bf):
        return (gx_ref[tt, :, k * Hp:(k + 1) * Hp].astype(jnp.float32)
                + jnp.dot(h_bf, whh_ref[:, k * Hp:(k + 1) * Hp],
                          preferred_element_type=jnp.float32))

    def step(tt, carry):
        h_bf, c, s = carry                               # h bf16, c/s f32
        i_g = _sigmoid(gate_pre(tt, 0, h_bf))
        g_g = jnp.tanh(gate_pre(tt, 2, h_bf))
        c_new = _sigmoid(gate_pre(tt, 1, h_bf)) * c + i_g * g_g
        h_new = _sigmoid(gate_pre(tt, 3, h_bf)) * jnp.tanh(c_new)
        s_new = s + h_new
        h_new_bf = h_new.astype(jnp.bfloat16)
        if padded:
            # Keep carries frozen on zero-padded timesteps (only compiled in
            # when seq_len is not a multiple of the chunk size).
            valid = (t_chunk * Tc + tt) < seq_len
            h_new_bf = jnp.where(valid, h_new_bf, h_bf)
            c_new = jnp.where(valid, c_new, c)
            s_new = jnp.where(valid, s_new, s)
        return h_new_bf, c_new, s_new

    carry0 = (h_ref[...], c_ref[...], s_ref[...])
    h_bf, c, s = jax.lax.fori_loop(0, Tc, step, carry0, unroll=min(Tc, 8))
    h_ref[...] = h_bf
    c_ref[...] = c
    s_ref[...] = s

    # ---- (4) MLP head after the final time chunk:
    #          relu(l1) -> relu(l2) -> l3   (bf16 matmuls, f32 accumulation).
    @pl.when(t_chunk == pl.num_programs(1) - 1)
    def _():
        a1 = jnp.maximum(
            jnp.dot(s.astype(jnp.bfloat16), w1_ref[...],
                    preferred_element_type=jnp.float32) + b1_ref[...], 0.0)
        a2 = jnp.maximum(
            jnp.dot(a1.astype(jnp.bfloat16), w2_ref[...],
                    preferred_element_type=jnp.float32) + b2_ref[...], 0.0)
        out_ref[...] = (
            jnp.dot(a2.astype(jnp.bfloat16), w3_ref[...],
                    preferred_element_type=jnp.float32) + b3_ref[...])


# ----------------------------------------------------------------------------
# Parameter padding helpers (lane-align gates and MLP widths to 128).
# ----------------------------------------------------------------------------
def _pad_to(a, shape):
    pads = [(0, s - d) for d, s in zip(a.shape, shape)]
    return jnp.pad(a, pads)


def _pad_gate_cols(w, H, Hp):
    """(..., 4H) -> (..., 4Hp): each gate's H cols placed at the start of its
    Hp-wide block, zeros elsewhere (PyTorch gate order [i, f, g, o])."""
    parts = []
    for k in range(4):
        p = w[..., k * H:(k + 1) * H]
        pad = [(0, 0)] * (w.ndim - 1) + [(0, Hp - H)]
        parts.append(jnp.pad(p, pad))
    return jnp.concatenate(parts, axis=-1)


def _prepare_kernel_params(p, H, Hp, L1p, L2p, Cp):
    wih = _pad_gate_cols(p["wih_t"], H, Hp).astype(jnp.bfloat16)            # (E, 4Hp)
    whh = _pad_to(_pad_gate_cols(p["whh_t"], H, Hp),
                  (Hp, 4 * Hp)).astype(jnp.bfloat16)                        # (Hp, 4Hp)
    b = _pad_gate_cols(p["b_lstm"], H, Hp).astype(jnp.float32)              # (1, 4Hp)
    w1 = _pad_to(p["w1_t"], (Hp, L1p)).astype(jnp.bfloat16)
    b1 = _pad_to(p["b1"], (1, L1p)).astype(jnp.float32)
    w2 = _pad_to(p["w2_t"], (L1p, L2p)).astype(jnp.bfloat16)
    b2 = _pad_to(p["b2"], (1, L2p)).astype(jnp.float32)
    w3 = _pad_to(p["w3_t"], (L2p, Cp)).astype(jnp.bfloat16)
    b3 = _pad_to(p["b3"], (1, Cp)).astype(jnp.float32)
    return (wih, whh, b, w1, b1, w2, b2, w3, b3)


# ----------------------------------------------------------------------------
# Wrapper
# ----------------------------------------------------------------------------
def lstm_sum_forward(token_ids, params):
    """token_ids: (B, T) int32.  Returns logits (B, num_classes) float32."""
    B, T = token_ids.shape
    H = params["whh_t"].shape[0]
    L1 = params["w1_t"].shape[1]
    L2 = params["w2_t"].shape[1]
    C = params["w3_t"].shape[1]

    Hp = _round_up(H, 128)
    L1p = _round_up(L1, 128)
    L2p = _round_up(L2, 128)
    Cp = _round_up(C, 128)

    # TODO(synk): embedding gather + transpose kept as JAX glue; for long
    # sequences it could be moved in-kernel via scalar-prefetch row DMA.
    x = jnp.take(params["emb"], token_ids, axis=0)          # (B, T, E)
    x = jnp.transpose(x, (1, 0, 2)).astype(jnp.bfloat16)    # (T, B, E) time-major

    # Batch tile: multiple of 16 so bf16 blocks are sublane-tile aligned and
    # the in-kernel (Tc, TB, E) -> (Tc*TB, E) merge is layout-free.
    # (TB=256 can pay off on v6e/v7x MXU; keep 128 as a portable default, and
    # multiple batch tiles give megacore sharding via the "parallel" axis.)
    TB = min(128, _round_up(B, 16))
    B_pad = _round_up(B, TB)

    # Time chunk: bounds VMEM at O(Tc) instead of O(T); recurrence masks
    # zero-padded timesteps when T is not a multiple of Tc.
    Tc = min(T, 16)
    T_pad = _round_up(T, Tc)

    if (B_pad != B) or (T_pad != T):
        x = jnp.pad(x, ((0, T_pad - T), (0, B_pad - B), (0, 0)))
    E = x.shape[-1]

    kp = _prepare_kernel_params(params, H, Hp, L1p, L2p, Cp)
    # All weights/biases are 2-D, grid-invariant full-array blocks.
    weight_specs = [pl.BlockSpec(w.shape, lambda i, t: (0, 0)) for w in kp]

    # VMEM budget: x block (x2 double-buffer), bf16 gx scratch, carries,
    # output block (x2), weights (x2 for default double-buffering).
    weights_bytes = sum(int(w.size) * w.dtype.itemsize for w in kp)
    footprint = (2 * Tc * TB * E * 2
                 + Tc * TB * 4 * Hp * 2
                 + TB * Hp * (2 + 4 + 4)
                 + 2 * TB * Cp * 4
                 + 2 * weights_bytes)
    vmem_limit = int(min(64 * 1024 * 1024, max(32 * 1024 * 1024, 2 * footprint)))

    out = pl.pallas_call(
        functools.partial(lstm_sum_mlp_kernel, seq_len=T),
        out_shape=jax.ShapeDtypeStruct((B_pad, Cp), jnp.float32),
        grid=(B_pad // TB, T_pad // Tc),
        in_specs=[pl.BlockSpec((Tc, TB, E), lambda i, t: (t, i, 0))] + weight_specs,
        out_specs=pl.BlockSpec((TB, Cp), lambda i, t: (i, 0)),
        scratch_shapes=[
            pltpu.VMEM((Tc, TB, 4 * Hp), jnp.bfloat16),   # hoisted input projection
            pltpu.VMEM((TB, Hp), jnp.bfloat16),           # h carry
            pltpu.VMEM((TB, Hp), jnp.float32),            # c carry
            pltpu.VMEM((TB, Hp), jnp.float32),            # running sum over time
        ],
        compiler_params=pltpu.CompilerParams(
            dimension_semantics=("parallel", "arbitrary"),
            vmem_limit_bytes=vmem_limit),
    )(x, *kp)

    return out[:B, :C]


# ----------------------------------------------------------------------------
# Pure-JAX reference matching PyTorch LSTMsum semantics (f32 throughout).
# ----------------------------------------------------------------------------
def reference_forward(token_ids, params):
    emb = params["emb"]
    x = jnp.take(emb, token_ids, axis=0).astype(jnp.float32)   # (B, T, E)
    B, T, _ = x.shape
    H = params["whh_t"].shape[0]

    def step(carry, x_t):
        h, c = carry
        g = x_t @ params["wih_t"] + h @ params["whh_t"] + params["b_lstm"][0]
        i_g = jax.nn.sigmoid(g[:, 0 * H:1 * H])
        f_g = jax.nn.sigmoid(g[:, 1 * H:2 * H])
        g_g = jnp.tanh(g[:, 2 * H:3 * H])
        o_g = jax.nn.sigmoid(g[:, 3 * H:4 * H])
        c_new = f_g * c + i_g * g_g
        h_new = o_g * jnp.tanh(c_new)
        return (h_new, c_new), h_new

    h0 = jnp.zeros((B, H), jnp.float32)
    c0 = jnp.zeros((B, H), jnp.float32)
    _, hs = jax.lax.scan(step, (h0, c0), jnp.transpose(x, (1, 0, 2)))
    s = jnp.sum(hs, axis=0)
    a1 = jax.nn.relu(s @ params["w1_t"] + params["b1"][0])
    a2 = jax.nn.relu(a1 @ params["w2_t"] + params["b2"][0])
    return a2 @ params["w3_t"] + params["b3"][0]


def make_params(key, vocab, emb_dim, hidden, l1_size, l2_size, num_classes):
    ks = jax.random.split(key, 12)
    u = lambda k, shape: jax.random.uniform(k, shape, jnp.float32, -0.1, 0.1)
    # PyTorch stores W_ih: (4H, E), W_hh: (4H, H); we keep transposed copies
    # and fold b_ih + b_hh into one bias of shape (1, 4H).
    return {
        "emb":    u(ks[0], (vocab, emb_dim)),
        "wih_t":  u(ks[1], (emb_dim, 4 * hidden)),
        "whh_t":  u(ks[2], (hidden, 4 * hidden)),
        "b_lstm": u(ks[3], (1, 4 * hidden)) + u(ks[4], (1, 4 * hidden)),
        "w1_t":   u(ks[5], (hidden, l1_size)),
        "b1":     u(ks[6], (1, l1_size)),
        "w2_t":   u(ks[7], (l1_size, l2_size)),
        "b2":     u(ks[8], (1, l2_size)),
        "w3_t":   u(ks[9], (l2_size, num_classes)),
        "b3":     u(ks[10], (1, num_classes)),
    }


if __name__ == "__main__":
    # Small shapes consistent with LSTMsum(bidir=False, num_layers=1).
    B, T = 2, 8
    VOCAB, EMB, HIDDEN = 20, 16, 32
    L1, L2, NUM_CLASSES = 32, 16, 4

    key = jax.random.PRNGKey(0)
    k_tok, k_par = jax.random.split(key)
    params = make_params(k_par, VOCAB, EMB, HIDDEN, L1, L2, NUM_CLASSES)
    token_ids = jax.random.randint(k_tok, (B, T), 0, VOCAB, dtype=jnp.int32)

    out = jax.block_until_ready(lstm_sum_forward(token_ids, params))
    ref = jax.block_until_ready(reference_forward(token_ids, params))

    # Tolerance accounts for bf16 matmul operands and bf16 gate-preactivation
    # storage; f32 accumulation / carries keep the drift well below this bound.
    if not jnp.allclose(out, ref, atol=2e-2, rtol=2e-2):
        max_err = float(jnp.max(jnp.abs(out - ref)))
        raise AssertionError(
            f"Pallas kernel output mismatch vs JAX reference (max abs err {max_err})")

    print("KERNEL_OK")
</pallas_src>

<mosaic_0001>
module attributes {stable_mosaic.version = 11 : i64} {
  func.func @lstm_sum_mlp_kernel(%arg0: i32, %arg1: i32, %arg2: memref<8x16x16xbf16, #tpu.memory_space<vmem>>, %arg3: memref<16x512xbf16, #tpu.memory_space<vmem>>, %arg4: memref<128x512xbf16, #tpu.memory_space<vmem>>, %arg5: memref<1x512xf32, #tpu.memory_space<vmem>>, %arg6: memref<128x128xbf16, #tpu.memory_space<vmem>>, %arg7: memref<1x128xf32, #tpu.memory_space<vmem>>, %arg8: memref<128x128xbf16, #tpu.memory_space<vmem>>, %arg9: memref<1x128xf32, #tpu.memory_space<vmem>>, %arg10: memref<128x128xbf16, #tpu.memory_space<vmem>>, %arg11: memref<1x128xf32, #tpu.memory_space<vmem>>, %arg12: memref<16x128xf32, #tpu.memory_space<vmem>>, %arg13: memref<8x16x512xbf16, #tpu.memory_space<vmem>>, %arg14: memref<16x128xbf16, #tpu.memory_space<vmem>>, %arg15: memref<16x128xf32, #tpu.memory_space<vmem>>, %arg16: memref<16x128xf32, #tpu.memory_space<vmem>>) attributes {dimension_semantics = [#tpu.dimension_semantics<parallel>, #tpu.dimension_semantics<arbitrary>], iteration_bounds = array<i64: 1, 1>, scalar_prefetch = 0 : i64, scratch_operands = 4 : i64, tpu.core_type = #tpu.core_type<tc>, window_params = [{transform_indices = @transform_0, window_bounds = array<i64: 8, 16, 16>}, {pipeline_mode = #tpu.pipeline_mode<synchronous>, transform_indices = @transform_1, window_bounds = array<i64: 16, 512>}, {pipeline_mode = #tpu.pipeline_mode<synchronous>, transform_indices = @transform_2, window_bounds = array<i64: 128, 512>}, {pipeline_mode = #tpu.pipeline_mode<synchronous>, transform_indices = @transform_3, window_bounds = array<i64: 1, 512>}, {pipeline_mode = #tpu.pipeline_mode<synchronous>, transform_indices = @transform_4, window_bounds = array<i64: 128, 128>}, {pipeline_mode = #tpu.pipeline_mode<synchronous>, transform_indices = @transform_5, window_bounds = array<i64: 1, 128>}, {pipeline_mode = #tpu.pipeline_mode<synchronous>, transform_indices = @transform_6, window_bounds = array<i64: 128, 128>}, {pipeline_mode = #tpu.pipeline_mode<synchronous>, transform_indices = @transform_7, window_bounds = array<i64: 1, 128>}, {pipeline_mode = #tpu.pipeline_mode<synchronous>, transform_indices = @transform_8, window_bounds = array<i64: 128, 128>}, {pipeline_mode = #tpu.pipeline_mode<synchronous>, transform_indices = @transform_9, window_bounds = array<i64: 1, 128>}, {transform_indices = @transform_10, window_bounds = array<i64: 16, 128>}]} {
    %c0_i32 = arith.constant 0 : i32
    %0 = arith.cmpi eq, %arg1, %c0_i32 : i32
    %1 = arith.extui %0 : i1 to i32
    %c0_i32_0 = arith.constant 0 : i32
    %2 = arith.cmpi ne, %1, %c0_i32_0 : i32
    scf.if %2 {
      %cst_254 = arith.constant 0.000000e+00 : bf16
      %478 = vector.broadcast %cst_254 : bf16 to vector<16x128xbf16>
      %c0_255 = arith.constant 0 : index
      %c0_256 = arith.constant 0 : index
      %479 = vector.load %arg14[%c0_255, %c0_256] : memref<16x128xbf16, #tpu.memory_space<vmem>>, vector<16x128xbf16>
      tpu.vector_store %arg14[%c0_255, %c0_256], %478 {strides = array<i32>} : memref<16x128xbf16, #tpu.memory_space<vmem>>, vector<16x128xbf16>,
      %cst_257 = arith.constant 0.000000e+00 : f32
      %480 = vector.broadcast %cst_257 : f32 to vector<16x128xf32>
      %c0_258 = arith.constant 0 : index
      %c0_259 = arith.constant 0 : index
      %481 = vector.load %arg15[%c0_258, %c0_259] : memref<16x128xf32, #tpu.memory_space<vmem>>, vector<16x128xf32>
      tpu.vector_store %arg15[%c0_258, %c0_259], %480 {strides = array<i32>} : memref<16x128xf32, #tpu.memory_space<vmem>>, vector<16x128xf32>,
      %cst_260 = arith.constant 0.000000e+00 : f32
      %482 = vector.broadcast %cst_260 : f32 to vector<16x128xf32>
      %c0_261 = arith.constant 0 : index
      %c0_262 = arith.constant 0 : index
      %483 = vector.load %arg16[%c0_261, %c0_262] : memref<16x128xf32, #tpu.memory_space<vmem>>, vector<16x128xf32>
      tpu.vector_store %arg16[%c0_261, %c0_262], %482 {strides = array<i32>} : memref<16x128xf32, #tpu.memory_space<vmem>>, vector<16x128xf32>,
    } else {
    }
    %c0 = arith.constant 0 : index
    %c0_1 = arith.constant 0 : index
    %c0_2 = arith.constant 0 : index
    %3 = vector.load %arg2[%c0, %c0_1, %c0_2] : memref<8x16x16xbf16, #tpu.memory_space<vmem>>, vector<8x16x16xbf16>
    %4 = vector.shape_cast %3 : vector<8x16x16xbf16> to vector<128x16xbf16>
    %c0_3 = arith.constant 0 : index
    %c0_4 = arith.constant 0 : index
    %5 = vector.load %arg3[%c0_3, %c0_4] : memref<16x512xbf16, #tpu.memory_space<vmem>>, vector<16x512xbf16>
    %cst = arith.constant dense<0.000000e+00> : vector<128x512xf32>
    %6 = tpu.matmul %4, %5, %cst {dimension_numbers = #tpu.dot_dimension_numbers<[1], [0], [0], [1], [0, 0, 1, 1], [], []>} : vector<128x16xbf16>, vector<16x512xbf16>, vector<128x512xf32> -> vector<128x512xf32>
    %c0_5 = arith.constant 0 : index
    %c0_6 = arith.constant 0 : index
    %7 = vector.load %arg5[%c0_5, %c0_6] : memref<1x512xf32, #tpu.memory_space<vmem>>, vector<1x512xf32>
    %8 = vector.broadcast %7 : vector<1x512xf32> to vector<128x512xf32>
    %9 = arith.addf %6, %8 : vector<128x512xf32>
    %10 = arith.truncf %9 : vector<128x512xf32> to vector<128x512xbf16>
    %11 = vector.shape_cast %10 : vector<128x512xbf16> to vector<8x16x512xbf16>
    %c0_7 = arith.constant 0 : index
    %c0_8 = arith.constant 0 : index
    %c0_9 = arith.constant 0 : index
    %12 = vector.load %arg13[%c0_7, %c0_8, %c0_9] : memref<8x16x512xbf16, #tpu.memory_space<vmem>>, vector<8x16x512xbf16>
    tpu.vector_store %arg13[%c0_7, %c0_8, %c0_9], %11 {strides = array<i32>} : memref<8x16x512xbf16, #tpu.memory_space<vmem>>, vector<8x16x512xbf16>,
    %c0_10 = arith.constant 0 : index
    %c0_11 = arith.constant 0 : index
    %13 = vector.load %arg14[%c0_10, %c0_11] : memref<16x128xbf16, #tpu.memory_space<vmem>>, vector<16x128xbf16>
    %c0_12 = arith.constant 0 : index
    %c0_13 = arith.constant 0 : index
    %14 = vector.load %arg15[%c0_12, %c0_13] : memref<16x128xf32, #tpu.memory_space<vmem>>, vector<16x128xf32>
    %c0_14 = arith.constant 0 : index
    %c0_15 = arith.constant 0 : index
    %15 = vector.load %arg16[%c0_14, %c0_15] : memref<16x128xf32, #tpu.memory_space<vmem>>, vector<16x128xf32>
    %c0_i32_16 = arith.constant 0 : i32
    %16 = arith.index_cast %c0_i32_16 : i32 to index
    %c0_17 = arith.constant 0 : index
    %c0_18 = arith.constant 0 : index
    %17 = vector.load %arg13[%16, %c0_17, %c0_18] : memref<8x16x512xbf16, #tpu.memory_space<vmem>>, vector<1x16x128xbf16>
    %18 = vector.shape_cast %17 : vector<1x16x128xbf16> to vector<16x128xbf16>
    %19 = arith.extf %18 : vector<16x128xbf16> to vector<16x128xf32>
    %c0_19 = arith.constant 0 : index
    %c0_20 = arith.constant 0 : index
    %20 = vector.load %arg4[%c0_19, %c0_20] : memref<128x512xbf16, #tpu.memory_space<vmem>>, vector<128x128xbf16>
    %cst_21 = arith.constant dense<0.000000e+00> : vector<16x128xf32>
    %21 = tpu.matmul %13, %20, %cst_21 {dimension_numbers = #tpu.dot_dimension_numbers<[1], [0], [0], [1], [0, 0, 1, 1], [], []>} : vector<16x128xbf16>, vector<128x128xbf16>, vector<16x128xf32> -> vector<16x128xf32>
    %22 = arith.addf %19, %21 : vector<16x128xf32>
    %cst_22 = arith.constant 5.000000e-01 : f32
    %23 = vector.broadcast %cst_22 : f32 to vector<16x128xf32>
    %24 = arith.mulf %23, %22 : vector<16x128xf32>
    %25 = math.tanh %24 : vector<16x128xf32>
    %cst_23 = arith.constant 5.000000e-01 : f32
    %26 = vector.broadcast %cst_23 : f32 to vector<16x128xf32>
    %27 = arith.mulf %26, %25 : vector<16x128xf32>
    %cst_24 = arith.constant 5.000000e-01 : f32
    %28 = vector.broadcast %cst_24 : f32 to vector<16x128xf32>
    %29 = arith.addf %27, %28 : vector<16x128xf32>
    %30 = arith.index_cast %c0_i32_16 : i32 to index
    %c0_25 = arith.constant 0 : index
    %c256 = arith.constant 256 : index
    %31 = vector.load %arg13[%30, %c0_25, %c256] : memref<8x16x512xbf16, #tpu.memory_space<vmem>>, vector<1x16x128xbf16>
    %32 = vector.shape_cast %31 : vector<1x16x128xbf16> to vector<16x128xbf16>
    %33 = arith.extf %32 : vector<16x128xbf16> to vector<16x128xf32>
    %c0_26 = arith.constant 0 : index
    %c256_27 = arith.constant 256 : index
    %34 = vector.load %arg4[%c0_26, %c256_27] : memref<128x512xbf16, #tpu.memory_space<vmem>>, vector<128x128xbf16>
    %cst_28 = arith.constant dense<0.000000e+00> : vector<16x128xf32>
    %35 = tpu.matmul %13, %34, %cst_28 {dimension_numbers = #tpu.dot_dimension_numbers<[1], [0], [0], [1], [0, 0, 1, 1], [], []>} : vector<16x128xbf16>, vector<128x128xbf16>, vector<16x128xf32> -> vector<16x128xf32>
    %36 = arith.addf %33, %35 : vector<16x128xf32>
    %37 = math.tanh %36 : vector<16x128xf32>
    %38 = arith.index_cast %c0_i32_16 : i32 to index
    %c0_29 = arith.constant 0 : index
    %c128 = arith.constant 128 : index
    %39 = vector.load %arg13[%38, %c0_29, %c128] : memref<8x16x512xbf16, #tpu.memory_space<vmem>>, vector<1x16x128xbf16>
    %40 = vector.shape_cast %39 : vector<1x16x128xbf16> to vector<16x128xbf16>
    %41 = arith.extf %40 : vector<16x128xbf16> to vector<16x128xf32>
    %c0_30 = arith.constant 0 : index
    %c128_31 = arith.constant 128 : index
    %42 = vector.load %arg4[%c0_30, %c128_31] : memref<128x512xbf16, #tpu.memory_space<vmem>>, vector<128x128xbf16>
    %cst_32 = arith.constant dense<0.000000e+00> : vector<16x128xf32>
    %43 = tpu.matmul %13, %42, %cst_32 {dimension_numbers = #tpu.dot_dimension_numbers<[1], [0], [0], [1], [0, 0, 1, 1], [], []>} : vector<16x128xbf16>, vector<128x128xbf16>, vector<16x128xf32> -> vector<16x128xf32>
    %44 = arith.addf %41, %43 : vector<16x128xf32>
    %cst_33 = arith.constant 5.000000e-01 : f32
    %45 = vector.broadcast %cst_33 : f32 to vector<16x128xf32>
    %46 = arith.mulf %45, %44 : vector<16x128xf32>
    %47 = math.tanh %46 : vector<16x128xf32>
    %cst_34 = arith.constant 5.000000e-01 : f32
    %48 = vector.broadcast %cst_34 : f32 to vector<16x128xf32>
    %49 = arith.mulf %48, %47 : vector<16x128xf32>
    %cst_35 = arith.constant 5.000000e-01 : f32
    %50 = vector.broadcast %cst_35 : f32 to vector<16x128xf32>
    %51 = arith.addf %49, %50 : vector<16x128xf32>
    %52 = arith.mulf %51, %14 : vector<16x128xf32>
    %53 = arith.mulf %29, %37 : vector<16x128xf32>
    %54 = arith.addf %52, %53 : vector<16x128xf32>
    %55 = arith.index_cast %c0_i32_16 : i32 to index
    %c0_36 = arith.constant 0 : index
    %c384 = arith.constant 384 : index
    %56 = vector.load %arg13[%55, %c0_36, %c384] : memref<8x16x512xbf16, #tpu.memory_space<vmem>>, vector<1x16x128xbf16>
    %57 = vector.shape_cast %56 : vector<1x16x128xbf16> to vector<16x128xbf16>
    %58 = arith.extf %57 : vector<16x128xbf16> to vector<16x128xf32>
    %c0_37 = arith.constant 0 : index
    %c384_38 = arith.constant 384 : index
    %59 = vector.load %arg4[%c0_37, %c384_38] : memref<128x512xbf16, #tpu.memory_space<vmem>>, vector<128x128xbf16>
    %cst_39 = arith.constant dense<0.000000e+00> : vector<16x128xf32>
    %60 = tpu.matmul %13, %59, %cst_39 {dimension_numbers = #tpu.dot_dimension_numbers<[1], [0], [0], [1], [0, 0, 1, 1], [], []>} : vector<16x128xbf16>, vector<128x128xbf16>, vector<16x128xf32> -> vector<16x128xf32>
    %61 = arith.addf %58, %60 : vector<16x128xf32>
    %cst_40 = arith.constant 5.000000e-01 : f32
    %62 = vector.broadcast %cst_40 : f32 to vector<16x128xf32>
    %63 = arith.mulf %62, %61 : vector<16x128xf32>
    %64 = math.tanh %63 : vector<16x128xf32>
    %cst_41 = arith.constant 5.000000e-01 : f32
    %65 = vector.broadcast %cst_41 : f32 to vector<16x128xf32>
    %66 = arith.mulf %65, %64 : vector<16x128xf32>
    %cst_42 = arith.constant 5.000000e-01 : f32
    %67 = vector.broadcast %cst_42 : f32 to vector<16x128xf32>
    %68 = arith.addf %66, %67 : vector<16x128xf32>
    %69 = math.tanh %54 : vector<16x128xf32>
    %70 = arith.mulf %68, %69 : vector<16x128xf32>
    %71 = arith.addf %15, %70 : vector<16x128xf32>
    %72 = arith.truncf %70 : vector<16x128xf32> to vector<16x128xbf16>
    %c1_i32 = arith.constant 1 : i32
    %73 = arith.index_cast %c1_i32 : i32 to index
    %c0_43 = arith.constant 0 : index
    %c0_44 = arith.constant 0 : index
    %74 = vector.load %arg13[%73, %c0_43, %c0_44] : memref<8x16x512xbf16, #tpu.memory_space<vmem>>, vector<1x16x128xbf16>
    %75 = vector.shape_cast %74 : vector<1x16x128xbf16> to vector<16x128xbf16>
    %76 = arith.extf %75 : vector<16x128xbf16> to vector<16x128xf32>
    %c0_45 = arith.constant 0 : index
    %c0_46 = arith.constant 0 : index
    %77 = vector.load %arg4[%c0_45, %c0_46] : memref<128x512xbf16, #tpu.memory_space<vmem>>, vector<128x128xbf16>
    %cst_47 = arith.constant dense<0.000000e+00> : vector<16x128xf32>
    %78 = tpu.matmul %72, %77, %cst_47 {dimension_numbers = #tpu.dot_dimension_numbers<[1], [0], [0], [1], [0, 0, 1, 1], [], []>} : vector<16x128xbf16>, vector<128x128xbf16>, vector<16x128xf32> -> vector<16x128xf32>
    %79 = arith.addf %76, %78 : vector<16x128xf32>
    %cst_48 = arith.constant 5.000000e-01 : f32
    %80 = vector.broadcast %cst_48 : f32 to vector<16x128xf32>
    %81 = arith.mulf %80, %79 : vector<16x128xf32>
    %82 = math.tanh %81 : vector<16x128xf32>
    %cst_49 = arith.constant 5.000000e-01 : f32
    %83 = vector.broadcast %cst_49 : f32 to vector<16x128xf32>
    %84 = arith.mulf %83, %82 : vector<16x128xf32>
    %cst_50 = arith.constant 5.000000e-01 : f32
    %85 = vector.broadcast %cst_50 : f32 to vector<16x128xf32>
    %86 = arith.addf %84, %85 : vector<16x128xf32>
    %87 = arith.index_cast %c1_i32 : i32 to index
    %c0_51 = arith.constant 0 : index
    %c256_52 = arith.constant 256 : index
    %88 = vector.load %arg13[%87, %c0_51, %c256_52] : memref<8x16x512xbf16, #tpu.memory_space<vmem>>, vector<1x16x128xbf16>
    %89 = vector.shape_cast %88 : vector<1x16x128xbf16> to vector<16x128xbf16>
    %90 = arith.extf %89 : vector<16x128xbf16> to vector<16x128xf32>
    %c0_53 = arith.constant 0 : index
    %c256_54 = arith.constant 256 : index
    %91 = vector.load %arg4[%c0_53, %c256_54] : memref<128x512xbf16, #tpu.memory_space<vmem>>, vector<128x128xbf16>
    %cst_55 = arith.constant dense<0.000000e+00> : vector<16x128xf32>
    %92 = tpu.matmul %72, %91, %cst_55 {dimension_numbers = #tpu.dot_dimension_numbers<[1], [0], [0], [1], [0, 0, 1, 1], [], []>} : vector<16x128xbf16>, vector<128x128xbf16>, vector<16x128xf32> -> vector<16x128xf32>
    %93 = arith.addf %90, %92 : vector<16x128xf32>
    %94 = math.tanh %93 : vector<16x128xf32>
    %95 = arith.index_cast %c1_i32 : i32 to index
    %c0_56 = arith.constant 0 : index
    %c128_57 = arith.constant 128 : index
    %96 = vector.load %arg13[%95, %c0_56, %c128_57] : memref<8x16x512xbf16, #tpu.memory_space<vmem>>, vector<1x16x128xbf16>
    %97 = vector.shape_cast %96 : vector<1x16x128xbf16> to vector<16x128xbf16>
    %98 = arith.extf %97 : vector<16x128xbf16> to vector<16x128xf32>
    %c0_58 = arith.constant 0 : index
    %c128_59 = arith.constant 128 : index
    %99 = vector.load %arg4[%c0_58, %c128_59] : memref<128x512xbf16, #tpu.memory_space<vmem>>, vector<128x128xbf16>
    %cst_60 = arith.constant dense<0.000000e+00> : vector<16x128xf32>
    %100 = tpu.matmul %72, %99, %cst_60 {dimension_numbers = #tpu.dot_dimension_numbers<[1], [0], [0], [1], [0, 0, 1, 1], [], []>} : vector<16x128xbf16>, vector<128x128xbf16>, vector<16x128xf32> -> vector<16x128xf32>
    %101 = arith.addf %98, %100 : vector<16x128xf32>
    %cst_61 = arith.constant 5.000000e-01 : f32
    %102 = vector.broadcast %cst_61 : f32 to vector<16x128xf32>
    %103 = arith.mulf %102, %101 : vector<16x128xf32>
    %104 = math.tanh %103 : vector<16x128xf32>
    %cst_62 = arith.constant 5.000000e-01 : f32
    %105 = vector.broadcast %cst_62 : f32 to vector<16x128xf32>
    %106 = arith.mulf %105, %104 : vector<16x128xf32>
    %cst_63 = arith.constant 5.000000e-01 : f32
    %107 = vector.broadcast %cst_63 : f32 to vector<16x128xf32>
    %108 = arith.addf %106, %107 : vector<16x128xf32>
    %109 = arith.mulf %108, %54 : vector<16x128xf32>
    %110 = arith.mulf %86, %94 : vector<16x128xf32>
    %111 = arith.addf %109, %110 : vector<16x128xf32>
    %112 = arith.index_cast %c1_i32 : i32 to index
    %c0_64 = arith.constant 0 : index
    %c384_65 = arith.constant 384 : index
    %113 = vector.load %arg13[%112, %c0_64, %c384_65] : memref<8x16x512xbf16, #tpu.memory_space<vmem>>, vector<1x16x128xbf16>
    %114 = vector.shape_cast %113 : vector<1x16x128xbf16> to vector<16x128xbf16>
    %115 = arith.extf %114 : vector<16x128xbf16> to vector<16x128xf32>
    %c0_66 = arith.constant 0 : index
    %c384_67 = arith.constant 384 : index
    %116 = vector.load %arg4[%c0_66, %c384_67] : memref<128x512xbf16, #tpu.memory_space<vmem>>, vector<128x128xbf16>
    %cst_68 = arith.constant dense<0.000000e+00> : vector<16x128xf32>
    %117 = tpu.matmul %72, %116, %cst_68 {dimension_numbers = #tpu.dot_dimension_numbers<[1], [0], [0], [1], [0, 0, 1, 1], [], []>} : vector<16x128xbf16>, vector<128x128xbf16>, vector<16x128xf32> -> vector<16x128xf32>
    %118 = arith.addf %115, %117 : vector<16x128xf32>
    %cst_69 = arith.constant 5.000000e-01 : f32
    %119 = vector.broadcast %cst_69 : f32 to vector<16x128xf32>
    %120 = arith.mulf %119, %118 : vector<16x128xf32>
    %121 = math.tanh %120 : vector<16x128xf32>
    %cst_70 = arith.constant 5.000000e-01 : f32
    %122 = vector.broadcast %cst_70 : f32 to vector<16x128xf32>
    %123 = arith.mulf %122, %121 : vector<16x128xf32>
    %cst_71 = arith.constant 5.000000e-01 : f32
    %124 = vector.broadcast %cst_71 : f32 to vector<16x128xf32>
    %125 = arith.addf %123, %124 : vector<16x128xf32>
    %126 = math.tanh %111 : vector<16x128xf32>
    %127 = arith.mulf %125, %126 : vector<16x128xf32>
    %128 = arith.addf %71, %127 : vector<16x128xf32>
    %129 = arith.truncf %127 : vector<16x128xf32> to vector<16x128xbf16>
    %c2_i32 = arith.constant 2 : i32
    %130 = arith.index_cast %c2_i32 : i32 to index
    %c0_72 = arith.constant 0 : index
    %c0_73 = arith.constant 0 : index
    %131 = vector.load %arg13[%130, %c0_72, %c0_73] : memref<8x16x512xbf16, #tpu.memory_space<vmem>>, vector<1x16x128xbf16>
    %132 = vector.shape_cast %131 : vector<1x16x128xbf16> to vector<16x128xbf16>
    %133 = arith.extf %132 : vector<16x128xbf16> to vector<16x128xf32>
    %c0_74 = arith.constant 0 : index
    %c0_75 = arith.constant 0 : index
    %134 = vector.load %arg4[%c0_74, %c0_75] : memref<128x512xbf16, #tpu.memory_space<vmem>>, vector<128x128xbf16>
    %cst_76 = arith.constant dense<0.000000e+00> : vector<16x128xf32>
    %135 = tpu.matmul %129, %134, %cst_76 {dimension_numbers = #tpu.dot_dimension_numbers<[1], [0], [0], [1], [0, 0, 1, 1], [], []>} : vector<16x128xbf16>, vector<128x128xbf16>, vector<16x128xf32> -> vector<16x128xf32>
    %136 = arith.addf %133, %135 : vector<16x128xf32>
    %cst_77 = arith.constant 5.000000e-01 : f32
    %137 = vector.broadcast %cst_77 : f32 to vector<16x128xf32>
    %138 = arith.mulf %137, %136 : vector<16x128xf32>
    %139 = math.tanh %138 : vector<16x128xf32>
    %cst_78 = arith.constant 5.000000e-01 : f32
    %140 = vector.broadcast %cst_78 : f32 to vector<16x128xf32>
    %141 = arith.mulf %140, %139 : vector<16x128xf32>
    %cst_79 = arith.constant 5.000000e-01 : f32
    %142 = vector.broadcast %cst_79 : f32 to vector<16x128xf32>
    %143 = arith.addf %141, %142 : vector<16x128xf32>
    %144 = arith.index_cast %c2_i32 : i32 to index
    %c0_80 = arith.constant 0 : index
    %c256_81 = arith.constant 256 : index
    %145 = vector.load %arg13[%144, %c0_80, %c256_81] : memref<8x16x512xbf16, #tpu.memory_space<vmem>>, vector<1x16x128xbf16>
    %146 = vector.shape_cast %145 : vector<1x16x128xbf16> to vector<16x128xbf16>
    %147 = arith.extf %146 : vector<16x128xbf16> to vector<16x128xf32>
    %c0_82 = arith.constant 0 : index
    %c256_83 = arith.constant 256 : index
    %148 = vector.load %arg4[%c0_82, %c256_83] : memref<128x512xbf16, #tpu.memory_space<vmem>>, vector<128x128xbf16>
    %cst_84 = arith.constant dense<0.000000e+00> : vector<16x128xf32>
    %149 = tpu.matmul %129, %148, %cst_84 {dimension_numbers = #tpu.dot_dimension_numbers<[1], [0], [0], [1], [0, 0, 1, 1], [], []>} : vector<16x128xbf16>, vector<128x128xbf16>, vector<16x128xf32> -> vector<16x128xf32>
    %150 = arith.addf %147, %149 : vector<16x128xf32>
    %151 = math.tanh %150 : vector<16x128xf32>
    %152 = arith.index_cast %c2_i32 : i32 to index
    %c0_85 = arith.constant 0 : index
    %c128_86 = arith.constant 128 : index
    %153 = vector.load %arg13[%152, %c0_85, %c128_86] : memref<8x16x512xbf16, #tpu.memory_space<vmem>>, vector<1x16x128xbf16>
    %154 = vector.shape_cast %153 : vector<1x16x128xbf16> to vector<16x128xbf16>
    %155 = arith.extf %154 : vector<16x128xbf16> to vector<16x128xf32>
    %c0_87 = arith.constant 0 : index
    %c128_88 = arith.constant 128 : index
    %156 = vector.load %arg4[%c0_87, %c128_88] : memref<128x512xbf16, #tpu.memory_space<vmem>>, vector<128x128xbf16>
    %cst_89 = arith.constant dense<0.000000e+00> : vector<16x128xf32>
    %157 = tpu.matmul %129, %156, %cst_89 {dimension_numbers = #tpu.dot_dimension_numbers<[1], [0], [0], [1], [0, 0, 1, 1], [], []>} : vector<16x128xbf16>, vector<128x128xbf16>, vector<16x128xf32> -> vector<16x128xf32>
    %158 = arith.addf %155, %157 : vector<16x128xf32>
    %cst_90 = arith.constant 5.000000e-01 : f32
    %159 = vector.broadcast %cst_90 : f32 to vector<16x128xf32>
    %160 = arith.mulf %159, %158 : vector<16x128xf32>
    %161 = math.tanh %160 : vector<16x128xf32>
    %cst_91 = arith.constant 5.000000e-01 : f32
    %162 = vector.broadcast %cst_91 : f32 to vector<16x128xf32>
    %163 = arith.mulf %162, %161 : vector<16x128xf32>
    %cst_92 = arith.constant 5.000000e-01 : f32
    %164 = vector.broadcast %cst_92 : f32 to vector<16x128xf32>
    %165 = arith.addf %163, %164 : vector<16x128xf32>
    %166 = arith.mulf %165, %111 : vector<16x128xf32>
    %167 = arith.mulf %143, %151 : vector<16x128xf32>
    %168 = arith.addf %166, %167 : vector<16x128xf32>
    %169 = arith.index_cast %c2_i32 : i32 to index
    %c0_93 = arith.constant 0 : index
    %c384_94 = arith.constant 384 : index
    %170 = vector.load %arg13[%169, %c0_93, %c384_94] : memref<8x16x512xbf16, #tpu.memory_space<vmem>>, vector<1x16x128xbf16>
    %171 = vector.shape_cast %170 : vector<1x16x128xbf16> to vector<16x128xbf16>
    %172 = arith.extf %171 : vector<16x128xbf16> to vector<16x128xf32>
    %c0_95 = arith.constant 0 : index
    %c384_96 = arith.constant 384 : index
    %173 = vector.load %arg4[%c0_95, %c384_96] : memref<128x512xbf16, #tpu.memory_space<vmem>>, vector<128x128xbf16>
    %cst_97 = arith.constant dense<0.000000e+00> : vector<16x128xf32>
    %174 = tpu.matmul %129, %173, %cst_97 {dimension_numbers = #tpu.dot_dimension_numbers<[1], [0], [0], [1], [0, 0, 1, 1], [], []>} : vector<16x128xbf16>, vector<128x128xbf16>, vector<16x128xf32> -> vector<16x128xf32>
    %175 = arith.addf %172, %174 : vector<16x128xf32>
    %cst_98 = arith.constant 5.000000e-01 : f32
    %176 = vector.broadcast %cst_98 : f32 to vector<16x128xf32>
    %177 = arith.mulf %176, %175 : vector<16x128xf32>
    %178 = math.tanh %177 : vector<16x128xf32>
    %cst_99 = arith.constant 5.000000e-01 : f32
    %179 = vector.broadcast %cst_99 : f32 to vector<16x128xf32>
    %180 = arith.mulf %179, %178 : vector<16x128xf32>
    %cst_100 = arith.constant 5.000000e-01 : f32
    %181 = vector.broadcast %cst_100 : f32 to vector<16x128xf32>
    %182 = arith.addf %180, %181 : vector<16x128xf32>
    %183 = math.tanh %168 : vector<16x128xf32>
    %184 = arith.mulf %182, %183 : vector<16x128xf32>
    %185 = arith.addf %128, %184 : vector<16x128xf32>
    %186 = arith.truncf %184 : vector<16x128xf32> to vector<16x128xbf16>
    %c3_i32 = arith.constant 3 : i32
    %187 = arith.index_cast %c3_i32 : i32 to index
    %c0_101 = arith.constant 0 : index
    %c0_102 = arith.constant 0 : index
    %188 = vector.load %arg13[%187, %c0_101, %c0_102] : memref<8x16x512xbf16, #tpu.memory_space<vmem>>, vector<1x16x128xbf16>
    %189 = vector.shape_cast %188 : vector<1x16x128xbf16> to vector<16x128xbf16>
    %190 = arith.extf %189 : vector<16x128xbf16> to vector<16x128xf32>
    %c0_103 = arith.constant 0 : index
    %c0_104 = arith.constant 0 : index
    %191 = vector.load %arg4[%c0_103, %c0_104] : memref<128x512xbf16, #tpu.memory_space<vmem>>, vector<128x128xbf16>
    %cst_105 = arith.constant dense<0.000000e+00> : vector<16x128xf32>
    %192 = tpu.matmul %186, %191, %cst_105 {dimension_numbers = #tpu.dot_dimension_numbers<[1], [0], [0], [1], [0, 0, 1, 1], [], []>} : vector<16x128xbf16>, vector<128x128xbf16>, vector<16x128xf32> -> vector<16x128xf32>
    %193 = arith.addf %190, %192 : vector<16x128xf32>
    %cst_106 = arith.constant 5.000000e-01 : f32
    %194 = vector.broadcast %cst_106 : f32 to vector<16x128xf32>
    %195 = arith.mulf %194, %193 : vector<16x128xf32>
    %196 = math.tanh %195 : vector<16x128xf32>
    %cst_107 = arith.constant 5.000000e-01 : f32
    %197 = vector.broadcast %cst_107 : f32 to vector<16x128xf32>
    %198 = arith.mulf %197, %196 : vector<16x128xf32>
    %cst_108 = arith.constant 5.000000e-01 : f32
    %199 = vector.broadcast %cst_108 : f32 to vector<16x128xf32>
    %200 = arith.addf %198, %199 : vector<16x128xf32>
    %201 = arith.index_cast %c3_i32 : i32 to index
    %c0_109 = arith.constant 0 : index
    %c256_110 = arith.constant 256 : index
    %202 = vector.load %arg13[%201, %c0_109, %c256_110] : memref<8x16x512xbf16, #tpu.memory_space<vmem>>, vector<1x16x128xbf16>
    %203 = vector.shape_cast %202 : vector<1x16x128xbf16> to vector<16x128xbf16>
    %204 = arith.extf %203 : vector<16x128xbf16> to vector<16x128xf32>
    %c0_111 = arith.constant 0 : index
    %c256_112 = arith.constant 256 : index
    %205 = vector.load %arg4[%c0_111, %c256_112] : memref<128x512xbf16, #tpu.memory_space<vmem>>, vector<128x128xbf16>
    %cst_113 = arith.constant dense<0.000000e+00> : vector<16x128xf32>
    %206 = tpu.matmul %186, %205, %cst_113 {dimension_numbers = #tpu.dot_dimension_numbers<[1], [0], [0], [1], [0, 0, 1, 1], [], []>} : vector<16x128xbf16>, vector<128x128xbf16>, vector<16x128xf32> -> vector<16x128xf32>
    %207 = arith.addf %204, %206 : vector<16x128xf32>
    %208 = math.tanh %207 : vector<16x128xf32>
    %209 = arith.index_cast %c3_i32 : i32 to index
    %c0_114 = arith.constant 0 : index
    %c128_115 = arith.constant 128 : index
    %210 = vector.load %arg13[%209, %c0_114, %c128_115] : memref<8x16x512xbf16, #tpu.memory_space<vmem>>, vector<1x16x128xbf16>
    %211 = vector.shape_cast %210 : vector<1x16x128xbf16> to vector<16x128xbf16>
    %212 = arith.extf %211 : vector<16x128xbf16> to vector<16x128xf32>
    %c0_116 = arith.constant 0 : index
    %c128_117 = arith.constant 128 : index
    %213 = vector.load %arg4[%c0_116, %c128_117] : memref<128x512xbf16, #tpu.memory_space<vmem>>, vector<128x128xbf16>
    %cst_118 = arith.constant dense<0.000000e+00> : vector<16x128xf32>
    %214 = tpu.matmul %186, %213, %cst_118 {dimension_numbers = #tpu.dot_dimension_numbers<[1], [0], [0], [1], [0, 0, 1, 1], [], []>} : vector<16x128xbf16>, vector<128x128xbf16>, vector<16x128xf32> -> vector<16x128xf32>
    %215 = arith.addf %212, %214 : vector<16x128xf32>
    %cst_119 = arith.constant 5.000000e-01 : f32
    %216 = vector.broadcast %cst_119 : f32 to vector<16x128xf32>
    %217 = arith.mulf %216, %215 : vector<16x128xf32>
    %218 = math.tanh %217 : vector<16x128xf32>
    %cst_120 = arith.constant 5.000000e-01 : f32
    %219 = vector.broadcast %cst_120 : f32 to vector<16x128xf32>
    %220 = arith.mulf %219, %218 : vector<16x128xf32>
    %cst_121 = arith.constant 5.000000e-01 : f32
    %221 = vector.broadcast %cst_121 : f32 to vector<16x128xf32>
    %222 = arith.addf %220, %221 : vector<16x128xf32>
    %223 = arith.mulf %222, %168 : vector<16x128xf32>
    %224 = arith.mulf %200, %208 : vector<16x128xf32>
    %225 = arith.addf %223, %224 : vector<16x128xf32>
    %226 = arith.index_cast %c3_i32 : i32 to index
    %c0_122 = arith.constant 0 : index
    %c384_123 = arith.constant 384 : index
    %227 = vector.load %arg13[%226, %c0_122, %c384_123] : memref<8x16x512xbf16, #tpu.memory_space<vmem>>, vector<1x16x128xbf16>
    %228 = vector.shape_cast %227 : vector<1x16x128xbf16> to vector<16x128xbf16>
    %229 = arith.extf %228 : vector<16x128xbf16> to vector<16x128xf32>
    %c0_124 = arith.constant 0 : index
    %c384_125 = arith.constant 384 : index
    %230 = vector.load %arg4[%c0_124, %c384_125] : memref<128x512xbf16, #tpu.memory_space<vmem>>, vector<128x128xbf16>
    %cst_126 = arith.constant dense<0.000000e+00> : vector<16x128xf32>
    %231 = tpu.matmul %186, %230, %cst_126 {dimension_numbers = #tpu.dot_dimension_numbers<[1], [0], [0], [1], [0, 0, 1, 1], [], []>} : vector<16x128xbf16>, vector<128x128xbf16>, vector<16x128xf32> -> vector<16x128xf32>
    %232 = arith.addf %229, %231 : vector<16x128xf32>
    %cst_127 = arith.constant 5.000000e-01 : f32
    %233 = vector.broadcast %cst_127 : f32 to vector<16x128xf32>
    %234 = arith.mulf %233, %232 : vector<16x128xf32>
    %235 = math.tanh %234 : vector<16x128xf32>
    %cst_128 = arith.constant 5.000000e-01 : f32
    %236 = vector.broadcast %cst_128 : f32 to vector<16x128xf32>
    %237 = arith.mulf %236, %235 : vector<16x128xf32>
    %cst_129 = arith.constant 5.000000e-01 : f32
    %238 = vector.broadcast %cst_129 : f32 to vector<16x128xf32>
    %239 = arith.addf %237, %238 : vector<16x128xf32>
    %240 = math.tanh %225 : vector<16x128xf32>
    %241 = arith.mulf %239, %240 : vector<16x128xf32>
    %242 = arith.addf %185, %241 : vector<16x128xf32>
    %243 = arith.truncf %241 : vector<16x128xf32> to vector<16x128xbf16>
    %c4_i32 = arith.constant 4 : i32
    %244 = arith.index_cast %c4_i32 : i32 to index
    %c0_130 = arith.constant 0 : index
    %c0_131 = arith.constant 0 : index
    %245 = vector.load %arg13[%244, %c0_130, %c0_131] : memref<8x16x512xbf16, #tpu.memory_space<vmem>>, vector<1x16x128xbf16>
    %246 = vector.shape_cast %245 : vector<1x16x128xbf16> to vector<16x128xbf16>
    %247 = arith.extf %246 : vector<16x128xbf16> to vector<16x128xf32>
    %c0_132 = arith.constant 0 : index
    %c0_133 = arith.constant 0 : index
    %248 = vector.load %arg4[%c0_132, %c0_133] : memref<128x512xbf16, #tpu.memory_space<vmem>>, vector<128x128xbf16>
    %cst_134 = arith.constant dense<0.000000e+00> : vector<16x128xf32>
    %249 = tpu.matmul %243, %248, %cst_134 {dimension_numbers = #tpu.dot_dimension_numbers<[1], [0], [0], [1], [0, 0, 1, 1], [], []>} : vector<16x128xbf16>, vector<128x128xbf16>, vector<16x128xf32> -> vector<16x128xf32>
    %250 = arith.addf %247, %249 : vector<16x128xf32>
    %cst_135 = arith.constant 5.000000e-01 : f32
    %251 = vector.broadcast %cst_135 : f32 to vector<16x128xf32>
    %252 = arith.mulf %251, %250 : vector<16x128xf32>
    %253 = math.tanh %252 : vector<16x128xf32>
    %cst_136 = arith.constant 5.000000e-01 : f32
    %254 = vector.broadcast %cst_136 : f32 to vector<16x128xf32>
    %255 = arith.mulf %254, %253 : vector<16x128xf32>
    %cst_137 = arith.constant 5.000000e-01 : f32
    %256 = vector.broadcast %cst_137 : f32 to vector<16x128xf32>
    %257 = arith.addf %255, %256 : vector<16x128xf32>
    %258 = arith.index_cast %c4_i32 : i32 to index
    %c0_138 = arith.constant 0 : index
    %c256_139 = arith.constant 256 : index
    %259 = vector.load %arg13[%258, %c0_138, %c256_139] : memref<8x16x512xbf16, #tpu.memory_space<vmem>>, vector<1x16x128xbf16>
    %260 = vector.shape_cast %259 : vector<1x16x128xbf16> to vector<16x128xbf16>
    %261 = arith.extf %260 : vector<16x128xbf16> to vector<16x128xf32>
    %c0_140 = arith.constant 0 : index
    %c256_141 = arith.constant 256 : index
    %262 = vector.load %arg4[%c0_140, %c256_141] : memref<128x512xbf16, #tpu.memory_space<vmem>>, vector<128x128xbf16>
    %cst_142 = arith.constant dense<0.000000e+00> : vector<16x128xf32>
    %263 = tpu.matmul %243, %262, %cst_142 {dimension_numbers = #tpu.dot_dimension_numbers<[1], [0], [0], [1], [0, 0, 1, 1], [], []>} : vector<16x128xbf16>, vector<128x128xbf16>, vector<16x128xf32> -> vector<16x128xf32>
    %264 = arith.addf %261, %263 : vector<16x128xf32>
    %265 = math.tanh %264 : vector<16x128xf32>
    %266 = arith.index_cast %c4_i32 : i32 to index
    %c0_143 = arith.constant 0 : index
    %c128_144 = arith.constant 128 : index
    %267 = vector.load %arg13[%266, %c0_143, %c128_144] : memref<8x16x512xbf16, #tpu.memory_space<vmem>>, vector<1x16x128xbf16>
    %268 = vector.shape_cast %267 : vector<1x16x128xbf16> to vector<16x128xbf16>
    %269 = arith.extf %268 : vector<16x128xbf16> to vector<16x128xf32>
    %c0_145 = arith.constant 0 : index
    %c128_146 = arith.constant 128 : index
    %270 = vector.load %arg4[%c0_145, %c128_146] : memref<128x512xbf16, #tpu.memory_space<vmem>>, vector<128x128xbf16>
    %cst_147 = arith.constant dense<0.000000e+00> : vector<16x128xf32>
    %271 = tpu.matmul %243, %270, %cst_147 {dimension_numbers = #tpu.dot_dimension_numbers<[1], [0], [0], [1], [0, 0, 1, 1], [], []>} : vector<16x128xbf16>, vector<128x128xbf16>, vector<16x128xf32> -> vector<16x128xf32>
    %272 = arith.addf %269, %271 : vector<16x128xf32>
    %cst_148 = arith.constant 5.000000e-01 : f32
    %273 = vector.broadcast %cst_148 : f32 to vector<16x128xf32>
    %274 = arith.mulf %273, %272 : vector<16x128xf32>
    %275 = math.tanh %274 : vector<16x128xf32>
    %cst_149 = arith.constant 5.000000e-01 : f32
    %276 = vector.broadcast %cst_149 : f32 to vector<16x128xf32>
    %277 = arith.mulf %276, %275 : vector<16x128xf32>
    %cst_150 = arith.constant 5.000000e-01 : f32
    %278 = vector.broadcast %cst_150 : f32 to vector<16x128xf32>
    %279 = arith.addf %277, %278 : vector<16x128xf32>
    %280 = arith.mulf %279, %225 : vector<16x128xf32>
    %281 = arith.mulf %257, %265 : vector<16x128xf32>
    %282 = arith.addf %280, %281 : vector<16x128xf32>
    %283 = arith.index_cast %c4_i32 : i32 to index
    %c0_151 = arith.constant 0 : index
    %c384_152 = arith.constant 384 : index
    %284 = vector.load %arg13[%283, %c0_151, %c384_152] : memref<8x16x512xbf16, #tpu.memory_space<vmem>>, vector<1x16x128xbf16>
    %285 = vector.shape_cast %284 : vector<1x16x128xbf16> to vector<16x128xbf16>
    %286 = arith.extf %285 : vector<16x128xbf16> to vector<16x128xf32>
    %c0_153 = arith.constant 0 : index
    %c384_154 = arith.constant 384 : index
    %287 = vector.load %arg4[%c0_153, %c384_154] : memref<128x512xbf16, #tpu.memory_space<vmem>>, vector<128x128xbf16>
    %cst_155 = arith.constant dense<0.000000e+00> : vector<16x128xf32>
    %288 = tpu.matmul %243, %287, %cst_155 {dimension_numbers = #tpu.dot_dimension_numbers<[1], [0], [0], [1], [0, 0, 1, 1], [], []>} : vector<16x128xbf16>, vector<128x128xbf16>, vector<16x128xf32> -> vector<16x128xf32>
    %289 = arith.addf %286, %288 : vector<16x128xf32>
    %cst_156 = arith.constant 5.000000e-01 : f32
    %290 = vector.broadcast %cst_156 : f32 to vector<16x128xf32>
    %291 = arith.mulf %290, %289 : vector<16x128xf32>
    %292 = math.tanh %291 : vector<16x128xf32>
    %cst_157 = arith.constant 5.000000e-01 : f32
    %293 = vector.broadcast %cst_157 : f32 to vector<16x128xf32>
    %294 = arith.mulf %293, %292 : vector<16x128xf32>
    %cst_158 = arith.constant 5.000000e-01 : f32
    %295 = vector.broadcast %cst_158 : f32 to vector<16x128xf32>
    %296 = arith.addf %294, %295 : vector<16x128xf32>
    %297 = math.tanh %282 : vector<16x128xf32>
    %298 = arith.mulf %296, %297 : vector<16x128xf32>
    %299 = arith.addf %242, %298 : vector<16x128xf32>
    %300 = arith.truncf %298 : vector<16x128xf32> to vector<16x128xbf16>
    %c5_i32 = arith.constant 5 : i32
    %301 = arith.index_cast %c5_i32 : i32 to index
    %c0_159 = arith.constant 0 : index
    %c0_160 = arith.constant 0 : index
    %302 = vector.load %arg13[%301, %c0_159, %c0_160] : memref<8x16x512xbf16, #tpu.memory_space<vmem>>, vector<1x16x128xbf16>
    %303 = vector.shape_cast %302 : vector<1x16x128xbf16> to vector<16x128xbf16>
    %304 = arith.extf %303 : vector<16x128xbf16> to vector<16x128xf32>
    %c0_161 = arith.constant 0 : index
    %c0_162 = arith.constant 0 : index
    %305 = vector.load %arg4[%c0_161, %c0_162] : memref<128x512xbf16, #tpu.memory_space<vmem>>, vector<128x128xbf16>
    %cst_163 = arith.constant dense<0.000000e+00> : vector<16x128xf32>
    %306 = tpu.matmul %300, %305, %cst_163 {dimension_numbers = #tpu.dot_dimension_numbers<[1], [0], [0], [1], [0, 0, 1, 1], [], []>} : vector<16x128xbf16>, vector<128x128xbf16>, vector<16x128xf32> -> vector<16x128xf32>
    %307 = arith.addf %304, %306 : vector<16x128xf32>
    %cst_164 = arith.constant 5.000000e-01 : f32
    %308 = vector.broadcast %cst_164 : f32 to vector<16x128xf32>
    %309 = arith.mulf %308, %307 : vector<16x128xf32>
    %310 = math.tanh %309 : vector<16x128xf32>
    %cst_165 = arith.constant 5.000000e-01 : f32
    %311 = vector.broadcast %cst_165 : f32 to vector<16x128xf32>
    %312 = arith.mulf %311, %310 : vector<16x128xf32>
    %cst_166 = arith.constant 5.000000e-01 : f32
    %313 = vector.broadcast %cst_166 : f32 to vector<16x128xf32>
    %314 = arith.addf %312, %313 : vector<16x128xf32>
    %315 = arith.index_cast %c5_i32 : i32 to index
    %c0_167 = arith.constant 0 : index
    %c256_168 = arith.constant 256 : index
    %316 = vector.load %arg13[%315, %c0_167, %c256_168] : memref<8x16x512xbf16, #tpu.memory_space<vmem>>, vector<1x16x128xbf16>
    %317 = vector.shape_cast %316 : vector<1x16x128xbf16> to vector<16x128xbf16>
    %318 = arith.extf %317 : vector<16x128xbf16> to vector<16x128xf32>
    %c0_169 = arith.constant 0 : index
    %c256_170 = arith.constant 256 : index
    %319 = vector.load %arg4[%c0_169, %c256_170] : memref<128x512xbf16, #tpu.memory_space<vmem>>, vector<128x128xbf16>
    %cst_171 = arith.constant dense<0.000000e+00> : vector<16x128xf32>
    %320 = tpu.matmul %300, %319, %cst_171 {dimension_numbers = #tpu.dot_dimension_numbers<[1], [0], [0], [1], [0, 0, 1, 1], [], []>} : vector<16x128xbf16>, vector<128x128xbf16>, vector<16x128xf32> -> vector<16x128xf32>
    %321 = arith.addf %318, %320 : vector<16x128xf32>
    %322 = math.tanh %321 : vector<16x128xf32>
    %323 = arith.index_cast %c5_i32 : i32 to index
    %c0_172 = arith.constant 0 : index
    %c128_173 = arith.constant 128 : index
    %324 = vector.load %arg13[%323, %c0_172, %c128_173] : memref<8x16x512xbf16, #tpu.memory_space<vmem>>, vector<1x16x128xbf16>
    %325 = vector.shape_cast %324 : vector<1x16x128xbf16> to vector<16x128xbf16>
    %326 = arith.extf %325 : vector<16x128xbf16> to vector<16x128xf32>
    %c0_174 = arith.constant 0 : index
    %c128_175 = arith.constant 128 : index
    %327 = vector.load %arg4[%c0_174, %c128_175] : memref<128x512xbf16, #tpu.memory_space<vmem>>, vector<128x128xbf16>
    %cst_176 = arith.constant dense<0.000000e+00> : vector<16x128xf32>
    %328 = tpu.matmul %300, %327, %cst_176 {dimension_numbers = #tpu.dot_dimension_numbers<[1], [0], [0], [1], [0, 0, 1, 1], [], []>} : vector<16x128xbf16>, vector<128x128xbf16>, vector<16x128xf32> -> vector<16x128xf32>
    %329 = arith.addf %326, %328 : vector<16x128xf32>
    %cst_177 = arith.constant 5.000000e-01 : f32
    %330 = vector.broadcast %cst_177 : f32 to vector<16x128xf32>
    %331 = arith.mulf %330, %329 : vector<16x128xf32>
    %332 = math.tanh %331 : vector<16x128xf32>
    %cst_178 = arith.constant 5.000000e-01 : f32
    %333 = vector.broadcast %cst_178 : f32 to vector<16x128xf32>
    %334 = arith.mulf %333, %332 : vector<16x128xf32>
    %cst_179 = arith.constant 5.000000e-01 : f32
    %335 = vector.broadcast %cst_179 : f32 to vector<16x128xf32>
    %336 = arith.addf %334, %335 : vector<16x128xf32>
    %337 = arith.mulf %336, %282 : vector<16x128xf32>
    %338 = arith.mulf %314, %322 : vector<16x128xf32>
    %339 = arith.addf %337, %338 : vector<16x128xf32>
    %340 = arith.index_cast %c5_i32 : i32 to index
    %c0_180 = arith.constant 0 : index
    %c384_181 = arith.constant 384 : index
    %341 = vector.load %arg13[%340, %c0_180, %c384_181] : memref<8x16x512xbf16, #tpu.memory_space<vmem>>, vector<1x16x128xbf16>
    %342 = vector.shape_cast %341 : vector<1x16x128xbf16> to vector<16x128xbf16>
    %343 = arith.extf %342 : vector<16x128xbf16> to vector<16x128xf32>
    %c0_182 = arith.constant 0 : index
    %c384_183 = arith.constant 384 : index
    %344 = vector.load %arg4[%c0_182, %c384_183] : memref<128x512xbf16, #tpu.memory_space<vmem>>, vector<128x128xbf16>
    %cst_184 = arith.constant dense<0.000000e+00> : vector<16x128xf32>
    %345 = tpu.matmul %300, %344, %cst_184 {dimension_numbers = #tpu.dot_dimension_numbers<[1], [0], [0], [1], [0, 0, 1, 1], [], []>} : vector<16x128xbf16>, vector<128x128xbf16>, vector<16x128xf32> -> vector<16x128xf32>
    %346 = arith.addf %343, %345 : vector<16x128xf32>
    %cst_185 = arith.constant 5.000000e-01 : f32
    %347 = vector.broadcast %cst_185 : f32 to vector<16x128xf32>
    %348 = arith.mulf %347, %346 : vector<16x128xf32>
    %349 = math.tanh %348 : vector<16x128xf32>
    %cst_186 = arith.constant 5.000000e-01 : f32
    %350 = vector.broadcast %cst_186 : f32 to vector<16x128xf32>
    %351 = arith.mulf %350, %349 : vector<16x128xf32>
    %cst_187 = arith.constant 5.000000e-01 : f32
    %352 = vector.broadcast %cst_187 : f32 to vector<16x128xf32>
    %353 = arith.addf %351, %352 : vector<16x128xf32>
    %354 = math.tanh %339 : vector<16x128xf32>
    %355 = arith.mulf %353, %354 : vector<16x128xf32>
    %356 = arith.addf %299, %355 : vector<16x128xf32>
    %357 = arith.truncf %355 : vector<16x128xf32> to vector<16x128xbf16>
    %c6_i32 = arith.constant 6 : i32
    %358 = arith.index_cast %c6_i32 : i32 to index
    %c0_188 = arith.constant 0 : index
    %c0_189 = arith.constant 0 : index
    %359 = vector.load %arg13[%358, %c0_188, %c0_189] : memref<8x16x512xbf16, #tpu.memory_space<vmem>>, vector<1x16x128xbf16>
    %360 = vector.shape_cast %359 : vector<1x16x128xbf16> to vector<16x128xbf16>
    %361 = arith.extf %360 : vector<16x128xbf16> to vector<16x128xf32>
    %c0_190 = arith.constant 0 : index
    %c0_191 = arith.constant 0 : index
    %362 = vector.load %arg4[%c0_190, %c0_191] : memref<128x512xbf16, #tpu.memory_space<vmem>>, vector<128x128xbf16>
    %cst_192 = arith.constant dense<0.000000e+00> : vector<16x128xf32>
    %363 = tpu.matmul %357, %362, %cst_192 {dimension_numbers = #tpu.dot_dimension_numbers<[1], [0], [0], [1], [0, 0, 1, 1], [], []>} : vector<16x128xbf16>, vector<128x128xbf16>, vector<16x128xf32> -> vector<16x128xf32>
    %364 = arith.addf %361, %363 : vector<16x128xf32>
    %cst_193 = arith.constant 5.000000e-01 : f32
    %365 = vector.broadcast %cst_193 : f32 to vector<16x128xf32>
    %366 = arith.mulf %365, %364 : vector<16x128xf32>
    %367 = math.tanh %366 : vector<16x128xf32>
    %cst_194 = arith.constant 5.000000e-01 : f32
    %368 = vector.broadcast %cst_194 : f32 to vector<16x128xf32>
    %369 = arith.mulf %368, %367 : vector<16x128xf32>
    %cst_195 = arith.constant 5.000000e-01 : f32
    %370 = vector.broadcast %cst_195 : f32 to vector<16x128xf32>
    %371 = arith.addf %369, %370 : vector<16x128xf32>
    %372 = arith.index_cast %c6_i32 : i32 to index
    %c0_196 = arith.constant 0 : index
    %c256_197 = arith.constant 256 : index
    %373 = vector.load %arg13[%372, %c0_196, %c256_197] : memref<8x16x512xbf16, #tpu.memory_space<vmem>>, vector<1x16x128xbf16>
    %374 = vector.shape_cast %373 : vector<1x16x128xbf16> to vector<16x128xbf16>
    %375 = arith.extf %374 : vector<16x128xbf16> to vector<16x128xf32>
    %c0_198 = arith.constant 0 : index
    %c256_199 = arith.constant 256 : index
    %376 = vector.load %arg4[%c0_198, %c256_199] : memref<128x512xbf16, #tpu.memory_space<vmem>>, vector<128x128xbf16>
    %cst_200 = arith.constant dense<0.000000e+00> : vector<16x128xf32>
    %377 = tpu.matmul %357, %376, %cst_200 {dimension_numbers = #tpu.dot_dimension_numbers<[1], [0], [0], [1], [0, 0, 1, 1], [], []>} : vector<16x128xbf16>, vector<128x128xbf16>, vector<16x128xf32> -> vector<16x128xf32>
    %378 = arith.addf %375, %377 : vector<16x128xf32>
    %379 = math.tanh %378 : vector<16x128xf32>
    %380 = arith.index_cast %c6_i32 : i32 to index
    %c0_201 = arith.constant 0 : index
    %c128_202 = arith.constant 128 : index
    %381 = vector.load %arg13[%380, %c0_201, %c128_202] : memref<8x16x512xbf16, #tpu.memory_space<vmem>>, vector<1x16x128xbf16>
    %382 = vector.shape_cast %381 : vector<1x16x128xbf16> to vector<16x128xbf16>
    %383 = arith.extf %382 : vector<16x128xbf16> to vector<16x128xf32>
    %c0_203 = arith.constant 0 : index
    %c128_204 = arith.constant 128 : index
    %384 = vector.load %arg4[%c0_203, %c128_204] : memref<128x512xbf16, #tpu.memory_space<vmem>>, vector<128x128xbf16>
    %cst_205 = arith.constant dense<0.000000e+00> : vector<16x128xf32>
    %385 = tpu.matmul %357, %384, %cst_205 {dimension_numbers = #tpu.dot_dimension_numbers<[1], [0], [0], [1], [0, 0, 1, 1], [], []>} : vector<16x128xbf16>, vector<128x128xbf16>, vector<16x128xf32> -> vector<16x128xf32>
    %386 = arith.addf %383, %385 : vector<16x128xf32>
    %cst_206 = arith.constant 5.000000e-01 : f32
    %387 = vector.broadcast %cst_206 : f32 to vector<16x128xf32>
    %388 = arith.mulf %387, %386 : vector<16x128xf32>
    %389 = math.tanh %388 : vector<16x128xf32>
    %cst_207 = arith.constant 5.000000e-01 : f32
    %390 = vector.broadcast %cst_207 : f32 to vector<16x128xf32>
    %391 = arith.mulf %390, %389 : vector<16x128xf32>
    %cst_208 = arith.constant 5.000000e-01 : f32
    %392 = vector.broadcast %cst_208 : f32 to vector<16x128xf32>
    %393 = arith.addf %391, %392 : vector<16x128xf32>
    %394 = arith.mulf %393, %339 : vector<16x128xf32>
    %395 = arith.mulf %371, %379 : vector<16x128xf32>
    %396 = arith.addf %394, %395 : vector<16x128xf32>
    %397 = arith.index_cast %c6_i32 : i32 to index
    %c0_209 = arith.constant 0 : index
    %c384_210 = arith.constant 384 : index
    %398 = vector.load %arg13[%397, %c0_209, %c384_210] : memref<8x16x512xbf16, #tpu.memory_space<vmem>>, vector<1x16x128xbf16>
    %399 = vector.shape_cast %398 : vector<1x16x128xbf16> to vector<16x128xbf16>
    %400 = arith.extf %399 : vector<16x128xbf16> to vector<16x128xf32>
    %c0_211 = arith.constant 0 : index
    %c384_212 = arith.constant 384 : index
    %401 = vector.load %arg4[%c0_211, %c384_212] : memref<128x512xbf16, #tpu.memory_space<vmem>>, vector<128x128xbf16>
    %cst_213 = arith.constant dense<0.000000e+00> : vector<16x128xf32>
    %402 = tpu.matmul %357, %401, %cst_213 {dimension_numbers = #tpu.dot_dimension_numbers<[1], [0], [0], [1], [0, 0, 1, 1], [], []>} : vector<16x128xbf16>, vector<128x128xbf16>, vector<16x128xf32> -> vector<16x128xf32>
    %403 = arith.addf %400, %402 : vector<16x128xf32>
    %cst_214 = arith.constant 5.000000e-01 : f32
    %404 = vector.broadcast %cst_214 : f32 to vector<16x128xf32>
    %405 = arith.mulf %404, %403 : vector<16x128xf32>
    %406 = math.tanh %405 : vector<16x128xf32>
    %cst_215 = arith.constant 5.000000e-01 : f32
    %407 = vector.broadcast %cst_215 : f32 to vector<16x128xf32>
    %408 = arith.mulf %407, %406 : vector<16x128xf32>
    %cst_216 = arith.constant 5.000000e-01 : f32
    %409 = vector.broadcast %cst_216 : f32 to vector<16x128xf32>
    %410 = arith.addf %408, %409 : vector<16x128xf32>
    %411 = math.tanh %396 : vector<16x128xf32>
    %412 = arith.mulf %410, %411 : vector<16x128xf32>
    %413 = arith.addf %356, %412 : vector<16x128xf32>
    %414 = arith.truncf %412 : vector<16x128xf32> to vector<16x128xbf16>
    %c7_i32 = arith.constant 7 : i32
    %415 = arith.index_cast %c7_i32 : i32 to index
    %c0_217 = arith.constant 0 : index
    %c0_218 = arith.constant 0 : index
    %416 = vector.load %arg13[%415, %c0_217, %c0_218] : memref<8x16x512xbf16, #tpu.memory_space<vmem>>, vector<1x16x128xbf16>
    %417 = vector.shape_cast %416 : vector<1x16x128xbf16> to vector<16x128xbf16>
    %418 = arith.extf %417 : vector<16x128xbf16> to vector<16x128xf32>
    %c0_219 = arith.constant 0 : index
    %c0_220 = arith.constant 0 : index
    %419 = vector.load %arg4[%c0_219, %c0_220] : memref<128x512xbf16, #tpu.memory_space<vmem>>, vector<128x128xbf16>
    %cst_221 = arith.constant dense<0.000000e+00> : vector<16x128xf32>
    %420 = tpu.matmul %414, %419, %cst_221 {dimension_numbers = #tpu.dot_dimension_numbers<[1], [0], [0], [1], [0, 0, 1, 1], [], []>} : vector<16x128xbf16>, vector<128x128xbf16>, vector<16x128xf32> -> vector<16x128xf32>
    %421 = arith.addf %418, %420 : vector<16x128xf32>
    %cst_222 = arith.constant 5.000000e-01 : f32
    %422 = vector.broadcast %cst_222 : f32 to vector<16x128xf32>
    %423 = arith.mulf %422, %421 : vector<16x128xf32>
    %424 = math.tanh %423 : vector<16x128xf32>
    %cst_223 = arith.constant 5.000000e-01 : f32
    %425 = vector.broadcast %cst_223 : f32 to vector<16x128xf32>
    %426 = arith.mulf %425, %424 : vector<16x128xf32>
    %cst_224 = arith.constant 5.000000e-01 : f32
    %427 = vector.broadcast %cst_224 : f32 to vector<16x128xf32>
    %428 = arith.addf %426, %427 : vector<16x128xf32>
    %429 = arith.index_cast %c7_i32 : i32 to index
    %c0_225 = arith.constant 0 : index
    %c256_226 = arith.constant 256 : index
    %430 = vector.load %arg13[%429, %c0_225, %c256_226] : memref<8x16x512xbf16, #tpu.memory_space<vmem>>, vector<1x16x128xbf16>
    %431 = vector.shape_cast %430 : vector<1x16x128xbf16> to vector<16x128xbf16>
    %432 = arith.extf %431 : vector<16x128xbf16> to vector<16x128xf32>
    %c0_227 = arith.constant 0 : index
    %c256_228 = arith.constant 256 : index
    %433 = vector.load %arg4[%c0_227, %c256_228] : memref<128x512xbf16, #tpu.memory_space<vmem>>, vector<128x128xbf16>
    %cst_229 = arith.constant dense<0.000000e+00> : vector<16x128xf32>
    %434 = tpu.matmul %414, %433, %cst_229 {dimension_numbers = #tpu.dot_dimension_numbers<[1], [0], [0], [1], [0, 0, 1, 1], [], []>} : vector<16x128xbf16>, vector<128x128xbf16>, vector<16x128xf32> -> vector<16x128xf32>
    %435 = arith.addf %432, %434 : vector<16x128xf32>
    %436 = math.tanh %435 : vector<16x128xf32>
    %437 = arith.index_cast %c7_i32 : i32 to index
    %c0_230 = arith.constant 0 : index
    %c128_231 = arith.constant 128 : index
    %438 = vector.load %arg13[%437, %c0_230, %c128_231] : memref<8x16x512xbf16, #tpu.memory_space<vmem>>, vector<1x16x128xbf16>
    %439 = vector.shape_cast %438 : vector<1x16x128xbf16> to vector<16x128xbf16>
    %440 = arith.extf %439 : vector<16x128xbf16> to vector<16x128xf32>
    %c0_232 = arith.constant 0 : index
    %c128_233 = arith.constant 128 : index
    %441 = vector.load %arg4[%c0_232, %c128_233] : memref<128x512xbf16, #tpu.memory_space<vmem>>, vector<128x128xbf16>
    %cst_234 = arith.constant dense<0.000000e+00> : vector<16x128xf32>
    %442 = tpu.matmul %414, %441, %cst_234 {dimension_numbers = #tpu.dot_dimension_numbers<[1], [0], [0], [1], [0, 0, 1, 1], [], []>} : vector<16x128xbf16>, vector<128x128xbf16>, vector<16x128xf32> -> vector<16x128xf32>
    %443 = arith.addf %440, %442 : vector<16x128xf32>
    %cst_235 = arith.constant 5.000000e-01 : f32
    %444 = vector.broadcast %cst_235 : f32 to vector<16x128xf32>
    %445 = arith.mulf %444, %443 : vector<16x128xf32>
    %446 = math.tanh %445 : vector<16x128xf32>
    %cst_236 = arith.constant 5.000000e-01 : f32
    %447 = vector.broadcast %cst_236 : f32 to vector<16x128xf32>
    %448 = arith.mulf %447, %446 : vector<16x128xf32>
    %cst_237 = arith.constant 5.000000e-01 : f32
    %449 = vector.broadcast %cst_237 : f32 to vector<16x128xf32>
    %450 = arith.addf %448, %449 : vector<16x128xf32>
    %451 = arith.mulf %450, %396 : vector<16x128xf32>
    %452 = arith.mulf %428, %436 : vector<16x128xf32>
    %453 = arith.addf %451, %452 : vector<16x128xf32>
    %454 = arith.index_cast %c7_i32 : i32 to index
    %c0_238 = arith.constant 0 : index
    %c384_239 = arith.constant 384 : index
    %455 = vector.load %arg13[%454, %c0_238, %c384_239] : memref<8x16x512xbf16, #tpu.memory_space<vmem>>, vector<1x16x128xbf16>
    %456 = vector.shape_cast %455 : vector<1x16x128xbf16> to vector<16x128xbf16>
    %457 = arith.extf %456 : vector<16x128xbf16> to vector<16x128xf32>
    %c0_240 = arith.constant 0 : index
    %c384_241 = arith.constant 384 : index
    %458 = vector.load %arg4[%c0_240, %c384_241] : memref<128x512xbf16, #tpu.memory_space<vmem>>, vector<128x128xbf16>
    %cst_242 = arith.constant dense<0.000000e+00> : vector<16x128xf32>
    %459 = tpu.matmul %414, %458, %cst_242 {dimension_numbers = #tpu.dot_dimension_numbers<[1], [0], [0], [1], [0, 0, 1, 1], [], []>} : vector<16x128xbf16>, vector<128x128xbf16>, vector<16x128xf32> -> vector<16x128xf32>
    %460 = arith.addf %457, %459 : vector<16x128xf32>
    %cst_243 = arith.constant 5.000000e-01 : f32
    %461 = vector.broadcast %cst_243 : f32 to vector<16x128xf32>
    %462 = arith.mulf %461, %460 : vector<16x128xf32>
    %463 = math.tanh %462 : vector<16x128xf32>
    %cst_244 = arith.constant 5.000000e-01 : f32
    %464 = vector.broadcast %cst_244 : f32 to vector<16x128xf32>
    %465 = arith.mulf %464, %463 : vector<16x128xf32>
    %cst_245 = arith.constant 5.000000e-01 : f32
    %466 = vector.broadcast %cst_245 : f32 to vector<16x128xf32>
    %467 = arith.addf %465, %466 : vector<16x128xf32>
    %468 = math.tanh %453 : vector<16x128xf32>
    %469 = arith.mulf %467, %468 : vector<16x128xf32>
    %470 = arith.addf %413, %469 : vector<16x128xf32>
    %471 = arith.truncf %469 : vector<16x128xf32> to vector<16x128xbf16>
    %c8_i32 = arith.constant 8 : i32
    %c0_246 = arith.constant 0 : index
    %c0_247 = arith.constant 0 : index
    %472 = vector.load %arg14[%c0_246, %c0_247] : memref<16x128xbf16, #tpu.memory_space<vmem>>, vector<16x128xbf16>
    tpu.vector_store %arg14[%c0_246, %c0_247], %471 {strides = array<i32>} : memref<16x128xbf16, #tpu.memory_space<vmem>>, vector<16x128xbf16>,
    %c0_248 = arith.constant 0 : index
    %c0_249 = arith.constant 0 : index
    %473 = vector.load %arg15[%c0_248, %c0_249] : memref<16x128xf32, #tpu.memory_space<vmem>>, vector<16x128xf32>
    tpu.vector_store %arg15[%c0_248, %c0_249], %453 {strides = array<i32>} : memref<16x128xf32, #tpu.memory_space<vmem>>, vector<16x128xf32>,
    %c0_250 = arith.constant 0 : index
    %c0_251 = arith.constant 0 : index
    %474 = vector.load %arg16[%c0_250, %c0_251] : memref<16x128xf32, #tpu.memory_space<vmem>>, vector<16x128xf32>
    tpu.vector_store %arg16[%c0_250, %c0_251], %470 {strides = array<i32>} : memref<16x128xf32, #tpu.memory_space<vmem>>, vector<16x128xf32>,
    %c0_i32_252 = arith.constant 0 : i32
    %475 = arith.cmpi eq, %arg1, %c0_i32_252 : i32
    %476 = arith.extui %475 : i1 to i32
    %c0_i32_253 = arith.constant 0 : i32
    %477 = arith.cmpi ne, %476, %c0_i32_253 : i32
    scf.if %477 {
      %478 = arith.truncf %470 : vector<16x128xf32> to vector<16x128xbf16>
      %c0_254 = arith.constant 0 : index
      %c0_255 = arith.constant 0 : index
      %479 = vector.load %arg6[%c0_254, %c0_255] : memref<128x128xbf16, #tpu.memory_space<vmem>>, vector<128x128xbf16>
      %cst_256 = arith.constant dense<0.000000e+00> : vector<16x128xf32>
      %480 = tpu.matmul %478, %479, %cst_256 {dimension_numbers = #tpu.dot_dimension_numbers<[1], [0], [0], [1], [0, 0, 1, 1], [], []>} : vector<16x128xbf16>, vector<128x128xbf16>, vector<16x128xf32> -> vector<16x128xf32>
      %c0_257 = arith.constant 0 : index
      %c0_258 = arith.constant 0 : index
      %481 = vector.load %arg7[%c0_257, %c0_258] : memref<1x128xf32, #tpu.memory_space<vmem>>, vector<1x128xf32>
      %482 = vector.broadcast %481 : vector<1x128xf32> to vector<16x128xf32>
      %483 = arith.addf %480, %482 : vector<16x128xf32>
      %cst_259 = arith.constant 0.000000e+00 : f32
      %484 = vector.broadcast %cst_259 : f32 to vector<16x128xf32>
      %485 = arith.maximumf %483, %484 : vector<16x128xf32>
      %486 = arith.truncf %485 : vector<16x128xf32> to vector<16x128xbf16>
      %c0_260 = arith.constant 0 : index
      %c0_261 = arith.constant 0 : index
      %487 = vector.load %arg8[%c0_260, %c0_261] : memref<128x128xbf16, #tpu.memory_space<vmem>>, vector<128x128xbf16>
      %cst_262 = arith.constant dense<0.000000e+00> : vector<16x128xf32>
      %488 = tpu.matmul %486, %487, %cst_262 {dimension_numbers = #tpu.dot_dimension_numbers<[1], [0], [0], [1], [0, 0, 1, 1], [], []>} : vector<16x128xbf16>, vector<128x128xbf16>, vector<16x128xf32> -> vector<16x128xf32>
      %c0_263 = arith.constant 0 : index
      %c0_264 = arith.constant 0 : index
      %489 = vector.load %arg9[%c0_263, %c0_264] : memref<1x128xf32, #tpu.memory_space<vmem>>, vector<1x128xf32>
      %490 = vector.broadcast %489 : vector<1x128xf32> to vector<16x128xf32>
      %491 = arith.addf %488, %490 : vector<16x128xf32>
      %cst_265 = arith.constant 0.000000e+00 : f32
      %492 = vector.broadcast %cst_265 : f32 to vector<16x128xf32>
      %493 = arith.maximumf %491, %492 : vector<16x128xf32>
      %494 = arith.truncf %493 : vector<16x128xf32> to vector<16x128xbf16>
      %c0_266 = arith.constant 0 : index
      %c0_267 = arith.constant 0 : index
      %495 = vector.load %arg10[%c0_266, %c0_267] : memref<128x128xbf16, #tpu.memory_space<vmem>>, vector<128x128xbf16>
      %cst_268 = arith.constant dense<0.000000e+00> : vector<16x128xf32>
      %496 = tpu.matmul %494, %495, %cst_268 {dimension_numbers = #tpu.dot_dimension_numbers<[1], [0], [0], [1], [0, 0, 1, 1], [], []>} : vector<16x128xbf16>, vector<128x128xbf16>, vector<16x128xf32> -> vector<16x128xf32>
      %c0_269 = arith.constant 0 : index
      %c0_270 = arith.constant 0 : index
      %497 = vector.load %arg11[%c0_269, %c0_270] : memref<1x128xf32, #tpu.memory_space<vmem>>, vector<1x128xf32>
      %498 = vector.broadcast %497 : vector<1x128xf32> to vector<16x128xf32>
      %499 = arith.addf %496, %498 : vector<16x128xf32>
      %c0_271 = arith.constant 0 : index
      %c0_272 = arith.constant 0 : index
      %500 = vector.load %arg12[%c0_271, %c0_272] : memref<16x128xf32, #tpu.memory_space<vmem>>, vector<16x128xf32>
      tpu.vector_store %arg12[%c0_271, %c0_272], %499 {strides = array<i32>} : memref<16x128xf32, #tpu.memory_space<vmem>>, vector<16x128xf32>,
    } else {
    }
    return
  }
  func.func @transform_0(%arg0: i32, %arg1: i32) -> (i32, i32, i32) {
    %c0_i32 = arith.constant 0 : i32
    %c0_i32_0 = arith.constant 0 : i32
    return %arg1, %arg0, %c0_i32 : i32, i32, i32
  }
  func.func @transform_1(%arg0: i32, %arg1: i32) -> (i32, i32) {
    %c0_i32 = arith.constant 0 : i32
    %c0_i32_0 = arith.constant 0 : i32
    %c0_i32_1 = arith.constant 0 : i32
    return %c0_i32, %c0_i32_0 : i32, i32
  }
  func.func @transform_2(%arg0: i32, %arg1: i32) -> (i32, i32) {
    %c0_i32 = arith.constant 0 : i32
    %c0_i32_0 = arith.constant 0 : i32
    %c0_i32_1 = arith.constant 0 : i32
    return %c0_i32, %c0_i32_0 : i32, i32
  }
  func.func @transform_3(%arg0: i32, %arg1: i32) -> (i32, i32) {
    %c0_i32 = arith.constant 0 : i32
    %c0_i32_0 = arith.constant 0 : i32
    %c0_i32_1 = arith.constant 0 : i32
    return %c0_i32, %c0_i32_0 : i32, i32
  }
  func.func @transform_4(%arg0: i32, %arg1: i32) -> (i32, i32) {
    %c0_i32 = arith.constant 0 : i32
    %c0_i32_0 = arith.constant 0 : i32
    %c0_i32_1 = arith.constant 0 : i32
    return %c0_i32, %c0_i32_0 : i32, i32
  }
  func.func @transform_5(%arg0: i32, %arg1: i32) -> (i32, i32) {
    %c0_i32 = arith.constant 0 : i32
    %c0_i32_0 = arith.constant 0 : i32
    %c0_i32_1 = arith.constant 0 : i32
    return %c0_i32, %c0_i32_0 : i32, i32
  }
  func.func @transform_6(%arg0: i32, %arg1: i32) -> (i32, i32) {
    %c0_i32 = arith.constant 0 : i32
    %c0_i32_0 = arith.constant 0 : i32
    %c0_i32_1 = arith.constant 0 : i32
    return %c0_i32, %c0_i32_0 : i32, i32
  }
  func.func @transform_7(%arg0: i32, %arg1: i32) -> (i32, i32) {
    %c0_i32 = arith.constant 0 : i32
    %c0_i32_0 = arith.constant 0 : i32
    %c0_i32_1 = arith.constant 0 : i32
    return %c0_i32, %c0_i32_0 : i32, i32
  }
  func.func @transform_8(%arg0: i32, %arg1: i32) -> (i32, i32) {
    %c0_i32 = arith.constant 0 : i32
    %c0_i32_0 = arith.constant 0 : i32
    %c0_i32_1 = arith.constant 0 : i32
    return %c0_i32, %c0_i32_0 : i32, i32
  }
  func.func @transform_9(%arg0: i32, %arg1: i32) -> (i32, i32) {
    %c0_i32 = arith.constant 0 : i32
    %c0_i32_0 = arith.constant 0 : i32
    %c0_i32_1 = arith.constant 0 : i32
    return %c0_i32, %c0_i32_0 : i32, i32
  }
  func.func @transform_10(%arg0: i32, %arg1: i32) -> (i32, i32) {
    %c0_i32 = arith.constant 0 : i32
    %c0_i32_0 = arith.constant 0 : i32
    return %arg0, %c0_i32 : i32, i32
  }
}

</mosaic_0001>

<llo_original>
// kernel: tpu_custom_call.1
$region0: #{tpu_custom_call.1}
  #allocation0 [shape = 'u32[]', space=smem, size = 0x4, offset = 0x4, fixed_abs, tag = 'smem constant byte address 0x4 - core index']
  #allocation1 [shape = 'u32[144,128]{1,0:T(1,128)}', space=vmem, size = 0x12000, scoped, tag = 'internal scratch']
  #allocation2 [shape = 'bf16[8,16,512]{2,1,0:T(16,128)(2,1)}', space=vmem, size = 0x20000, scoped, tag = 'scratch operand']
  #allocation3 [shape = 'bf16[16,128]{1,0:T(16,128)(2,1)}', space=vmem, size = 0x1000, scoped, tag = 'scratch operand']
  #allocation4 [shape = 'f32[16,128]{1,0:T(8,128)}', space=vmem, size = 0x2000, scoped, tag = 'scratch operand']
  #allocation5 [shape = 'f32[16,128]{1,0:T(8,128)}', space=vmem, size = 0x2000, scoped, tag = 'scratch operand']
  %s0 = inlined_call_operand.hbm [shape: bf16[8,16,16], index: 0, kind: input, shape index: {}]
  %s1 = inlined_call_operand.hbm [shape: bf16[16,512], index: 1, kind: input, shape index: {}]
  %s2 = inlined_call_operand.hbm [shape: bf16[128,512], index: 2, kind: input, shape index: {}]
  %s3 = inlined_call_operand.vmem [shape: f32[1,512], index: 3, kind: input, shape index: {}]
  %s4 = inlined_call_operand.hbm [shape: bf16[128,128], index: 4, kind: input, shape index: {}]
  %s5 = inlined_call_operand.vmem [shape: f32[1,128], index: 5, kind: input, shape index: {}]
  %s6 = inlined_call_operand.hbm [shape: bf16[128,128], index: 6, kind: input, shape index: {}]
  %s7 = inlined_call_operand.vmem [shape: f32[1,128], index: 7, kind: input, shape index: {}]
  %s8 = inlined_call_operand.hbm [shape: bf16[128,128], index: 8, kind: input, shape index: {}]
  %s9 = inlined_call_operand.vmem [shape: f32[1,128], index: 9, kind: input, shape index: {}]
  %s10 = inlined_call_operand.hbm [shape: f32[16,128], index: 10, kind: output, shape index: {}]
  %s11 = sld [smem:[#allocation0]]
  $region82: #{tpu_custom_call.1} parent=0
    _
  %s13 = ssub.s32 1, %s11
  %s14 = scalar_select 0, %s13, %s11
  $region1: #{tpu_custom_call.1} parent=0
    #allocation6 [shape = 'u8[32768]{0}', space=vmem, size = 0x8000, scoped, tag = 'input window, operand 0, single buffered']
    #allocation7 [shape = 's32[1]{0}', space=sflag, size = 0x4, scoped, tag = 'scoped memory for tpu_custom_call.1']
    #allocation8 [shape = 's32[1]{0}', space=sflag, size = 0x4, scoped, tag = 'scoped memory for tpu_custom_call.1']
    #allocation9 [shape = 'u8[16384]{0}', space=vmem, size = 0x4000, scoped, tag = 'input window, operand 1, single buffered']
    #allocation10 [shape = 's32[1]{0}', space=sflag, size = 0x4, scoped, tag = 'scoped memory for tpu_custom_call.1']
    #allocation11 [shape = 'u8[131072]{0}', space=vmem, size = 0x20000, scoped, tag = 'input window, operand 2, single buffered']
    #allocation12 [shape = 'u8[32768]{0}', space=vmem, size = 0x8000, scoped, tag = 'input window, operand 4, single buffered']
    #allocation13 [shape = 's32[1]{0}', space=sflag, size = 0x4, scoped, tag = 'scoped memory for tpu_custom_call.1']
    #allocation14 [shape = 'u8[32768]{0}', space=vmem, size = 0x8000, scoped, tag = 'input window, operand 6, single buffered']
    #allocation15 [shape = 'u8[32768]{0}', space=vmem, size = 0x8000, scoped, tag = 'input window, operand 8, single buffered']
    #allocation16 [shape = 's32[1]{0}', space=sflag, size = 0x4, scoped, tag = 'scoped memory for tpu_custom_call.1']
    #allocation17 [shape = 'u8[8192]{0}', space=vmem, size = 0x2000, scoped, tag = 'output window, operand 0, single buffered']
    %15 = vsyncpa [#allocation7], 0
    %16 = vsyncpa [#allocation10], 0
    %17 = vsyncpa [#allocation13], 0
    %18 = vsyncpa [#allocation16], 0
    %19 = vsyncpa [#allocation8], 0
    // Predicated region
    $region2: #{tpu_custom_call.1} parent=1 // pred_check
      _
    $region3: #{tpu_custom_call.1} parent=1 // pred_check_branch
      %21 = sbr.rel (0) target = $region5
    $region4: #{tpu_custom_call.1} parent=1 // pred_region
      %s23 = ssub.s32 1024, 1024
      %24 = vsyncadd [#allocation7], %s23
      %s25 = sshll.u32 [#allocation6], 4
      %s26 = int_to_ptr.vmem [resolvable:$true] %s25
      %31 = dma.hbm_to_vmem [thread:$0]  %s0, 1024, %s26, [#allocation7], 64, 64, 4
    $region5: #{tpu_custom_call.1} parent=1 // pred_fallthru
      _
    // Predicated region
    $region6: #{tpu_custom_call.1} parent=1 // pred_check
      _
    $region7: #{tpu_custom_call.1} parent=1 // pred_check_branch
      %33 = sbr.rel (0) target = $region9
    $region8: #{tpu_custom_call.1} parent=1 // pred_region
      %s35 = ssub.s32 512, 512
      %36 = vsyncadd [#allocation10], %s35
      %s37 = sshll.u32 [#allocation9], 4
      %s38 = int_to_ptr.vmem [resolvable:$true] %s37
      %43 = dma.hbm_to_vmem [thread:$0]  %s1, 512, %s38, [#allocation10], 256, 256, 16
    $region9: #{tpu_custom_call.1} parent=1 // pred_fallthru
      _
    // Predicated region
    $region10: #{tpu_custom_call.1} parent=1 // pred_check
      _
    $region11: #{tpu_custom_call.1} parent=1 // pred_check_branch
      %45 = sbr.rel (0) target = $region13
    $region12: #{tpu_custom_call.1} parent=1 // pred_region
      %s47 = ssub.s32 4096, 4096
      %48 = vsyncadd [#allocation10], %s47
      %s49 = sshll.u32 [#allocation11], 4
      %s50 = int_to_ptr.vmem [resolvable:$true] %s49
      %55 = dma.hbm_to_vmem [thread:$0]  %s2, 4096, %s50, [#allocation10], 256, 256, 16
    $region13: #{tpu_custom_call.1} parent=1 // pred_fallthru
      _
    // Predicated region
    $region14: #{tpu_custom_call.1} parent=1 // pred_check
      _
    $region15: #{tpu_custom_call.1} parent=1 // pred_check_branch
      %57 = sbr.rel (0) target = $region17
    $region16: #{tpu_custom_call.1} parent=1 // pred_region
      _
    $region17: #{tpu_custom_call.1} parent=1 // pred_fallthru
      _
    // Predicated region
    $region18: #{tpu_custom_call.1} parent=1 // pred_check
      _
    $region19: #{tpu_custom_call.1} parent=1 // pred_check_branch
      %59 = sbr.rel (0) target = $region21
    $region20: #{tpu_custom_call.1} parent=1 // pred_region
      %s61 = ssub.s32 1024, 1024
      %62 = vsyncadd [#allocation13], %s61
      %s63 = sshll.u32 [#allocation12], 4
      %s64 = int_to_ptr.vmem [resolvable:$true] %s63
      %69 = dma.hbm_to_vmem [thread:$0]  %s4, 1024, %s64, [#allocation13], 64, 64, 4
    $region21: #{tpu_custom_call.1} parent=1 // pred_fallthru
      _
    // Predicated region
    $region22: #{tpu_custom_call.1} parent=1 // pred_check
      _
    $region23: #{tpu_custom_call.1} parent=1 // pred_check_branch
      %71 = sbr.rel (0) target = $region25
    $region24: #{tpu_custom_call.1} parent=1 // pred_region
      _
    $region25: #{tpu_custom_call.1} parent=1 // pred_fallthru
      _
    // Predicated region
    $region26: #{tpu_custom_call.1} parent=1 // pred_check
      _
    $region27: #{tpu_custom_call.1} parent=1 // pred_check_branch
      %73 = sbr.rel (0) target = $region29
    $region28: #{tpu_custom_call.1} parent=1 // pred_region
      %s75 = ssub.s32 1024, 1024
      %76 = vsyncadd [#allocation13], %s75
      %s77 = sshll.u32 [#allocation14], 4
      %s78 = int_to_ptr.vmem [resolvable:$true] %s77
      %83 = dma.hbm_to_vmem [thread:$0]  %s6, 1024, %s78, [#allocation13], 64, 64, 4
    $region29: #{tpu_custom_call.1} parent=1 // pred_fallthru
      _
    // Predicated region
    $region30: #{tpu_custom_call.1} parent=1 // pred_check
      _
    $region31: #{tpu_custom_call.1} parent=1 // pred_check_branch
      %85 = sbr.rel (0) target = $region33
    $region32: #{tpu_custom_call.1} parent=1 // pred_region
      _
    $region33: #{tpu_custom_call.1} parent=1 // pred_fallthru
      _
    // Predicated region
    $region34: #{tpu_custom_call.1} parent=1 // pred_check
      _
    $region35: #{tpu_custom_call.1} parent=1 // pred_check_branch
      %87 = sbr.rel (0) target = $region37
    $region36: #{tpu_custom_call.1} parent=1 // pred_region
      %s89 = ssub.s32 1024, 1024
      %90 = vsyncadd [#allocation16], %s89
      %s91 = sshll.u32 [#allocation15], 4
      %s92 = int_to_ptr.vmem [resolvable:$true] %s91
      %97 = dma.hbm_to_vmem [thread:$0]  %s8, 1024, %s92, [#allocation16], 64, 64, 4
    $region37: #{tpu_custom_call.1} parent=1 // pred_fallthru
      _
    // Predicated region
    $region38: #{tpu_custom_call.1} parent=1 // pred_check
      _
    $region39: #{tpu_custom_call.1} parent=1 // pred_check_branch
      %99 = sbr.rel (0) target = $region41
    $region40: #{tpu_custom_call.1} parent=1 // pred_region
      _
    $region41: #{tpu_custom_call.1} parent=1 // pred_fallthru
      _
    // Predicated region
    $region42: #{tpu_custom_call.1} parent=1 // pred_check
      _
    $region43: #{tpu_custom_call.1} parent=1 // pred_check_branch
      %101 = sbr.rel (0) target = $region45
    $region44: #{tpu_custom_call.1} parent=1 // pred_region
      %102 = dma.done [#allocation7], 1024
    $region45: #{tpu_custom_call.1} parent=1 // pred_fallthru
      _
    // Predicated region
    $region46: #{tpu_custom_call.1} parent=1 // pred_check
      _
    $region47: #{tpu_custom_call.1} parent=1 // pred_check_branch
      %104 = sbr.rel (0) target = $region49
    $region48: #{tpu_custom_call.1} parent=1 // pred_region
      %105 = dma.done [#allocation10], 512
    $region49: #{tpu_custom_call.1} parent=1 // pred_fallthru
      _
    // Predicated region
    $region50: #{tpu_custom_call.1} parent=1 // pred_check
      _
    $region51: #{tpu_custom_call.1} parent=1 // pred_check_branch
      %107 = sbr.rel (0) target = $region53
    $region52: #{tpu_custom_call.1} parent=1 // pred_region
      %108 = dma.done [#allocation10], 4096
    $region53: #{tpu_custom_call.1} parent=1 // pred_fallthru
      _
    // Predicated region
    $region54: #{tpu_custom_call.1} parent=1 // pred_check
      _
    $region55: #{tpu_custom_call.1} parent=1 // pred_check_branch
      %110 = sbr.rel (0) target = $region57
    $region56: #{tpu_custom_call.1} parent=1 // pred_region
      %111 = dma.done [#allocation13], 1024
    $region57: #{tpu_custom_call.1} parent=1 // pred_fallthru
      _
    // Predicated region
    $region58: #{tpu_custom_call.1} parent=1 // pred_check
      _
    $region59: #{tpu_custom_call.1} parent=1 // pred_check_branch
      %113 = sbr.rel (0) target = $region61
    $region60: #{tpu_custom_call.1} parent=1 // pred_region
      %114 = dma.done [#allocation13], 1024
    $region61: #{tpu_custom_call.1} parent=1 // pred_fallthru
      _
    // Predicated region
    $region62: #{tpu_custom_call.1} parent=1 // pred_check
      _
    $region63: #{tpu_custom_call.1} parent=1 // pred_check_branch
      %116 = sbr.rel (0) target = $region65
    $region64: #{tpu_custom_call.1} parent=1 // pred_region
      %117 = dma.done [#allocation16], 1024
    $region65: #{tpu_custom_call.1} parent=1 // pred_fallthru
      _
    %p119 = scmp.eq.s32.totalorder 0, 0
    // Predicated region
    $region66: #{tpu_custom_call.1} parent=1 // pred_check
      %p120 = pneg %p119
    $region67: #{tpu_custom_call.1} parent=1 // pred_check_branch
      %122 = sbr.rel (%p120) target = $region69
    $region68: #{tpu_custom_call.1} parent=1 // pred_region
      %123 = vst [vmem:[#allocation3] sm:$0xff] 0
      %124 = vst [vmem:[#allocation4] sm:$0xff] 0.0
      %125 = vst [vmem:[#allocation4 + $0x8] sm:$0xff] 0.0
      %126 = vst [vmem:[#allocation5] sm:$0xff] 0.0
      %127 = vst [vmem:[#allocation5 + $0x8] sm:$0xff] 0.0
    $region69: #{tpu_custom_call.1} parent=1 // pred_fallthru
      _
    %v128 = vld [vmem:[#allocation6] sm:$0xf]
    %v129 = vld [vmem:[#allocation6 + $0x4] sm:$0xf]
    %v130 = vld [vmem:[#allocation6 + $0x8] sm:$0xf]
    %v131 = vld [vmem:[#allocation6 + $0xc] sm:$0xf]
    %v132 = vld [vmem:[#allocation6 + $0x10] sm:$0xf]
    %v133 = vld [vmem:[#allocation6 + $0x14] sm:$0xf]
    %v134 = vld [vmem:[#allocation6 + $0x18] sm:$0xf]
    %v135 = vld [vmem:[#allocation6 + $0x1c] sm:$0xf]
    %v136 = vld [vmem:[#allocation6 + $0x20] sm:$0xf]
    %v137 = vld [vmem:[#allocation6 + $0x24] sm:$0xf]
    %v138 = vld [vmem:[#allocation6 + $0x28] sm:$0xf]
    %v139 = vld [vmem:[#allocation6 + $0x2c] sm:$0xf]
    %v140 = vld [vmem:[#allocation6 + $0x30] sm:$0xf]
    %v141 = vld [vmem:[#allocation6 + $0x34] sm:$0xf]
    %v142 = vld [vmem:[#allocation6 + $0x38] sm:$0xf]
    %v143 = vld [vmem:[#allocation6 + $0x3c] sm:$0xf]
    %v144 = vld [vmem:[#allocation9] sm:$0xff]
    %v145 = vld [vmem:[#allocation9 + $0x8] sm:$0xff]
    %v146 = vld [vmem:[#allocation9 + $0x10] sm:$0xff]
    %v147 = vld [vmem:[#allocation9 + $0x18] sm:$0xff]
    %v148 = vld [vmem:[%s3] sm:$0xf]
    %v150 = vlaneseq
    %v151 = vshrl.u32 %v150, 7
    %v152 = vsub.s32 0, %v151
    %v153 = vrot.slane %v148, %v152
    %v154 = vlaneseq
    %v155 = vshrl.u32 %v154, 7
    %v156 = vsub.s32 1, %v155
    %v157 = vrot.slane %v148, %v156
    %v158 = vlaneseq
    %v159 = vshrl.u32 %v158, 7
    %v160 = vsub.s32 2, %v159
    %v161 = vrot.slane %v148, %v160
    %v162 = vlaneseq
    %v163 = vshrl.u32 %v162, 7
    %v164 = vsub.s32 3, %v163
    %v165 = vrot.slane %v148, %v164
    %v186 = vunpack.c.l.b16 %v128
    %v187 = vunpack.c.l.b16 %v129
    %v188 = vunpack.c.l.b16 %v130
    %v189 = vunpack.c.l.b16 %v131
    %v190 = vunpack.c.l.b16 %v132
    %v191 = vunpack.c.l.b16 %v133
    %v192 = vunpack.c.l.b16 %v134
    %v193 = vunpack.c.l.b16 %v135
    %v194 = vunpack.c.l.b16 %v136
    %v195 = vunpack.c.l.b16 %v137
    %v196 = vunpack.c.l.b16 %v138
    %v197 = vunpack.c.l.b16 %v139
    %v198 = vunpack.c.l.b16 %v140
    %v199 = vunpack.c.l.b16 %v141
    %v200 = vunpack.c.l.b16 %v142
    %v201 = vunpack.c.l.b16 %v143
    %v202 = vpack.c.b16 %v187, %v186
    %v203 = vpack.c.b16 %v189, %v188
    %v204 = vpack.c.b16 %v191, %v190
    %v205 = vpack.c.b16 %v193, %v192
    %v206 = vpack.c.b16 %v195, %v194
    %v207 = vpack.c.b16 %v197, %v196
    %v208 = vpack.c.b16 %v199, %v198
    %v209 = vpack.c.b16 %v201, %v200
    %v214 = vunpack.c.l.b16 %v144
    %v215 = vunpack.c.h.b16 %v144
    %v216 = vunpack.c.l.b16 %v145
    %v217 = vunpack.c.h.b16 %v145
    %v218 = vunpack.c.l.b16 %v146
    %v219 = vunpack.c.h.b16 %v146
    %v220 = vunpack.c.l.b16 %v147
    %v221 = vunpack.c.h.b16 %v147
    %v222 = vpack.c.b16 %v218, %v214
    %v223 = vpack.c.b16 %v219, %v215
    %v224 = vpack.c.b16 %v220, %v216
    %v225 = vpack.c.b16 %v221, %v217
    %vm230 = vcmask 130048
    %v232 = vsel %vm230, %v202, 0
    %v235 = vsel %vm230, %v203, 0
    %v238 = vsel %vm230, %v204, 0
    %v241 = vsel %vm230, %v205, 0
    %v244 = vsel %vm230, %v206, 0
    %v247 = vsel %vm230, %v207, 0
    %v250 = vsel %vm230, %v208, 0
    %v253 = vsel %vm230, %v209, 0
    %255 = vmatprep.subr.bf16.mxu0 %v223
    %256 = vmatpush1.bf16.msra.mxu0 %v222
    %257 = vmatprep.subr.bf16.mxu0 0
    %258 = vmatpush1.bf16.msra.mxu0 0
    %259 = vmatprep.subr.bf16.mxu0 0
    %260 = vmatpush1.bf16.msra.mxu0 0
    %261 = vmatprep.subr.bf16.mxu0 0
    %262 = vmatpush1.bf16.msra.mxu0 0
    %263 = vmatprep.subr.bf16.mxu0 0
    %264 = vmatpush1.bf16.msra.mxu0 0
    %265 = vmatprep.subr.bf16.mxu0 0
    %266 = vmatpush1.bf16.msra.mxu0 0
    %267 = vmatprep.subr.bf16.mxu0 0
    %268 = vmatpush1.bf16.msra.mxu0 0
    %269 = vmatprep.subr.bf16.mxu0 0
    %270 = vmatpush1.bf16.msra.mxu0 0
    %271 = vmatprep.subr.bf16.mxu0 0
    %272 = vmatpush1.bf16.msra.mxu0 0
    %273 = vmatprep.subr.bf16.mxu0 0
    %274 = vmatpush1.bf16.msra.mxu0 0
    %275 = vmatprep.subr.bf16.mxu0 0
    %276 = vmatpush1.bf16.msra.mxu0 0
    %277 = vmatprep.subr.bf16.mxu0 0
    %278 = vmatpush1.bf16.msra.mxu0 0
    %279 = vmatprep.subr.bf16.mxu0 0
    %280 = vmatpush1.bf16.msra.mxu0 0
    %281 = vmatprep.subr.bf16.mxu0 0
    %282 = vmatpush1.bf16.msra.mxu0 0
    %283 = vmatprep.subr.bf16.mxu0 0
    %284 = vmatpush1.bf16.msra.mxu0 0
    %285 = vmatprep.subr.bf16.mxu0 0
    %286 = vmatpush1.bf16.msra.mxu0 0
    %287 = vmatprep.mubr.bf16.mxu0 0
    %288 = vmatmul.mubr.bf16.gmra.mrb[0].mxu0 %v232
    %v289 = vpop.f32.mrb[0].mxu0
    %v290 = vadd.f32 %v153, %v289
    %v291 = vpop.f32.mrb[0].mxu0
    %v292 = vadd.f32 %v157, %v291
    %v293 = vpop.f32.mrb[0].mxu0
    %v294 = vadd.f32 %v153, %v293
    %v295 = vpop.f32.mrb[0].mxu0
    %v296 = vadd.f32 %v157, %v295
    %297 = vmatprep.mubr.bf16.mxu0 0
    %298 = vmatmul.mubr.bf16.gmra.mrb[0].mxu0 %v235
    %v299 = vpop.f32.mrb[0].mxu0
    %v300 = vadd.f32 %v153, %v299
    %v301 = vpop.f32.mrb[0].mxu0
    %v302 = vadd.f32 %v157, %v301
    %v303 = vpop.f32.mrb[0].mxu0
    %v304 = vadd.f32 %v153, %v303
    %v305 = vpop.f32.mrb[0].mxu0
    %v306 = vadd.f32 %v157, %v305
    %307 = vmatprep.mubr.bf16.mxu0 0
    %308 = vmatmul.mubr.bf16.gmra.mrb[0].mxu0 %v238
    %v309 = vpop.f32.mrb[0].mxu0
    %v310 = vadd.f32 %v153, %v309
    %v311 = vpop.f32.mrb[0].mxu0
    %v312 = vadd.f32 %v157, %v311
    %v313 = vpop.f32.mrb[0].mxu0
    %v314 = vadd.f32 %v153, %v313
    %v315 = vpop.f32.mrb[0].mxu0
    %v316 = vadd.f32 %v157, %v315
    %317 = vmatprep.mubr.bf16.mxu0 0
    %318 = vmatmul.mubr.bf16.gmra.mrb[0].mxu0 %v241
    %v319 = vpop.f32.mrb[0].mxu0
    %v320 = vadd.f32 %v153, %v319
    %v321 = vpop.f32.mrb[0].mxu0
    %v322 = vadd.f32 %v157, %v321
    %v323 = vpop.f32.mrb[0].mxu0
    %v324 = vadd.f32 %v153, %v323
    %v325 = vpop.f32.mrb[0].mxu0
    %v326 = vadd.f32 %v157, %v325
    %327 = vmatprep.mubr.bf16.mxu0 0
    %328 = vmatmul.mubr.bf16.gmra.mrb[0].mxu0 %v244
    %v329 = vpop.f32.mrb[0].mxu0
    %v330 = vadd.f32 %v153, %v329
    %v331 = vpop.f32.mrb[0].mxu0
    %v332 = vadd.f32 %v157, %v331
    %v333 = vpop.f32.mrb[0].mxu0
    %v334 = vadd.f32 %v153, %v333
    %v335 = vpop.f32.mrb[0].mxu0
    %v336 = vadd.f32 %v157, %v335
    %337 = vmatprep.mubr.bf16.mxu0 0
    %338 = vmatmul.mubr.bf16.gmra.mrb[0].mxu0 %v247
    %v339 = vpop.f32.mrb[0].mxu0
    %v340 = vadd.f32 %v153, %v339
    %v341 = vpop.f32.mrb[0].mxu0
    %v342 = vadd.f32 %v157, %v341
    %v343 = vpop.f32.mrb[0].mxu0
    %v344 = vadd.f32 %v153, %v343
    %v345 = vpop.f32.mrb[0].mxu0
    %v346 = vadd.f32 %v157, %v345
    %347 = vmatprep.mubr.bf16.mxu0 0
    %348 = vmatmul.mubr.bf16.gmra.mrb[0].mxu0 %v250
    %v349 = vpop.f32.mrb[0].mxu0
    %v350 = vadd.f32 %v153, %v349
    %v351 = vpop.f32.mrb[0].mxu0
    %v352 = vadd.f32 %v157, %v351
    %v353 = vpop.f32.mrb[0].mxu0
    %v354 = vadd.f32 %v153, %v353
    %v355 = vpop.f32.mrb[0].mxu0
    %v356 = vadd.f32 %v157, %v355
    %357 = vmatprep.mubr.bf16.mxu0 0
    %358 = vmatmul.mubr.bf16.gmra.mrb[0].mxu0 %v253
    %v359 = vpop.f32.mrb[0].mxu0
    %v360 = vadd.f32 %v153, %v359
    %v361 = vpop.f32.mrb[0].mxu0
    %v362 = vadd.f32 %v157, %v361
    %v363 = vpop.f32.mrb[0].mxu0
    %v364 = vadd.f32 %v153, %v363
    %v365 = vpop.f32.mrb[0].mxu0
    %v366 = vadd.f32 %v157, %v365
    %367 = vdwg.mxu0
    %368 = vmatprep.subr.bf16.mxu0 %v225
    %369 = vmatpush1.bf16.msra.mxu0 %v224
    %370 = vmatprep.subr.bf16.mxu0 0
    %371 = vmatpush1.bf16.msra.mxu0 0
    %372 = vmatprep.subr.bf16.mxu0 0
    %373 = vmatpush1.bf16.msra.mxu0 0
    %374 = vmatprep.subr.bf16.mxu0 0
    %375 = vmatpush1.bf16.msra.mxu0 0
    %376 = vmatprep.subr.bf16.mxu0 0
    %377 = vmatpush1.bf16.msra.mxu0 0
    %378 = vmatprep.subr.bf16.mxu0 0
    %379 = vmatpush1.bf16.msra.mxu0 0
    %380 = vmatprep.subr.bf16.mxu0 0
    %381 = vmatpush1.bf16.msra.mxu0 0
    %382 = vmatprep.subr.bf16.mxu0 0
    %383 = vmatpush1.bf16.msra.mxu0 0
    %384 = vmatprep.subr.bf16.mxu0 0
    %385 = vmatpush1.bf16.msra.mxu0 0
    %386 = vmatprep.subr.bf16.mxu0 0
    %387 = vmatpush1.bf16.msra.mxu0 0
    %388 = vmatprep.subr.bf16.mxu0 0
    %389 = vmatpush1.bf16.msra.mxu0 0
    %390 = vmatprep.subr.bf16.mxu0 0
    %391 = vmatpush1.bf16.msra.mxu0 0
    %392 = vmatprep.subr.bf16.mxu0 0
    %393 = vmatpush1.bf16.msra.mxu0 0
    %394 = vmatprep.subr.bf16.mxu0 0
    %395 = vmatpush1.bf16.msra.mxu0 0
    %396 = vmatprep.subr.bf16.mxu0 0
    %397 = vmatpush1.bf16.msra.mxu0 0
    %398 = vmatprep.subr.bf16.mxu0 0
    %399 = vmatpush1.bf16.msra.mxu0 0
    %400 = vmatprep.mubr.bf16.mxu0 0
    %401 = vmatmul.mubr.bf16.gmra.mrb[0].mxu0 %v232
    %v402 = vpop.f32.mrb[0].mxu0
    %v403 = vadd.f32 %v161, %v402
    %v404 = vpop.f32.mrb[0].mxu0
    %v405 = vadd.f32 %v165, %v404
    %v406 = vpop.f32.mrb[0].mxu0
    %v407 = vadd.f32 %v161, %v406
    %v408 = vpop.f32.mrb[0].mxu0
    %v409 = vadd.f32 %v165, %v408
    %410 = vmatprep.mubr.bf16.mxu0 0
    %411 = vmatmul.mubr.bf16.gmra.mrb[0].mxu0 %v235
    %v412 = vpop.f32.mrb[0].mxu0
    %v413 = vadd.f32 %v161, %v412
    %v414 = vpop.f32.mrb[0].mxu0
    %v415 = vadd.f32 %v165, %v414
    %v416 = vpop.f32.mrb[0].mxu0
    %v417 = vadd.f32 %v161, %v416
    %v418 = vpop.f32.mrb[0].mxu0
    %v419 = vadd.f32 %v165, %v418
    %420 = vmatprep.mubr.bf16.mxu0 0
    %421 = vmatmul.mubr.bf16.gmra.mrb[0].mxu0 %v238
    %v422 = vpop.f32.mrb[0].mxu0
    %v423 = vadd.f32 %v161, %v422
    %v424 = vpop.f32.mrb[0].mxu0
    %v425 = vadd.f32 %v165, %v424
    %v426 = vpop.f32.mrb[0].mxu0
    %v427 = vadd.f32 %v161, %v426
    %v428 = vpop.f32.mrb[0].mxu0
    %v429 = vadd.f32 %v165, %v428
    %430 = vmatprep.mubr.bf16.mxu0 0
    %431 = vmatmul.mubr.bf16.gmra.mrb[0].mxu0 %v241
    %v432 = vpop.f32.mrb[0].mxu0
    %v433 = vadd.f32 %v161, %v432
    %v434 = vpop.f32.mrb[0].mxu0
    %v435 = vadd.f32 %v165, %v434
    %v436 = vpop.f32.mrb[0].mxu0
    %v437 = vadd.f32 %v161, %v436
    %v438 = vpop.f32.mrb[0].mxu0
    %v439 = vadd.f32 %v165, %v438
    %440 = vmatprep.mubr.bf16.mxu0 0
    %441 = vmatmul.mubr.bf16.gmra.mrb[0].mxu0 %v244
    %v442 = vpop.f32.mrb[0].mxu0
    %v443 = vadd.f32 %v161, %v442
    %v444 = vpop.f32.mrb[0].mxu0
    %v445 = vadd.f32 %v165, %v444
    %v446 = vpop.f32.mrb[0].mxu0
    %v447 = vadd.f32 %v161, %v446
    %v448 = vpop.f32.mrb[0].mxu0
    %v449 = vadd.f32 %v165, %v448
    %450 = vmatprep.mubr.bf16.mxu0 0
    %451 = vmatmul.mubr.bf16.gmra.mrb[0].mxu0 %v247
    %v452 = vpop.f32.mrb[0].mxu0
    %v453 = vadd.f32 %v161, %v452
    %v454 = vpop.f32.mrb[0].mxu0
    %v455 = vadd.f32 %v165, %v454
    %v456 = vpop.f32.mrb[0].mxu0
    %v457 = vadd.f32 %v161, %v456
    %v458 = vpop.f32.mrb[0].mxu0
    %v459 = vadd.f32 %v165, %v458
    %460 = vmatprep.mubr.bf16.mxu0 0
    %461 = vmatmul.mubr.bf16.gmra.mrb[0].mxu0 %v250
    %v462 = vpop.f32.mrb[0].mxu0
    %v463 = vadd.f32 %v161, %v462
    %v464 = vpop.f32.mrb[0].mxu0
    %v465 = vadd.f32 %v165, %v464
    %v466 = vpop.f32.mrb[0].mxu0
    %v467 = vadd.f32 %v161, %v466
    %v468 = vpop.f32.mrb[0].mxu0
    %v469 = vadd.f32 %v165, %v468
    %470 = vmatprep.mubr.bf16.mxu0 0
    %471 = vmatmul.mubr.bf16.gmra.mrb[0].mxu0 %v253
    %v472 = vpop.f32.mrb[0].mxu0
    %v473 = vadd.f32 %v161, %v472
    %v474 = vpop.f32.mrb[0].mxu0
    %v475 = vadd.f32 %v165, %v474
    %v476 = vpop.f32.mrb[0].mxu0
    %v477 = vadd.f32 %v161, %v476
    %v478 = vpop.f32.mrb[0].mxu0
    %v479 = vadd.f32 %v165, %v478
    %480 = vdwg.mxu0
    %v481 = vpack.c.bf16 %v294, %v290
    %v482 = vpack.c.bf16 %v296, %v292
    %v483 = vpack.c.bf16 %v407, %v403
    %v484 = vpack.c.bf16 %v409, %v405
    %v485 = vpack.c.bf16 %v304, %v300
    %v486 = vpack.c.bf16 %v306, %v302
    %v487 = vpack.c.bf16 %v417, %v413
    %v488 = vpack.c.bf16 %v419, %v415
    %v489 = vpack.c.bf16 %v314, %v310
    %v490 = vpack.c.bf16 %v316, %v312
    %v491 = vpack.c.bf16 %v427, %v423
    %v492 = vpack.c.bf16 %v429, %v425
    %v493 = vpack.c.bf16 %v324, %v320
    %v494 = vpack.c.bf16 %v326, %v322
    %v495 = vpack.c.bf16 %v437, %v433
    %v496 = vpack.c.bf16 %v439, %v435
    %v497 = vpack.c.bf16 %v334, %v330
    %v498 = vpack.c.bf16 %v336, %v332
    %v499 = vpack.c.bf16 %v447, %v443
    %v500 = vpack.c.bf16 %v449, %v445
    %v501 = vpack.c.bf16 %v344, %v340
    %v502 = vpack.c.bf16 %v346, %v342
    %v503 = vpack.c.bf16 %v457, %v453
    %v504 = vpack.c.bf16 %v459, %v455
    %v505 = vpack.c.bf16 %v354, %v350
    %v506 = vpack.c.bf16 %v356, %v352
    %v507 = vpack.c.bf16 %v467, %v463
    %v508 = vpack.c.bf16 %v469, %v465
    %v509 = vpack.c.bf16 %v364, %v360
    %v510 = vpack.c.bf16 %v366, %v362
    %v511 = vpack.c.bf16 %v477, %v473
    %v512 = vpack.c.bf16 %v479, %v475
    %513 = vst [vmem:[#allocation2] sm:$0xff] %v481
    %514 = vst [vmem:[#allocation2 + $0x8] sm:$0xff] %v482
    %515 = vst [vmem:[#allocation2 + $0x10] sm:$0xff] %v483
    %516 = vst [vmem:[#allocation2 + $0x18] sm:$0xff] %v484
    %517 = vst [vmem:[#allocation2 + $0x20] sm:$0xff] %v485
    %518 = vst [vmem:[#allocation2 + $0x28] sm:$0xff] %v486
    %519 = vst [vmem:[#allocation2 + $0x30] sm:$0xff] %v487
    %520 = vst [vmem:[#allocation2 + $0x38] sm:$0xff] %v488
    %521 = vst [vmem:[#allocation2 + $0x40] sm:$0xff] %v489
    %522 = vst [vmem:[#allocation2 + $0x48] sm:$0xff] %v490
    %523 = vst [vmem:[#allocation2 + $0x50] sm:$0xff] %v491
    %524 = vst [vmem:[#allocation2 + $0x58] sm:$0xff] %v492
    %525 = vst [vmem:[#allocation2 + $0x60] sm:$0xff] %v493
    %526 = vst [vmem:[#allocation2 + $0x68] sm:$0xff] %v494
    %527 = vst [vmem:[#allocation2 + $0x70] sm:$0xff] %v495
    %528 = vst [vmem:[#allocation2 + $0x78] sm:$0xff] %v496
    %529 = vst [vmem:[#allocation2 + $0x80] sm:$0xff] %v497
    %530 = vst [vmem:[#allocation2 + $0x88] sm:$0xff] %v498
    %531 = vst [vmem:[#allocation2 + $0x90] sm:$0xff] %v499
    %532 = vst [vmem:[#allocation2 + $0x98] sm:$0xff] %v500
    %533 = vst [vmem:[#allocation2 + $0xa0] sm:$0xff] %v501
    %534 = vst [vmem:[#allocation2 + $0xa8] sm:$0xff] %v502
    %535 = vst [vmem:[#allocation2 + $0xb0] sm:$0xff] %v503
    %536 = vst [vmem:[#allocation2 + $0xb8] sm:$0xff] %v504
    %537 = vst [vmem:[#allocation2 + $0xc0] sm:$0xff] %v505
    %538 = vst [vmem:[#allocation2 + $0xc8] sm:$0xff] %v506
    %539 = vst [vmem:[#allocation2 + $0xd0] sm:$0xff] %v507
    %540 = vst [vmem:[#allocation2 + $0xd8] sm:$0xff] %v508
    %541 = vst [vmem:[#allocation2 + $0xe0] sm:$0xff] %v509
    %542 = vst [vmem:[#allocation2 + $0xe8] sm:$0xff] %v510
    %543 = vst [vmem:[#allocation2 + $0xf0] sm:$0xff] %v511
    %544 = vst [vmem:[#allocation2 + $0xf8] sm:$0xff] %v512
    %v545 = vld [vmem:[#allocation3] sm:$0xff]
    %v546 = vld [vmem:[#allocation4] sm:$0xff]
    %v547 = vld [vmem:[#allocation4 + $0x8] sm:$0xff]
    %v548 = vld [vmem:[#allocation5] sm:$0xff]
    %v549 = vld [vmem:[#allocation5 + $0x8] sm:$0xff]
    %v550 = vld [vmem:[#allocation2] sm:$0xff]
    %v551 = vunpack.c.l.bf16 %v550
    %v552 = vunpack.c.h.bf16 %v550
    %v553 = vld [vmem:[#allocation11] sm:$0xf]
    %v554 = vld [vmem:[#allocation11 + $0x10] sm:$0xf]
    %v555 = vld [vmem:[#allocation11 + $0x20] sm:$0xf]
    %v556 = vld [vmem:[#allocation11 + $0x30] sm:$0xf]
    %v557 = vld [vmem:[#allocation11 + $0x40] sm:$0xf]
    %v558 = vld [vmem:[#allocation11 + $0x50] sm:$0xf]
    %v559 = vld [vmem:[#allocation11 + $0x60] sm:$0xf]
    %v560 = vld [vmem:[#allocation11 + $0x70] sm:$0xf]
    %v561 = vld [vmem:[#allocation11 + $0x80] sm:$0xf]
    %v562 = vld [vmem:[#allocation11 + $0x90] sm:$0xf]
    %v563 = vld [vmem:[#allocation11 + $0xa0] sm:$0xf]
    %v564 = vld [vmem:[#allocation11 + $0xb0] sm:$0xf]
    %v565 = vld [vmem:[#allocation11 + $0xc0] sm:$0xf]
    %v566 = vld [vmem:[#allocation11 + $0xd0] sm:$0xf]
    %v567 = vld [vmem:[#allocation11 + $0xe0] sm:$0xf]
    %v568 = vld [vmem:[#allocation11 + $0xf0] sm:$0xf]
    %v585 = vunpack.c.l.b16 %v553
    %v586 = vunpack.c.l.b16 %v554
    %v587 = vunpack.c.l.b16 %v555
    %v588 = vunpack.c.l.b16 %v556
    %v589 = vunpack.c.l.b16 %v557
    %v590 = vunpack.c.l.b16 %v558
    %v591 = vunpack.c.l.b16 %v559
    %v592 = vunpack.c.l.b16 %v560
    %v593 = vunpack.c.l.b16 %v561
    %v594 = vunpack.c.l.b16 %v562
    %v595 = vunpack.c.l.b16 %v563
    %v596 = vunpack.c.l.b16 %v564
    %v597 = vunpack.c.l.b16 %v565
    %v598 = vunpack.c.l.b16 %v566
    %v599 = vunpack.c.l.b16 %v567
    %v600 = vunpack.c.l.b16 %v568
    %v601 = vpack.c.b16 %v586, %v585
    %v602 = vpack.c.b16 %v588, %v587
    %v603 = vpack.c.b16 %v590, %v589
    %v604 = vpack.c.b16 %v592, %v591
    %v605 = vpack.c.b16 %v594, %v593
    %v606 = vpack.c.b16 %v596, %v595
    %v607 = vpack.c.b16 %v598, %v597
    %v608 = vpack.c.b16 %v600, %v599
    %617 = vmatprep.subr.bf16.mxu0 0
    %618 = vmatpush1.bf16.msra.mxu0 %v601
    %619 = vmatprep.subr.bf16.mxu0 0
    %620 = vmatpush1.bf16.msra.mxu0 %v602
    %621 = vmatprep.subr.bf16.mxu0 0
    %622 = vmatpush1.bf16.msra.mxu0 %v603
    %623 = vmatprep.subr.bf16.mxu0 0
    %624 = vmatpush1.bf16.msra.mxu0 %v604
    %625 = vmatprep.subr.bf16.mxu0 0
    %626 = vmatpush1.bf16.msra.mxu0 %v605
    %627 = vmatprep.subr.bf16.mxu0 0
    %628 = vmatpush1.bf16.msra.mxu0 %v606
    %629 = vmatprep.subr.bf16.mxu0 0
    %630 = vmatpush1.bf16.msra.mxu0 %v607
    %631 = vmatprep.subr.bf16.mxu0 0
    %632 = vmatpush1.bf16.msra.mxu0 %v608
    %633 = vmatprep.subr.bf16.mxu0 0
    %634 = vmatpush1.bf16.msra.mxu0 0
    %635 = vmatprep.subr.bf16.mxu0 0
    %636 = vmatpush1.bf16.msra.mxu0 0
    %637 = vmatprep.subr.bf16.mxu0 0
    %638 = vmatpush1.bf16.msra.mxu0 0
    %639 = vmatprep.subr.bf16.mxu0 0
    %640 = vmatpush1.bf16.msra.mxu0 0
    %641 = vmatprep.subr.bf16.mxu0 0
    %642 = vmatpush1.bf16.msra.mxu0 0
    %643 = vmatprep.subr.bf16.mxu0 0
    %644 = vmatpush1.bf16.msra.mxu0 0
    %645 = vmatprep.subr.bf16.mxu0 0
    %646 = vmatpush1.bf16.msra.mxu0 0
    %647 = vmatprep.subr.bf16.mxu0 0
    %648 = vmatpush1.bf16.msra.mxu0 0
    %649 = vmatprep.mubr.bf16.mxu0 0
    %650 = vmatmul.mubr.bf16.gmra.mrb[0].mxu0 %v545
    %v651 = vpop.f32.mrb[0].mxu0
    %v652 = vadd.f32 0.0, %v651
    %v653 = vpop.f32.mrb[0].mxu0
    %v654 = vpop.f32.mrb[0].mxu0
    %v655 = vadd.f32 0.0, %v654
    %v656 = vpop.f32.mrb[0].mxu0
    %657 = vdwg.mxu0
    %v658 = vadd.f32 %v551, %v652
    %v659 = vadd.f32 %v552, %v655
    %v660 = vmul.f32 %v658, 0.5
    %v661 = vmul.f32 %v659, 0.5
    %v662 = vtanh.pop %v660
    %v663 = vtanh.pop %v661
    %v664 = vmul.f32 %v662, 0.5
    %v665 = vmul.f32 %v663, 0.5
    %v666 = vadd.f32 %v664, 0.5
    %v667 = vadd.f32 %v665, 0.5
    %v668 = vld [vmem:[#allocation2 + $0x10] sm:$0xff]
    %v669 = vunpack.c.l.bf16 %v668
    %v670 = vunpack.c.h.bf16 %v668
    %v671 = vld [vmem:[#allocation11 + $0x8] sm:$0xf]
    %v672 = vld [vmem:[#allocation11 + $0x18] sm:$0xf]
    %v673 = vld [vmem:[#allocation11 + $0x28] sm:$0xf]
    %v674 = vld [vmem:[#allocation11 + $0x38] sm:$0xf]
    %v675 = vld [vmem:[#allocation11 + $0x48] sm:$0xf]
    %v676 = vld [vmem:[#allocation11 + $0x58] sm:$0xf]
    %v677 = vld [vmem:[#allocation11 + $0x68] sm:$0xf]
    %v678 = vld [vmem:[#allocation11 + $0x78] sm:$0xf]
    %v679 = vld [vmem:[#allocation11 + $0x88] sm:$0xf]
    %v680 = vld [vmem:[#allocation11 + $0x98] sm:$0xf]
    %v681 = vld [vmem:[#allocation11 + $0xa8] sm:$0xf]
    %v682 = vld [vmem:[#allocation11 + $0xb8] sm:$0xf]
    %v683 = vld [vmem:[#allocation11 + $0xc8] sm:$0xf]
    %v684 = vld [vmem:[#allocation11 + $0xd8] sm:$0xf]
    %v685 = vld [vmem:[#allocation11 + $0xe8] sm:$0xf]
    %v686 = vld [vmem:[#allocation11 + $0xf8] sm:$0xf]
    %v703 = vunpack.c.l.b16 %v671
    %v704 = vunpack.c.l.b16 %v672
    %v705 = vunpack.c.l.b16 %v673
    %v706 = vunpack.c.l.b16 %v674
    %v707 = vunpack.c.l.b16 %v675
    %v708 = vunpack.c.l.b16 %v676
    %v709 = vunpack.c.l.b16 %v677
    %v710 = vunpack.c.l.b16 %v678
    %v711 = vunpack.c.l.b16 %v679
    %v712 = vunpack.c.l.b16 %v680
    %v713 = vunpack.c.l.b16 %v681
    %v714 = vunpack.c.l.b16 %v682
    %v715 = vunpack.c.l.b16 %v683
    %v716 = vunpack.c.l.b16 %v684
    %v717 = vunpack.c.l.b16 %v685
    %v718 = vunpack.c.l.b16 %v686
    %v719 = vpack.c.b16 %v704, %v703
    %v720 = vpack.c.b16 %v706, %v705
    %v721 = vpack.c.b16 %v708, %v707
    %v722 = vpack.c.b16 %v710, %v709
    %v723 = vpack.c.b16 %v712, %v711
    %v724 = vpack.c.b16 %v714, %v713
    %v725 = vpack.c.b16 %v716, %v715
    %v726 = vpack.c.b16 %v718, %v717
    %735 = vmatprep.subr.bf16.mxu0 0
    %736 = vmatpush1.bf16.msra.mxu0 %v719
    %737 = vmatprep.subr.bf16.mxu0 0
    %738 = vmatpush1.bf16.msra.mxu0 %v720
    %739 = vmatprep.subr.bf16.mxu0 0
    %740 = vmatpush1.bf16.msra.mxu0 %v721
    %741 = vmatprep.subr.bf16.mxu0 0
    %742 = vmatpush1.bf16.msra.mxu0 %v722
    %743 = vmatprep.subr.bf16.mxu0 0
    %744 = vmatpush1.bf16.msra.mxu0 %v723
    %745 = vmatprep.subr.bf16.mxu0 0
    %746 = vmatpush1.bf16.msra.mxu0 %v724
    %747 = vmatprep.subr.bf16.mxu0 0
    %748 = vmatpush1.bf16.msra.mxu0 %v725
    %749 = vmatprep.subr.bf16.mxu0 0
    %750 = vmatpush1.bf16.msra.mxu0 %v726
    %751 = vmatprep.subr.bf16.mxu0 0
    %752 = vmatpush1.bf16.msra.mxu0 0
    %753 = vmatprep.subr.bf16.mxu0 0
    %754 = vmatpush1.bf16.msra.mxu0 0
    %755 = vmatprep.subr.bf16.mxu0 0
    %756 = vmatpush1.bf16.msra.mxu0 0
    %757 = vmatprep.subr.bf16.mxu0 0
    %758 = vmatpush1.bf16.msra.mxu0 0
    %759 = vmatprep.subr.bf16.mxu0 0
    %760 = vmatpush1.bf16.msra.mxu0 0
    %761 = vmatprep.subr.bf16.mxu0 0
    %762 = vmatpush1.bf16.msra.mxu0 0
    %763 = vmatprep.subr.bf16.mxu0 0
    %764 = vmatpush1.bf16.msra.mxu0 0
    %765 = vmatprep.subr.bf16.mxu0 0
    %766 = vmatpush1.bf16.msra.mxu0 0
    %767 = vmatprep.mubr.bf16.mxu0 0
    %768 = vmatmul.mubr.bf16.gmra.mrb[0].mxu0 %v545
    %v769 = vpop.f32.mrb[0].mxu0
    %v770 = vadd.f32 0.0, %v769
    %v771 = vpop.f32.mrb[0].mxu0
    %v772 = vpop.f32.mrb[0].mxu0
    %v773 = vadd.f32 0.0, %v772
    %v774 = vpop.f32.mrb[0].mxu0
    %775 = vdwg.mxu0
    %v776 = vadd.f32 %v669, %v770
    %v777 = vadd.f32 %v670, %v773
    %v778 = vtanh.pop %v776
    %v779 = vtanh.pop %v777
    %v780 = vld [vmem:[#allocation2 + $0x8] sm:$0xff]
    %v781 = vunpack.c.l.bf16 %v780
    %v782 = vunpack.c.h.bf16 %v780
    %v783 = vld [vmem:[#allocation11 + $0x4] sm:$0xf]
    %v784 = vld [vmem:[#allocation11 + $0x14] sm:$0xf]
    %v785 = vld [vmem:[#allocation11 + $0x24] sm:$0xf]
    %v786 = vld [vmem:[#allocation11 + $0x34] sm:$0xf]
    %v787 = vld [vmem:[#allocation11 + $0x44] sm:$0xf]
    %v788 = vld [vmem:[#allocation11 + $0x54] sm:$0xf]
    %v789 = vld [vmem:[#allocation11 + $0x64] sm:$0xf]
    %v790 = vld [vmem:[#allocation11 + $0x74] sm:$0xf]
    %v791 = vld [vmem:[#allocation11 + $0x84] sm:$0xf]
    %v792 = vld [vmem:[#allocation11 + $0x94] sm:$0xf]
    %v793 = vld [vmem:[#allocation11 + $0xa4] sm:$0xf]
    %v794 = vld [vmem:[#allocation11 + $0xb4] sm:$0xf]
    %v795 = vld [vmem:[#allocation11 + $0xc4] sm:$0xf]
    %v796 = vld [vmem:[#allocation11 + $0xd4] sm:$0xf]
    %v797 = vld [vmem:[#allocation11 + $0xe4] sm:$0xf]
    %v798 = vld [vmem:[#allocation11 + $0xf4] sm:$0xf]
    %v815 = vunpack.c.l.b16 %v783
    %v816 = vunpack.c.l.b16 %v784
    %v817 = vunpack.c.l.b16 %v785
    %v818 = vunpack.c.l.b16 %v786
    %v819 = vunpack.c.l.b16 %v787
    %v820 = vunpack.c.l.b16 %v788
    %v821 = vunpack.c.l.b16 %v789
    %v822 = vunpack.c.l.b16 %v790
    %v823 = vunpack.c.l.b16 %v791
    %v824 = vunpack.c.l.b16 %v792
    %v825 = vunpack.c.l.b16 %v793
    %v826 = vunpack.c.l.b16 %v794
    %v827 = vunpack.c.l.b16 %v795
    %v828 = vunpack.c.l.b16 %v796
    %v829 = vunpack.c.l.b16 %v797
    %v830 = vunpack.c.l.b16 %v798
    %v831 = vpack.c.b16 %v816, %v815
    %v832 = vpack.c.b16 %v818, %v817
    %v833 = vpack.c.b16 %v820, %v819
    %v834 = vpack.c.b16 %v822, %v821
    %v835 = vpack.c.b16 %v824, %v823
    %v836 = vpack.c.b16 %v826, %v825
    %v837 = vpack.c.b16 %v828, %v827
    %v838 = vpack.c.b16 %v830, %v829
    %847 = vmatprep.subr.bf16.mxu0 0
    %848 = vmatpush1.bf16.msra.mxu0 %v831
    %849 = vmatprep.subr.bf16.mxu0 0
    %850 = vmatpush1.bf16.msra.mxu0 %v832
    %851 = vmatprep.subr.bf16.mxu0 0
    %852 = vmatpush1.bf16.msra.mxu0 %v833
    %853 = vmatprep.subr.bf16.mxu0 0
    %854 = vmatpush1.bf16.msra.mxu0 %v834
    %855 = vmatprep.subr.bf16.mxu0 0
    %856 = vmatpush1.bf16.msra.mxu0 %v835
    %857 = vmatprep.subr.bf16.mxu0 0
    %858 = vmatpush1.bf16.msra.mxu0 %v836
    %859 = vmatprep.subr.bf16.mxu0 0
    %860 = vmatpush1.bf16.msra.mxu0 %v837
    %861 = vmatprep.subr.bf16.mxu0 0
    %862 = vmatpush1.bf16.msra.mxu0 %v838
    %863 = vmatprep.subr.bf16.mxu0 0
    %864 = vmatpush1.bf16.msra.mxu0 0
    %865 = vmatprep.subr.bf16.mxu0 0
    %866 = vmatpush1.bf16.msra.mxu0 0
    %867 = vmatprep.subr.bf16.mxu0 0
    %868 = vmatpush1.bf16.msra.mxu0 0
    %869 = vmatprep.subr.bf16.mxu0 0
    %870 = vmatpush1.bf16.msra.mxu0 0
    %871 = vmatprep.subr.bf16.mxu0 0
    %872 = vmatpush1.bf16.msra.mxu0 0
    %873 = vmatprep.subr.bf16.mxu0 0
    %874 = vmatpush1.bf16.msra.mxu0 0
    %875 = vmatprep.subr.bf16.mxu0 0
    %876 = vmatpush1.bf16.msra.mxu0 0
    %877 = vmatprep.subr.bf16.mxu0 0
    %878 = vmatpush1.bf16.msra.mxu0 0
    %879 = vmatprep.mubr.bf16.mxu0 0
    %880 = vmatmul.mubr.bf16.gmra.mrb[0].mxu0 %v545
    %v881 = vpop.f32.mrb[0].mxu0
    %v882 = vadd.f32 0.0, %v881
    %v883 = vpop.f32.mrb[0].mxu0
    %v884 = vpop.f32.mrb[0].mxu0
    %v885 = vadd.f32 0.0, %v884
    %v886 = vpop.f32.mrb[0].mxu0
    %887 = vdwg.mxu0
    %v888 = vadd.f32 %v781, %v882
    %v889 = vadd.f32 %v782, %v885
    %v890 = vmul.f32 %v888, 0.5
    %v891 = vmul.f32 %v889, 0.5
    %v892 = vtanh.pop %v890
    %v893 = vtanh.pop %v891
    %v894 = vmul.f32 %v892, 0.5
    %v895 = vmul.f32 %v893, 0.5
    %v896 = vadd.f32 %v894, 0.5
    %v897 = vadd.f32 %v895, 0.5
    %v898 = vmul.f32 %v896, %v546
    %v899 = vmul.f32 %v897, %v547
    %v900 = vmul.f32 %v666, %v778
    %v901 = vmul.f32 %v667, %v779
    %v902 = vadd.f32 %v898, %v900
    %v903 = vadd.f32 %v899, %v901
    %v904 = vld [vmem:[#allocation2 + $0x18] sm:$0xff]
    %v905 = vunpack.c.l.bf16 %v904
    %v906 = vunpack.c.h.bf16 %v904
    %v907 = vld [vmem:[#allocation11 + $0xc] sm:$0xf]
    %v908 = vld [vmem:[#allocation11 + $0x1c] sm:$0xf]
    %v909 = vld [vmem:[#allocation11 + $0x2c] sm:$0xf]
    %v910 = vld [vmem:[#allocation11 + $0x3c] sm:$0xf]
    %v911 = vld [vmem:[#allocation11 + $0x4c] sm:$0xf]
    %v912 = vld [vmem:[#allocation11 + $0x5c] sm:$0xf]
    %v913 = vld [vmem:[#allocation11 + $0x6c] sm:$0xf]
    %v914 = vld [vmem:[#allocation11 + $0x7c] sm:$0xf]
    %v915 = vld [vmem:[#allocation11 + $0x8c] sm:$0xf]
    %v916 = vld [vmem:[#allocation11 + $0x9c] sm:$0xf]
    %v917 = vld [vmem:[#allocation11 + $0xac] sm:$0xf]
    %v918 = vld [vmem:[#allocation11 + $0xbc] sm:$0xf]
    %v919 = vld [vmem:[#allocation11 + $0xcc] sm:$0xf]
    %v920 = vld [vmem:[#allocation11 + $0xdc] sm:$0xf]
    %v921 = vld [vmem:[#allocation11 + $0xec] sm:$0xf]
    %v922 = vld [vmem:[#allocation11 + $0xfc] sm:$0xf]
    %v939 = vunpack.c.l.b16 %v907
    %v940 = vunpack.c.l.b16 %v908
    %v941 = vunpack.c.l.b16 %v909
    %v942 = vunpack.c.l.b16 %v910
    %v943 = vunpack.c.l.b16 %v911
    %v944 = vunpack.c.l.b16 %v912
    %v945 = vunpack.c.l.b16 %v913
    %v946 = vunpack.c.l.b16 %v914
    %v947 = vunpack.c.l.b16 %v915
    %v948 = vunpack.c.l.b16 %v916
    %v949 = vunpack.c.l.b16 %v917
    %v950 = vunpack.c.l.b16 %v918
    %v951 = vunpack.c.l.b16 %v919
    %v952 = vunpack.c.l.b16 %v920
    %v953 = vunpack.c.l.b16 %v921
    %v954 = vunpack.c.l.b16 %v922
    %v955 = vpack.c.b16 %v940, %v939
    %v956 = vpack.c.b16 %v942, %v941
    %v957 = vpack.c.b16 %v944, %v943
    %v958 = vpack.c.b16 %v946, %v945
    %v959 = vpack.c.b16 %v948, %v947
    %v960 = vpack.c.b16 %v950, %v949
    %v961 = vpack.c.b16 %v952, %v951
    %v962 = vpack.c.b16 %v954, %v953
    %971 = vmatprep.subr.bf16.mxu0 0
    %972 = vmatpush1.bf16.msra.mxu0 %v955
    %973 = vmatprep.subr.bf16.mxu0 0
    %974 = vmatpush1.bf16.msra.mxu0 %v956
    %975 = vmatprep.subr.bf16.mxu0 0
    %976 = vmatpush1.bf16.msra.mxu0 %v957
    %977 = vmatprep.subr.bf16.mxu0 0
    %978 = vmatpush1.bf16.msra.mxu0 %v958
    %979 = vmatprep.subr.bf16.mxu0 0
    %980 = vmatpush1.bf16.msra.mxu0 %v959
    %981 = vmatprep.subr.bf16.mxu0 0
    %982 = vmatpush1.bf16.msra.mxu0 %v960
    %983 = vmatprep.subr.bf16.mxu0 0
    %984 = vmatpush1.bf16.msra.mxu0 %v961
    %985 = vmatprep.subr.bf16.mxu0 0
    %986 = vmatpush1.bf16.msra.mxu0 %v962
    %987 = vmatprep.subr.bf16.mxu0 0
    %988 = vmatpush1.bf16.msra.mxu0 0
    %989 = vmatprep.subr.bf16.mxu0 0
    %990 = vmatpush1.bf16.msra.mxu0 0
    %991 = vmatprep.subr.bf16.mxu0 0
    %992 = vmatpush1.bf16.msra.mxu0 0
    %993 = vmatprep.subr.bf16.mxu0 0
    %994 = vmatpush1.bf16.msra.mxu0 0
    %995 = vmatprep.subr.bf16.mxu0 0
    %996 = vmatpush1.bf16.msra.mxu0 0
    %997 = vmatprep.subr.bf16.mxu0 0
    %998 = vmatpush1.bf16.msra.mxu0 0
    %999 = vmatprep.subr.bf16.mxu0 0
    %1000 = vmatpush1.bf16.msra.mxu0 0
    %1001 = vmatprep.subr.bf16.mxu0 0
    %1002 = vmatpush1.bf16.msra.mxu0 0
    %1003 = vmatprep.mubr.bf16.mxu0 0
    %1004 = vmatmul.mubr.bf16.gmra.mrb[0].mxu0 %v545
    %v1005 = vpop.f32.mrb[0].mxu0
    %v1006 = vadd.f32 0.0, %v1005
    %v1007 = vpop.f32.mrb[0].mxu0
    %v1008 = vpop.f32.mrb[0].mxu0
    %v1009 = vadd.f32 0.0, %v1008
    %v1010 = vpop.f32.mrb[0].mxu0
    %1011 = vdwg.mxu0
    %v1012 = vadd.f32 %v905, %v1006
    %v1013 = vadd.f32 %v906, %v1009
    %v1014 = vmul.f32 %v1012, 0.5
    %v1015 = vmul.f32 %v1013, 0.5
    %v1016 = vtanh.pop %v1014
    %v1017 = vtanh.pop %v1015
    %v1018 = vmul.f32 %v1016, 0.5
    %v1019 = vmul.f32 %v1017, 0.5
    %v1020 = vadd.f32 %v1018, 0.5
    %v1021 = vadd.f32 %v1019, 0.5
    %v1022 = vtanh.pop %v902
    %v1023 = vtanh.pop %v903
    %v1024 = vmul.f32 %v1020, %v1022
    %v1025 = vmul.f32 %v1021, %v1023
    %v1026 = vadd.f32 %v548, %v1024
    %v1027 = vadd.f32 %v549, %v1025
    %v1028 = vpack.c.bf16 %v1025, %v1024
    %s1029 = scalar_lea.vmem [#allocation2], 32
    %v1030 = vld [vmem:[%s1029] sm:$0xff]
    %v1031 = vunpack.c.l.bf16 %v1030
    %v1032 = vunpack.c.h.bf16 %v1030
    %1033 = vmatprep.subr.bf16.mxu0 0
    %1034 = vmatpush1.bf16.msra.mxu0 %v601
    %1035 = vmatprep.subr.bf16.mxu0 0
    %1036 = vmatpush1.bf16.msra.mxu0 %v602
    %1037 = vmatprep.subr.bf16.mxu0 0
    %1038 = vmatpush1.bf16.msra.mxu0 %v603
    %1039 = vmatprep.subr.bf16.mxu0 0
    %1040 = vmatpush1.bf16.msra.mxu0 %v604
    %1041 = vmatprep.subr.bf16.mxu0 0
    %1042 = vmatpush1.bf16.msra.mxu0 %v605
    %1043 = vmatprep.subr.bf16.mxu0 0
    %1044 = vmatpush1.bf16.msra.mxu0 %v606
    %1045 = vmatprep.subr.bf16.mxu0 0
    %1046 = vmatpush1.bf16.msra.mxu0 %v607
    %1047 = vmatprep.subr.bf16.mxu0 0
    %1048 = vmatpush1.bf16.msra.mxu0 %v608
    %1049 = vmatprep.subr.bf16.mxu0 0
    %1050 = vmatpush1.bf16.msra.mxu0 0
    %1051 = vmatprep.subr.bf16.mxu0 0
    %1052 = vmatpush1.bf16.msra.mxu0 0
    %1053 = vmatprep.subr.bf16.mxu0 0
    %1054 = vmatpush1.bf16.msra.mxu0 0
    %1055 = vmatprep.subr.bf16.mxu0 0
    %1056 = vmatpush1.bf16.msra.mxu0 0
    %1057 = vmatprep.subr.bf16.mxu0 0
    %1058 = vmatpush1.bf16.msra.mxu0 0
    %1059 = vmatprep.subr.bf16.mxu0 0
    %1060 = vmatpush1.bf16.msra.mxu0 0
    %1061 = vmatprep.subr.bf16.mxu0 0
    %1062 = vmatpush1.bf16.msra.mxu0 0
    %1063 = vmatprep.subr.bf16.mxu0 0
    %1064 = vmatpush1.bf16.msra.mxu0 0
    %1065 = vmatprep.mubr.bf16.mxu0 0
    %1066 = vmatmul.mubr.bf16.gmra.mrb[0].mxu0 %v1028
    %v1067 = vpop.f32.mrb[0].mxu0
    %v1068 = vadd.f32 0.0, %v1067
    %v1069 = vpop.f32.mrb[0].mxu0
    %v1070 = vpop.f32.mrb[0].mxu0
    %v1071 = vadd.f32 0.0, %v1070
    %v1072 = vpop.f32.mrb[0].mxu0
    %1073 = vdwg.mxu0
    %v1074 = vadd.f32 %v1031, %v1068
    %v1075 = vadd.f32 %v1032, %v1071
    %v1076 = vmul.f32 %v1074, 0.5
    %v1077 = vmul.f32 %v1075, 0.5
    %v1078 = vtanh.pop %v1076
    %v1079 = vtanh.pop %v1077
    %v1080 = vmul.f32 %v1078, 0.5
    %v1081 = vmul.f32 %v1079, 0.5
    %v1082 = vadd.f32 %v1080, 0.5
    %v1083 = vadd.f32 %v1081, 0.5
    %v1084 = vld [vmem:[%s1029 + $0x10] sm:$0xff]
    %v1085 = vunpack.c.l.bf16 %v1084
    %v1086 = vunpack.c.h.bf16 %v1084
    %1087 = vmatprep.subr.bf16.mxu0 0
    %1088 = vmatpush1.bf16.msra.mxu0 %v719
    %1089 = vmatprep.subr.bf16.mxu0 0
    %1090 = vmatpush1.bf16.msra.mxu0 %v720
    %1091 = vmatprep.subr.bf16.mxu0 0
    %1092 = vmatpush1.bf16.msra.mxu0 %v721
    %1093 = vmatprep.subr.bf16.mxu0 0
    %1094 = vmatpush1.bf16.msra.mxu0 %v722
    %1095 = vmatprep.subr.bf16.mxu0 0
    %1096 = vmatpush1.bf16.msra.mxu0 %v723
    %1097 = vmatprep.subr.bf16.mxu0 0
    %1098 = vmatpush1.bf16.msra.mxu0 %v724
    %1099 = vmatprep.subr.bf16.mxu0 0
    %1100 = vmatpush1.bf16.msra.mxu0 %v725
    %1101 = vmatprep.subr.bf16.mxu0 0
    %1102 = vmatpush1.bf16.msra.mxu0 %v726
    %1103 = vmatprep.subr.bf16.mxu0 0
    %1104 = vmatpush1.bf16.msra.mxu0 0
    %1105 = vmatprep.subr.bf16.mxu0 0
    %1106 = vmatpush1.bf16.msra.mxu0 0
    %1107 = vmatprep.subr.bf16.mxu0 0
    %1108 = vmatpush1.bf16.msra.mxu0 0
    %1109 = vmatprep.subr.bf16.mxu0 0
    %1110 = vmatpush1.bf16.msra.mxu0 0
    %1111 = vmatprep.subr.bf16.mxu0 0
    %1112 = vmatpush1.bf16.msra.mxu0 0
    %1113 = vmatprep.subr.bf16.mxu0 0
    %1114 = vmatpush1.bf16.msra.mxu0 0
    %1115 = vmatprep.subr.bf16.mxu0 0
    %1116 = vmatpush1.bf16.msra.mxu0 0
    %1117 = vmatprep.subr.bf16.mxu0 0
    %1118 = vmatpush1.bf16.msra.mxu0 0
    %1119 = vmatprep.mubr.bf16.mxu0 0
    %1120 = vmatmul.mubr.bf16.gmra.mrb[0].mxu0 %v1028
    %v1121 = vpop.f32.mrb[0].mxu0
    %v1122 = vadd.f32 0.0, %v1121
    %v1123 = vpop.f32.mrb[0].mxu0
    %v1124 = vpop.f32.mrb[0].mxu0
    %v1125 = vadd.f32 0.0, %v1124
    %v1126 = vpop.f32.mrb[0].mxu0
    %1127 = vdwg.mxu0
    %v1128 = vadd.f32 %v1085, %v1122
    %v1129 = vadd.f32 %v1086, %v1125
    %v1130 = vtanh.pop %v1128
    %v1131 = vtanh.pop %v1129
    %v1132 = vld [vmem:[%s1029 + $0x8] sm:$0xff]
    %v1133 = vunpack.c.l.bf16 %v1132
    %v1134 = vunpack.c.h.bf16 %v1132
    %1135 = vmatprep.subr.bf16.mxu0 0
    %1136 = vmatpush1.bf16.msra.mxu0 %v831
    %1137 = vmatprep.subr.bf16.mxu0 0
    %1138 = vmatpush1.bf16.msra.mxu0 %v832
    %1139 = vmatprep.subr.bf16.mxu0 0
    %1140 = vmatpush1.bf16.msra.mxu0 %v833
    %1141 = vmatprep.subr.bf16.mxu0 0
    %1142 = vmatpush1.bf16.msra.mxu0 %v834
    %1143 = vmatprep.subr.bf16.mxu0 0
    %1144 = vmatpush1.bf16.msra.mxu0 %v835
    %1145 = vmatprep.subr.bf16.mxu0 0
    %1146 = vmatpush1.bf16.msra.mxu0 %v836
    %1147 = vmatprep.subr.bf16.mxu0 0
    %1148 = vmatpush1.bf16.msra.mxu0 %v837
    %1149 = vmatprep.subr.bf16.mxu0 0
    %1150 = vmatpush1.bf16.msra.mxu0 %v838
    %1151 = vmatprep.subr.bf16.mxu0 0
    %1152 = vmatpush1.bf16.msra.mxu0 0
    %1153 = vmatprep.subr.bf16.mxu0 0
    %1154 = vmatpush1.bf16.msra.mxu0 0
    %1155 = vmatprep.subr.bf16.mxu0 0
    %1156 = vmatpush1.bf16.msra.mxu0 0
    %1157 = vmatprep.subr.bf16.mxu0 0
    %1158 = vmatpush1.bf16.msra.mxu0 0
    %1159 = vmatprep.subr.bf16.mxu0 0
    %1160 = vmatpush1.bf16.msra.mxu0 0
    %1161 = vmatprep.subr.bf16.mxu0 0
    %1162 = vmatpush1.bf16.msra.mxu0 0
    %1163 = vmatprep.subr.bf16.mxu0 0
    %1164 = vmatpush1.bf16.msra.mxu0 0
    %1165 = vmatprep.subr.bf16.mxu0 0
    %1166 = vmatpush1.bf16.msra.mxu0 0
    %1167 = vmatprep.mubr.bf16.mxu0 0
    %1168 = vmatmul.mubr.bf16.gmra.mrb[0].mxu0 %v1028
    %v1169 = vpop.f32.mrb[0].mxu0
    %v1170 = vadd.f32 0.0, %v1169
    %v1171 = vpop.f32.mrb[0].mxu0
    %v1172 = vpop.f32.mrb[0].mxu0
    %v1173 = vadd.f32 0.0, %v1172
    %v1174 = vpop.f32.mrb[0].mxu0
    %1175 = vdwg.mxu0
    %v1176 = vadd.f32 %v1133, %v1170
    %v1177 = vadd.f32 %v1134, %v1173
    %v1178 = vmul.f32 %v1176, 0.5
    %v1179 = vmul.f32 %v1177, 0.5
    %v1180 = vtanh.pop %v1178
    %v1181 = vtanh.pop %v1179
    %v1182 = vmul.f32 %v1180, 0.5
    %v1183 = vmul.f32 %v1181, 0.5
    %v1184 = vadd.f32 %v1182, 0.5
    %v1185 = vadd.f32 %v1183, 0.5
    %v1186 = vmul.f32 %v1184, %v902
    %v1187 = vmul.f32 %v1185, %v903
    %v1188 = vmul.f32 %v1082, %v1130
    %v1189 = vmul.f32 %v1083, %v1131
    %v1190 = vadd.f32 %v1186, %v1188
    %v1191 = vadd.f32 %v1187, %v1189
    %v1192 = vld [vmem:[%s1029 + $0x18] sm:$0xff]
    %v1193 = vunpack.c.l.bf16 %v1192
    %v1194 = vunpack.c.h.bf16 %v1192
    %1195 = vmatprep.subr.bf16.mxu0 0
    %1196 = vmatpush1.bf16.msra.mxu0 %v955
    %1197 = vmatprep.subr.bf16.mxu0 0
    %1198 = vmatpush1.bf16.msra.mxu0 %v956
    %1199 = vmatprep.subr.bf16.mxu0 0
    %1200 = vmatpush1.bf16.msra.mxu0 %v957
    %1201 = vmatprep.subr.bf16.mxu0 0
    %1202 = vmatpush1.bf16.msra.mxu0 %v958
    %1203 = vmatprep.subr.bf16.mxu0 0
    %1204 = vmatpush1.bf16.msra.mxu0 %v959
    %1205 = vmatprep.subr.bf16.mxu0 0
    %1206 = vmatpush1.bf16.msra.mxu0 %v960
    %1207 = vmatprep.subr.bf16.mxu0 0
    %1208 = vmatpush1.bf16.msra.mxu0 %v961
    %1209 = vmatprep.subr.bf16.mxu0 0
    %1210 = vmatpush1.bf16.msra.mxu0 %v962
    %1211 = vmatprep.subr.bf16.mxu0 0
    %1212 = vmatpush1.bf16.msra.mxu0 0
    %1213 = vmatprep.subr.bf16.mxu0 0
    %1214 = vmatpush1.bf16.msra.mxu0 0
    %1215 = vmatprep.subr.bf16.mxu0 0
    %1216 = vmatpush1.bf16.msra.mxu0 0
    %1217 = vmatprep.subr.bf16.mxu0 0
    %1218 = vmatpush1.bf16.msra.mxu0 0
    %1219 = vmatprep.subr.bf16.mxu0 0
    %1220 = vmatpush1.bf16.msra.mxu0 0
    %1221 = vmatprep.subr.bf16.mxu0 0
    %1222 = vmatpush1.bf16.msra.mxu0 0
    %1223 = vmatprep.subr.bf16.mxu0 0
    %1224 = vmatpush1.bf16.msra.mxu0 0
    %1225 = vmatprep.subr.bf16.mxu0 0
    %1226 = vmatpush1.bf16.msra.mxu0 0
    %1227 = vmatprep.mubr.bf16.mxu0 0
    %1228 = vmatmul.mubr.bf16.gmra.mrb[0].mxu0 %v1028
    %v1229 = vpop.f32.mrb[0].mxu0
    %v1230 = vadd.f32 0.0, %v1229
    %v1231 = vpop.f32.mrb[0].mxu0
    %v1232 = vpop.f32.mrb[0].mxu0
    %v1233 = vadd.f32 0.0, %v1232
    %v1234 = vpop.f32.mrb[0].mxu0
    %1235 = vdwg.mxu0
    %v1236 = vadd.f32 %v1193, %v1230
    %v1237 = vadd.f32 %v1194, %v1233
    %v1238 = vmul.f32 %v1236, 0.5
    %v1239 = vmul.f32 %v1237, 0.5
    %v1240 = vtanh.pop %v1238
    %v1241 = vtanh.pop %v1239
    %v1242 = vmul.f32 %v1240, 0.5
    %v1243 = vmul.f32 %v1241, 0.5
    %v1244 = vadd.f32 %v1242, 0.5
    %v1245 = vadd.f32 %v1243, 0.5
    %v1246 = vtanh.pop %v1190
    %v1247 = vtanh.pop %v1191
    %v1248 = vmul.f32 %v1244, %v1246
    %v1249 = vmul.f32 %v1245, %v1247
    %v1250 = vadd.f32 %v1026, %v1248
    %v1251 = vadd.f32 %v1027, %v1249
    %v1252 = vpack.c.bf16 %v1249, %v1248
    %s1253 = scalar_lea.vmem [#allocation2], 64
    %v1254 = vld [vmem:[%s1253] sm:$0xff]
    %v1255 = vunpack.c.l.bf16 %v1254
    %v1256 = vunpack.c.h.bf16 %v1254
    %1257 = vmatprep.subr.bf16.mxu0 0
    %1258 = vmatpush1.bf16.msra.mxu0 %v601
    %1259 = vmatprep.subr.bf16.mxu0 0
    %1260 = vmatpush1.bf16.msra.mxu0 %v602
    %1261 = vmatprep.subr.bf16.mxu0 0
    %1262 = vmatpush1.bf16.msra.mxu0 %v603
    %1263 = vmatprep.subr.bf16.mxu0 0
    %1264 = vmatpush1.bf16.msra.mxu0 %v604
    %1265 = vmatprep.subr.bf16.mxu0 0
    %1266 = vmatpush1.bf16.msra.mxu0 %v605
    %1267 = vmatprep.subr.bf16.mxu0 0
    %1268 = vmatpush1.bf16.msra.mxu0 %v606
    %1269 = vmatprep.subr.bf16.mxu0 0
    %1270 = vmatpush1.bf16.msra.mxu0 %v607
    %1271 = vmatprep.subr.bf16.mxu0 0
    %1272 = vmatpush1.bf16.msra.mxu0 %v608
    %1273 = vmatprep.subr.bf16.mxu0 0
    %1274 = vmatpush1.bf16.msra.mxu0 0
    %1275 = vmatprep.subr.bf16.mxu0 0
    %1276 = vmatpush1.bf16.msra.mxu0 0
    %1277 = vmatprep.subr.bf16.mxu0 0
    %1278 = vmatpush1.bf16.msra.mxu0 0
    %1279 = vmatprep.subr.bf16.mxu0 0
    %1280 = vmatpush1.bf16.msra.mxu0 0
    %1281 = vmatprep.subr.bf16.mxu0 0
    %1282 = vmatpush1.bf16.msra.mxu0 0
    %1283 = vmatprep.subr.bf16.mxu0 0
    %1284 = vmatpush1.bf16.msra.mxu0 0
    %1285 = vmatprep.subr.bf16.mxu0 0
    %1286 = vmatpush1.bf16.msra.mxu0 0
    %1287 = vmatprep.subr.bf16.mxu0 0
    %1288 = vmatpush1.bf16.msra.mxu0 0
    %1289 = vmatprep.mubr.bf16.mxu0 0
    %1290 = vmatmul.mubr.bf16.gmra.mrb[0].mxu0 %v1252
    %v1291 = vpop.f32.mrb[0].mxu0
    %v1292 = vadd.f32 0.0, %v1291
    %v1293 = vpop.f32.mrb[0].mxu0
    %v1294 = vpop.f32.mrb[0].mxu0
    %v1295 = vadd.f32 0.0, %v1294
    %v1296 = vpop.f32.mrb[0].mxu0
    %1297 = vdwg.mxu0
    %v1298 = vadd.f32 %v1255, %v1292
    %v1299 = vadd.f32 %v1256, %v1295
    %v1300 = vmul.f32 %v1298, 0.5
    %v1301 = vmul.f32 %v1299, 0.5
    %v1302 = vtanh.pop %v1300
    %v1303 = vtanh.pop %v1301
    %v1304 = vmul.f32 %v1302, 0.5
    %v1305 = vmul.f32 %v1303, 0.5
    %v1306 = vadd.f32 %v1304, 0.5
    %v1307 = vadd.f32 %v1305, 0.5
    %v1308 = vld [vmem:[%s1253 + $0x10] sm:$0xff]
    %v1309 = vunpack.c.l.bf16 %v1308
    %v1310 = vunpack.c.h.bf16 %v1308
    %1311 = vmatprep.subr.bf16.mxu0 0
    %1312 = vmatpush1.bf16.msra.mxu0 %v719
    %1313 = vmatprep.subr.bf16.mxu0 0
    %1314 = vmatpush1.bf16.msra.mxu0 %v720
    %1315 = vmatprep.subr.bf16.mxu0 0
    %1316 = vmatpush1.bf16.msra.mxu0 %v721
    %1317 = vmatprep.subr.bf16.mxu0 0
    %1318 = vmatpush1.bf16.msra.mxu0 %v722
    %1319 = vmatprep.subr.bf16.mxu0 0
    %1320 = vmatpush1.bf16.msra.mxu0 %v723
    %1321 = vmatprep.subr.bf16.mxu0 0
    %1322 = vmatpush1.bf16.msra.mxu0 %v724
    %1323 = vmatprep.subr.bf16.mxu0 0
    %1324 = vmatpush1.bf16.msra.mxu0 %v725
    %1325 = vmatprep.subr.bf16.mxu0 0
    %1326 = vmatpush1.bf16.msra.mxu0 %v726
    %1327 = vmatprep.subr.bf16.mxu0 0
    %1328 = vmatpush1.bf16.msra.mxu0 0
    %1329 = vmatprep.subr.bf16.mxu0 0
    %1330 = vmatpush1.bf16.msra.mxu0 0
    %1331 = vmatprep.subr.bf16.mxu0 0
    %1332 = vmatpush1.bf16.msra.mxu0 0
    %1333 = vmatprep.subr.bf16.mxu0 0
    %1334 = vmatpush1.bf16.msra.mxu0 0
    %1335 = vmatprep.subr.bf16.mxu0 0
    %1336 = vmatpush1.bf16.msra.mxu0 0
    %1337 = vmatprep.subr.bf16.mxu0 0
    %1338 = vmatpush1.bf16.msra.mxu0 0
    %1339 = vmatprep.subr.bf16.mxu0 0
    %1340 = vmatpush1.bf16.msra.mxu0 0
    %1341 = vmatprep.subr.bf16.mxu0 0
    %1342 = vmatpush1.bf16.msra.mxu0 0
    %1343 = vmatprep.mubr.bf16.mxu0 0
    %1344 = vmatmul.mubr.bf16.gmra.mrb[0].mxu0 %v1252
    %v1345 = vpop.f32.mrb[0].mxu0
    %v1346 = vadd.f32 0.0, %v1345
    %v1347 = vpop.f32.mrb[0].mxu0
    %v1348 = vpop.f32.mrb[0].mxu0
    %v1349 = vadd.f32 0.0, %v1348
    %v1350 = vpop.f32.mrb[0].mxu0
    %1351 = vdwg.mxu0
    %v1352 = vadd.f32 %v1309, %v1346
    %v1353 = vadd.f32 %v1310, %v1349
    %v1354 = vtanh.pop %v1352
    %v1355 = vtanh.pop %v1353
    %v1356 = vld [vmem:[%s1253 + $0x8] sm:$0xff]
    %v1357 = vunpack.c.l.bf16 %v1356
    %v1358 = vunpack.c.h.bf16 %v1356
    %1359 = vmatprep.subr.bf16.mxu0 0
    %1360 = vmatpush1.bf16.msra.mxu0 %v831
    %1361 = vmatprep.subr.bf16.mxu0 0
    %1362 = vmatpush1.bf16.msra.mxu0 %v832
    %1363 = vmatprep.subr.bf16.mxu0 0
    %1364 = vmatpush1.bf16.msra.mxu0 %v833
    %1365 = vmatprep.subr.bf16.mxu0 0
    %1366 = vmatpush1.bf16.msra.mxu0 %v834
    %1367 = vmatprep.subr.bf16.mxu0 0
    %1368 = vmatpush1.bf16.msra.mxu0 %v835
    %1369 = vmatprep.subr.bf16.mxu0 0
    %1370 = vmatpush1.bf16.msra.mxu0 %v836
    %1371 = vmatprep.subr.bf16.mxu0 0
    %1372 = vmatpush1.bf16.msra.mxu0 %v837
    %1373 = vmatprep.subr.bf16.mxu0 0
    %1374 = vmatpush1.bf16.msra.mxu0 %v838
    %1375 = vmatprep.subr.bf16.mxu0 0
    %1376 = vmatpush1.bf16.msra.mxu0 0
    %1377 = vmatprep.subr.bf16.mxu0 0
    %1378 = vmatpush1.bf16.msra.mxu0 0
    %1379 = vmatprep.subr.bf16.mxu0 0
    %1380 = vmatpush1.bf16.msra.mxu0 0
    %1381 = vmatprep.subr.bf16.mxu0 0
    %1382 = vmatpush1.bf16.msra.mxu0 0
    %1383 = vmatprep.subr.bf16.mxu0 0
    %1384 = vmatpush1.bf16.msra.mxu0 0
    %1385 = vmatprep.subr.bf16.mxu0 0
    %1386 = vmatpush1.bf16.msra.mxu0 0
    %1387 = vmatprep.subr.bf16.mxu0 0
    %1388 = vmatpush1.bf16.msra.mxu0 0
    %1389 = vmatprep.subr.bf16.mxu0 0
    %1390 = vmatpush1.bf16.msra.mxu0 0
    %1391 = vmatprep.mubr.bf16.mxu0 0
    %1392 = vmatmul.mubr.bf16.gmra.mrb[0].mxu0 %v1252
    %v1393 = vpop.f32.mrb[0].mxu0
    %v1394 = vadd.f32 0.0, %v1393
    %v1395 = vpop.f32.mrb[0].mxu0
    %v1396 = vpop.f32.mrb[0].mxu0
    %v1397 = vadd.f32 0.0, %v1396
    %v1398 = vpop.f32.mrb[0].mxu0
    %1399 = vdwg.mxu0
    %v1400 = vadd.f32 %v1357, %v1394
    %v1401 = vadd.f32 %v1358, %v1397
    %v1402 = vmul.f32 %v1400, 0.5
    %v1403 = vmul.f32 %v1401, 0.5
    %v1404 = vtanh.pop %v1402
    %v1405 = vtanh.pop %v1403
    %v1406 = vmul.f32 %v1404, 0.5
    %v1407 = vmul.f32 %v1405, 0.5
    %v1408 = vadd.f32 %v1406, 0.5
    %v1409 = vadd.f32 %v1407, 0.5
    %v1410 = vmul.f32 %v1408, %v1190
    %v1411 = vmul.f32 %v1409, %v1191
    %v1412 = vmul.f32 %v1306, %v1354
    %v1413 = vmul.f32 %v1307, %v1355
    %v1414 = vadd.f32 %v1410, %v1412
    %v1415 = vadd.f32 %v1411, %v1413
    %v1416 = vld [vmem:[%s1253 + $0x18] sm:$0xff]
    %v1417 = vunpack.c.l.bf16 %v1416
    %v1418 = vunpack.c.h.bf16 %v1416
    %1419 = vmatprep.subr.bf16.mxu0 0
    %1420 = vmatpush1.bf16.msra.mxu0 %v955
    %1421 = vmatprep.subr.bf16.mxu0 0
    %1422 = vmatpush1.bf16.msra.mxu0 %v956
    %1423 = vmatprep.subr.bf16.mxu0 0
    %1424 = vmatpush1.bf16.msra.mxu0 %v957
    %1425 = vmatprep.subr.bf16.mxu0 0
    %1426 = vmatpush1.bf16.msra.mxu0 %v958
    %1427 = vmatprep.subr.bf16.mxu0 0
    %1428 = vmatpush1.bf16.msra.mxu0 %v959
    %1429 = vmatprep.subr.bf16.mxu0 0
    %1430 = vmatpush1.bf16.msra.mxu0 %v960
    %1431 = vmatprep.subr.bf16.mxu0 0
    %1432 = vmatpush1.bf16.msra.mxu0 %v961
    %1433 = vmatprep.subr.bf16.mxu0 0
    %1434 = vmatpush1.bf16.msra.mxu0 %v962
    %1435 = vmatprep.subr.bf16.mxu0 0
    %1436 = vmatpush1.bf16.msra.mxu0 0
    %1437 = vmatprep.subr.bf16.mxu0 0
    %1438 = vmatpush1.bf16.msra.mxu0 0
    %1439 = vmatprep.subr.bf16.mxu0 0
    %1440 = vmatpush1.bf16.msra.mxu0 0
    %1441 = vmatprep.subr.bf16.mxu0 0
    %1442 = vmatpush1.bf16.msra.mxu0 0
    %1443 = vmatprep.subr.bf16.mxu0 0
    %1444 = vmatpush1.bf16.msra.mxu0 0
    %1445 = vmatprep.subr.bf16.mxu0 0
    %1446 = vmatpush1.bf16.msra.mxu0 0
    %1447 = vmatprep.subr.bf16.mxu0 0
    %1448 = vmatpush1.bf16.msra.mxu0 0
    %1449 = vmatprep.subr.bf16.mxu0 0
    %1450 = vmatpush1.bf16.msra.mxu0 0
    %1451 = vmatprep.mubr.bf16.mxu0 0
    %1452 = vmatmul.mubr.bf16.gmra.mrb[0].mxu0 %v1252
    %v1453 = vpop.f32.mrb[0].mxu0
    %v1454 = vadd.f32 0.0, %v1453
    %v1455 = vpop.f32.mrb[0].mxu0
    %v1456 = vpop.f32.mrb[0].mxu0
    %v1457 = vadd.f32 0.0, %v1456
    %v1458 = vpop.f32.mrb[0].mxu0
    %1459 = vdwg.mxu0
    %v1460 = vadd.f32 %v1417, %v1454
    %v1461 = vadd.f32 %v1418, %v1457
    %v1462 = vmul.f32 %v1460, 0.5
    %v1463 = vmul.f32 %v1461, 0.5
    %v1464 = vtanh.pop %v1462
    %v1465 = vtanh.pop %v1463
    %v1466 = vmul.f32 %v1464, 0.5
    %v1467 = vmul.f32 %v1465, 0.5
    %v1468 = vadd.f32 %v1466, 0.5
    %v1469 = vadd.f32 %v1467, 0.5
    %v1470 = vtanh.pop %v1414
    %v1471 = vtanh.pop %v1415
    %v1472 = vmul.f32 %v1468, %v1470
    %v1473 = vmul.f32 %v1469, %v1471
    %v1474 = vadd.f32 %v1250, %v1472
    %v1475 = vadd.f32 %v1251, %v1473
    %v1476 = vpack.c.bf16 %v1473, %v1472
    %s1477 = scalar_lea.vmem [#allocation2], 96
    %v1478 = vld [vmem:[%s1477] sm:$0xff]
    %v1479 = vunpack.c.l.bf16 %v1478
    %v1480 = vunpack.c.h.bf16 %v1478
    %1481 = vmatprep.subr.bf16.mxu0 0
    %1482 = vmatpush1.bf16.msra.mxu0 %v601
    %1483 = vmatprep.subr.bf16.mxu0 0
    %1484 = vmatpush1.bf16.msra.mxu0 %v602
    %1485 = vmatprep.subr.bf16.mxu0 0
    %1486 = vmatpush1.bf16.msra.mxu0 %v603
    %1487 = vmatprep.subr.bf16.mxu0 0
    %1488 = vmatpush1.bf16.msra.mxu0 %v604
    %1489 = vmatprep.subr.bf16.mxu0 0
    %1490 = vmatpush1.bf16.msra.mxu0 %v605
    %1491 = vmatprep.subr.bf16.mxu0 0
    %1492 = vmatpush1.bf16.msra.mxu0 %v606
    %1493 = vmatprep.subr.bf16.mxu0 0
    %1494 = vmatpush1.bf16.msra.mxu0 %v607
    %1495 = vmatprep.subr.bf16.mxu0 0
    %1496 = vmatpush1.bf16.msra.mxu0 %v608
    %1497 = vmatprep.subr.bf16.mxu0 0
    %1498 = vmatpush1.bf16.msra.mxu0 0
    %1499 = vmatprep.subr.bf16.mxu0 0
    %1500 = vmatpush1.bf16.msra.mxu0 0
    %1501 = vmatprep.subr.bf16.mxu0 0
    %1502 = vmatpush1.bf16.msra.mxu0 0
    %1503 = vmatprep.subr.bf16.mxu0 0
    %1504 = vmatpush1.bf16.msra.mxu0 0
    %1505 = vmatprep.subr.bf16.mxu0 0
    %1506 = vmatpush1.bf16.msra.mxu0 0
    %1507 = vmatprep.subr.bf16.mxu0 0
    %1508 = vmatpush1.bf16.msra.mxu0 0
    %1509 = vmatprep.subr.bf16.mxu0 0
    %1510 = vmatpush1.bf16.msra.mxu0 0
    %1511 = vmatprep.subr.bf16.mxu0 0
    %1512 = vmatpush1.bf16.msra.mxu0 0
    %1513 = vmatprep.mubr.bf16.mxu0 0
    %1514 = vmatmul.mubr.bf16.gmra.mrb[0].mxu0 %v1476
    %v1515 = vpop.f32.mrb[0].mxu0
    %v1516 = vadd.f32 0.0, %v1515
    %v1517 = vpop.f32.mrb[0].mxu0
    %v1518 = vpop.f32.mrb[0].mxu0
    %v1519 = vadd.f32 0.0, %v1518
    %v1520 = vpop.f32.mrb[0].mxu0
    %1521 = vdwg.mxu0
    %v1522 = vadd.f32 %v1479, %v1516
    %v1523 = vadd.f32 %v1480, %v1519
    %v1524 = vmul.f32 %v1522, 0.5
    %v1525 = vmul.f32 %v1523, 0.5
    %v1526 = vtanh.pop %v1524
    %v1527 = vtanh.pop %v1525
    %v1528 = vmul.f32 %v1526, 0.5
    %v1529 = vmul.f32 %v1527, 0.5
    %v1530 = vadd.f32 %v1528, 0.5
    %v1531 = vadd.f32 %v1529, 0.5
    %v1532 = vld [vmem:[%s1477 + $0x10] sm:$0xff]
    %v1533 = vunpack.c.l.bf16 %v1532
    %v1534 = vunpack.c.h.bf16 %v1532
    %1535 = vmatprep.subr.bf16.mxu0 0
    %1536 = vmatpush1.bf16.msra.mxu0 %v719
    %1537 = vmatprep.subr.bf16.mxu0 0
    %1538 = vmatpush1.bf16.msra.mxu0 %v720
    %1539 = vmatprep.subr.bf16.mxu0 0
    %1540 = vmatpush1.bf16.msra.mxu0 %v721
    %1541 = vmatprep.subr.bf16.mxu0 0
    %1542 = vmatpush1.bf16.msra.mxu0 %v722
    %1543 = vmatprep.subr.bf16.mxu0 0
    %1544 = vmatpush1.bf16.msra.mxu0 %v723
    %1545 = vmatprep.subr.bf16.mxu0 0
    %1546 = vmatpush1.bf16.msra.mxu0 %v724
    %1547 = vmatprep.subr.bf16.mxu0 0
    %1548 = vmatpush1.bf16.msra.mxu0 %v725
    %1549 = vmatprep.subr.bf16.mxu0 0
    %1550 = vmatpush1.bf16.msra.mxu0 %v726
    %1551 = vmatprep.subr.bf16.mxu0 0
    %1552 = vmatpush1.bf16.msra.mxu0 0
    %1553 = vmatprep.subr.bf16.mxu0 0
    %1554 = vmatpush1.bf16.msra.mxu0 0
    %1555 = vmatprep.subr.bf16.mxu0 0
    %1556 = vmatpush1.bf16.msra.mxu0 0
    %1557 = vmatprep.subr.bf16.mxu0 0
    %1558 = vmatpush1.bf16.msra.mxu0 0
    %1559 = vmatprep.subr.bf16.mxu0 0
    %1560 = vmatpush1.bf16.msra.mxu0 0
    %1561 = vmatprep.subr.bf16.mxu0 0
    %1562 = vmatpush1.bf16.msra.mxu0 0
    %1563 = vmatprep.subr.bf16.mxu0 0
    %1564 = vmatpush1.bf16.msra.mxu0 0
    %1565 = vmatprep.subr.bf16.mxu0 0
    %1566 = vmatpush1.bf16.msra.mxu0 0
    %1567 = vmatprep.mubr.bf16.mxu0 0
    %1568 = vmatmul.mubr.bf16.gmra.mrb[0].mxu0 %v1476
    %v1569 = vpop.f32.mrb[0].mxu0
    %v1570 = vadd.f32 0.0, %v1569
    %v1571 = vpop.f32.mrb[0].mxu0
    %v1572 = vpop.f32.mrb[0].mxu0
    %v1573 = vadd.f32 0.0, %v1572
    %v1574 = vpop.f32.mrb[0].mxu0
    %1575 = vdwg.mxu0
    %v1576 = vadd.f32 %v1533, %v1570
    %v1577 = vadd.f32 %v1534, %v1573
    %v1578 = vtanh.pop %v1576
    %v1579 = vtanh.pop %v1577
    %v1580 = vld [vmem:[%s1477 + $0x8] sm:$0xff]
    %v1581 = vunpack.c.l.bf16 %v1580
    %v1582 = vunpack.c.h.bf16 %v1580
    %1583 = vmatprep.subr.bf16.mxu0 0
    %1584 = vmatpush1.bf16.msra.mxu0 %v831
    %1585 = vmatprep.subr.bf16.mxu0 0
    %1586 = vmatpush1.bf16.msra.mxu0 %v832
    %1587 = vmatprep.subr.bf16.mxu0 0
    %1588 = vmatpush1.bf16.msra.mxu0 %v833
    %1589 = vmatprep.subr.bf16.mxu0 0
    %1590 = vmatpush1.bf16.msra.mxu0 %v834
    %1591 = vmatprep.subr.bf16.mxu0 0
    %1592 = vmatpush1.bf16.msra.mxu0 %v835
    %1593 = vmatprep.subr.bf16.mxu0 0
    %1594 = vmatpush1.bf16.msra.mxu0 %v836
    %1595 = vmatprep.subr.bf16.mxu0 0
    %1596 = vmatpush1.bf16.msra.mxu0 %v837
    %1597 = vmatprep.subr.bf16.mxu0 0
    %1598 = vmatpush1.bf16.msra.mxu0 %v838
    %1599 = vmatprep.subr.bf16.mxu0 0
    %1600 = vmatpush1.bf16.msra.mxu0 0
    %1601 = vmatprep.subr.bf16.mxu0 0
    %1602 = vmatpush1.bf16.msra.mxu0 0
    %1603 = vmatprep.subr.bf16.mxu0 0
    %1604 = vmatpush1.bf16.msra.mxu0 0
    %1605 = vmatprep.subr.bf16.mxu0 0
    %1606 = vmatpush1.bf16.msra.mxu0 0
    %1607 = vmatprep.subr.bf16.mxu0 0
    %1608 = vmatpush1.bf16.msra.mxu0 0
    %1609 = vmatprep.subr.bf16.mxu0 0
    %1610 = vmatpush1.bf16.msra.mxu0 0
    %1611 = vmatprep.subr.bf16.mxu0 0
    %1612 = vmatpush1.bf16.msra.mxu0 0
    %1613 = vmatprep.subr.bf16.mxu0 0
    %1614 = vmatpush1.bf16.msra.mxu0 0
    %1615 = vmatprep.mubr.bf16.mxu0 0
    %1616 = vmatmul.mubr.bf16.gmra.mrb[0].mxu0 %v1476
    %v1617 = vpop.f32.mrb[0].mxu0
    %v1618 = vadd.f32 0.0, %v1617
    %v1619 = vpop.f32.mrb[0].mxu0
    %v1620 = vpop.f32.mrb[0].mxu0
    %v1621 = vadd.f32 0.0, %v1620
    %v1622 = vpop.f32.mrb[0].mxu0
    %1623 = vdwg.mxu0
    %v1624 = vadd.f32 %v1581, %v1618
    %v1625 = vadd.f32 %v1582, %v1621
    %v1626 = vmul.f32 %v1624, 0.5
    %v1627 = vmul.f32 %v1625, 0.5
    %v1628 = vtanh.pop %v1626
    %v1629 = vtanh.pop %v1627
    %v1630 = vmul.f32 %v1628, 0.5
    %v1631 = vmul.f32 %v1629, 0.5
    %v1632 = vadd.f32 %v1630, 0.5
    %v1633 = vadd.f32 %v1631, 0.5
    %v1634 = vmul.f32 %v1632, %v1414
    %v1635 = vmul.f32 %v1633, %v1415
    %v1636 = vmul.f32 %v1530, %v1578
    %v1637 = vmul.f32 %v1531, %v1579
    %v1638 = vadd.f32 %v1634, %v1636
    %v1639 = vadd.f32 %v1635, %v1637
    %v1640 = vld [vmem:[%s1477 + $0x18] sm:$0xff]
    %v1641 = vunpack.c.l.bf16 %v1640
    %v1642 = vunpack.c.h.bf16 %v1640
    %1643 = vmatprep.subr.bf16.mxu0 0
    %1644 = vmatpush1.bf16.msra.mxu0 %v955
    %1645 = vmatprep.subr.bf16.mxu0 0
    %1646 = vmatpush1.bf16.msra.mxu0 %v956
    %1647 = vmatprep.subr.bf16.mxu0 0
    %1648 = vmatpush1.bf16.msra.mxu0 %v957
    %1649 = vmatprep.subr.bf16.mxu0 0
    %1650 = vmatpush1.bf16.msra.mxu0 %v958
    %1651 = vmatprep.subr.bf16.mxu0 0
    %1652 = vmatpush1.bf16.msra.mxu0 %v959
    %1653 = vmatprep.subr.bf16.mxu0 0
    %1654 = vmatpush1.bf16.msra.mxu0 %v960
    %1655 = vmatprep.subr.bf16.mxu0 0
    %1656 = vmatpush1.bf16.msra.mxu0 %v961
    %1657 = vmatprep.subr.bf16.mxu0 0
    %1658 = vmatpush1.bf16.msra.mxu0 %v962
    %1659 = vmatprep.subr.bf16.mxu0 0
    %1660 = vmatpush1.bf16.msra.mxu0 0
    %1661 = vmatprep.subr.bf16.mxu0 0
    %1662 = vmatpush1.bf16.msra.mxu0 0
    %1663 = vmatprep.subr.bf16.mxu0 0
    %1664 = vmatpush1.bf16.msra.mxu0 0
    %1665 = vmatprep.subr.bf16.mxu0 0
    %1666 = vmatpush1.bf16.msra.mxu0 0
    %1667 = vmatprep.subr.bf16.mxu0 0
    %1668 = vmatpush1.bf16.msra.mxu0 0
    %1669 = vmatprep.subr.bf16.mxu0 0
    %1670 = vmatpush1.bf16.msra.mxu0 0
    %1671 = vmatprep.subr.bf16.mxu0 0
    %1672 = vmatpush1.bf16.msra.mxu0 0
    %1673 = vmatprep.subr.bf16.mxu0 0
    %1674 = vmatpush1.bf16.msra.mxu0 0
    %1675 = vmatprep.mubr.bf16.mxu0 0
    %1676 = vmatmul.mubr.bf16.gmra.mrb[0].mxu0 %v1476
    %v1677 = vpop.f32.mrb[0].mxu0
    %v1678 = vadd.f32 0.0, %v1677
    %v1679 = vpop.f32.mrb[0].mxu0
    %v1680 = vpop.f32.mrb[0].mxu0
    %v1681 = vadd.f32 0.0, %v1680
    %v1682 = vpop.f32.mrb[0].mxu0
    %1683 = vdwg.mxu0
    %v1684 = vadd.f32 %v1641, %v1678
    %v1685 = vadd.f32 %v1642, %v1681
    %v1686 = vmul.f32 %v1684, 0.5
    %v1687 = vmul.f32 %v1685, 0.5
    %v1688 = vtanh.pop %v1686
    %v1689 = vtanh.pop %v1687
    %v1690 = vmul.f32 %v1688, 0.5
    %v1691 = vmul.f32 %v1689, 0.5
    %v1692 = vadd.f32 %v1690, 0.5
    %v1693 = vadd.f32 %v1691, 0.5
    %v1694 = vtanh.pop %v1638
    %v1695 = vtanh.pop %v1639
    %v1696 = vmul.f32 %v1692, %v1694
    %v1697 = vmul.f32 %v1693, %v1695
    %v1698 = vadd.f32 %v1474, %v1696
    %v1699 = vadd.f32 %v1475, %v1697
    %v1700 = vpack.c.bf16 %v1697, %v1696
    %s1701 = scalar_lea.vmem [#allocation2], 128
    %v1702 = vld [vmem:[%s1701] sm:$0xff]
    %v1703 = vunpack.c.l.bf16 %v1702
    %v1704 = vunpack.c.h.bf16 %v1702
    %1705 = vmatprep.subr.bf16.mxu0 0
    %1706 = vmatpush1.bf16.msra.mxu0 %v601
    %1707 = vmatprep.subr.bf16.mxu0 0
    %1708 = vmatpush1.bf16.msra.mxu0 %v602
    %1709 = vmatprep.subr.bf16.mxu0 0
    %1710 = vmatpush1.bf16.msra.mxu0 %v603
    %1711 = vmatprep.subr.bf16.mxu0 0
    %1712 = vmatpush1.bf16.msra.mxu0 %v604
    %1713 = vmatprep.subr.bf16.mxu0 0
    %1714 = vmatpush1.bf16.msra.mxu0 %v605
    %1715 = vmatprep.subr.bf16.mxu0 0
    %1716 = vmatpush1.bf16.msra.mxu0 %v606
    %1717 = vmatprep.subr.bf16.mxu0 0
    %1718 = vmatpush1.bf16.msra.mxu0 %v607
    %1719 = vmatprep.subr.bf16.mxu0 0
    %1720 = vmatpush1.bf16.msra.mxu0 %v608
    %1721 = vmatprep.subr.bf16.mxu0 0
    %1722 = vmatpush1.bf16.msra.mxu0 0
    %1723 = vmatprep.subr.bf16.mxu0 0
    %1724 = vmatpush1.bf16.msra.mxu0 0
    %1725 = vmatprep.subr.bf16.mxu0 0
    %1726 = vmatpush1.bf16.msra.mxu0 0
    %1727 = vmatprep.subr.bf16.mxu0 0
    %1728 = vmatpush1.bf16.msra.mxu0 0
    %1729 = vmatprep.subr.bf16.mxu0 0
    %1730 = vmatpush1.bf16.msra.mxu0 0
    %1731 = vmatprep.subr.bf16.mxu0 0
    %1732 = vmatpush1.bf16.msra.mxu0 0
    %1733 = vmatprep.subr.bf16.mxu0 0
    %1734 = vmatpush1.bf16.msra.mxu0 0
    %1735 = vmatprep.subr.bf16.mxu0 0
    %1736 = vmatpush1.bf16.msra.mxu0 0
    %1737 = vmatprep.mubr.bf16.mxu0 0
    %1738 = vmatmul.mubr.bf16.gmra.mrb[0].mxu0 %v1700
    %v1739 = vpop.f32.mrb[0].mxu0
    %v1740 = vadd.f32 0.0, %v1739
    %v1741 = vpop.f32.mrb[0].mxu0
    %v1742 = vpop.f32.mrb[0].mxu0
    %v1743 = vadd.f32 0.0, %v1742
    %v1744 = vpop.f32.mrb[0].mxu0
    %1745 = vdwg.mxu0
    %v1746 = vadd.f32 %v1703, %v1740
    %v1747 = vadd.f32 %v1704, %v1743
    %v1748 = vmul.f32 %v1746, 0.5
    %v1749 = vmul.f32 %v1747, 0.5
    %v1750 = vtanh.pop %v1748
    %v1751 = vtanh.pop %v1749
    %v1752 = vmul.f32 %v1750, 0.5
    %v1753 = vmul.f32 %v1751, 0.5
    %v1754 = vadd.f32 %v1752, 0.5
    %v1755 = vadd.f32 %v1753, 0.5
    %v1756 = vld [vmem:[%s1701 + $0x10] sm:$0xff]
    %v1757 = vunpack.c.l.bf16 %v1756
    %v1758 = vunpack.c.h.bf16 %v1756
    %1759 = vmatprep.subr.bf16.mxu0 0
    %1760 = vmatpush1.bf16.msra.mxu0 %v719
    %1761 = vmatprep.subr.bf16.mxu0 0
    %1762 = vmatpush1.bf16.msra.mxu0 %v720
    %1763 = vmatprep.subr.bf16.mxu0 0
    %1764 = vmatpush1.bf16.msra.mxu0 %v721
    %1765 = vmatprep.subr.bf16.mxu0 0
    %1766 = vmatpush1.bf16.msra.mxu0 %v722
    %1767 = vmatprep.subr.bf16.mxu0 0
    %1768 = vmatpush1.bf16.msra.mxu0 %v723
    %1769 = vmatprep.subr.bf16.mxu0 0
    %1770 = vmatpush1.bf16.msra.mxu0 %v724
    %1771 = vmatprep.subr.bf16.mxu0 0
    %1772 = vmatpush1.bf16.msra.mxu0 %v725
    %1773 = vmatprep.subr.bf16.mxu0 0
    %1774 = vmatpush1.bf16.msra.mxu0 %v726
    %1775 = vmatprep.subr.bf16.mxu0 0
    %1776 = vmatpush1.bf16.msra.mxu0 0
    %1777 = vmatprep.subr.bf16.mxu0 0
    %1778 = vmatpush1.bf16.msra.mxu0 0
    %1779 = vmatprep.subr.bf16.mxu0 0
    %1780 = vmatpush1.bf16.msra.mxu0 0
    %1781 = vmatprep.subr.bf16.mxu0 0
    %1782 = vmatpush1.bf16.msra.mxu0 0
    %1783 = vmatprep.subr.bf16.mxu0 0
    %1784 = vmatpush1.bf16.msra.mxu0 0
    %1785 = vmatprep.subr.bf16.mxu0 0
    %1786 = vmatpush1.bf16.msra.mxu0 0
    %1787 = vmatprep.subr.bf16.mxu0 0
    %1788 = vmatpush1.bf16.msra.mxu0 0
    %1789 = vmatprep.subr.bf16.mxu0 0
    %1790 = vmatpush1.bf16.msra.mxu0 0
    %1791 = vmatprep.mubr.bf16.mxu0 0
    %1792 = vmatmul.mubr.bf16.gmra.mrb[0].mxu0 %v1700
    %v1793 = vpop.f32.mrb[0].mxu0
    %v1794 = vadd.f32 0.0, %v1793
    %v1795 = vpop.f32.mrb[0].mxu0
    %v1796 = vpop.f32.mrb[0].mxu0
    %v1797 = vadd.f32 0.0, %v1796
    %v1798 = vpop.f32.mrb[0].mxu0
    %1799 = vdwg.mxu0
    %v1800 = vadd.f32 %v1757, %v1794
    %v1801 = vadd.f32 %v1758, %v1797
    %v1802 = vtanh.pop %v1800
    %v1803 = vtanh.pop %v1801
    %v1804 = vld [vmem:[%s1701 + $0x8] sm:$0xff]
    %v1805 = vunpack.c.l.bf16 %v1804
    %v1806 = vunpack.c.h.bf16 %v1804
    %1807 = vmatprep.subr.bf16.mxu0 0
    %1808 = vmatpush1.bf16.msra.mxu0 %v831
    %1809 = vmatprep.subr.bf16.mxu0 0
    %1810 = vmatpush1.bf16.msra.mxu0 %v832
    %1811 = vmatprep.subr.bf16.mxu0 0
    %1812 = vmatpush1.bf16.msra.mxu0 %v833
    %1813 = vmatprep.subr.bf16.mxu0 0
    %1814 = vmatpush1.bf16.msra.mxu0 %v834
    %1815 = vmatprep.subr.bf16.mxu0 0
    %1816 = vmatpush1.bf16.msra.mxu0 %v835
    %1817 = vmatprep.subr.bf16.mxu0 0
    %1818 = vmatpush1.bf16.msra.mxu0 %v836
    %1819 = vmatprep.subr.bf16.mxu0 0
    %1820 = vmatpush1.bf16.msra.mxu0 %v837
    %1821 = vmatprep.subr.bf16.mxu0 0
    %1822 = vmatpush1.bf16.msra.mxu0 %v838
    %1823 = vmatprep.subr.bf16.mxu0 0
    %1824 = vmatpush1.bf16.msra.mxu0 0
    %1825 = vmatprep.subr.bf16.mxu0 0
    %1826 = vmatpush1.bf16.msra.mxu0 0
    %1827 = vmatprep.subr.bf16.mxu0 0
    %1828 = vmatpush1.bf16.msra.mxu0 0
    %1829 = vmatprep.subr.bf16.mxu0 0
    %1830 = vmatpush1.bf16.msra.mxu0 0
    %1831 = vmatprep.subr.bf16.mxu0 0
    %1832 = vmatpush1.bf16.msra.mxu0 0
    %1833 = vmatprep.subr.bf16.mxu0 0
    %1834 = vmatpush1.bf16.msra.mxu0 0
    %1835 = vmatprep.subr.bf16.mxu0 0
    %1836 = vmatpush1.bf16.msra.mxu0 0
    %1837 = vmatprep.subr.bf16.mxu0 0
    %1838 = vmatpush1.bf16.msra.mxu0 0
    %1839 = vmatprep.mubr.bf16.mxu0 0
    %1840 = vmatmul.mubr.bf16.gmra.mrb[0].mxu0 %v1700
    %v1841 = vpop.f32.mrb[0].mxu0
    %v1842 = vadd.f32 0.0, %v1841
    %v1843 = vpop.f32.mrb[0].mxu0
    %v1844 = vpop.f32.mrb[0].mxu0
    %v1845 = vadd.f32 0.0, %v1844
    %v1846 = vpop.f32.mrb[0].mxu0
    %1847 = vdwg.mxu0
    %v1848 = vadd.f32 %v1805, %v1842
    %v1849 = vadd.f32 %v1806, %v1845
    %v1850 = vmul.f32 %v1848, 0.5
    %v1851 = vmul.f32 %v1849, 0.5
    %v1852 = vtanh.pop %v1850
    %v1853 = vtanh.pop %v1851
    %v1854 = vmul.f32 %v1852, 0.5
    %v1855 = vmul.f32 %v1853, 0.5
    %v1856 = vadd.f32 %v1854, 0.5
    %v1857 = vadd.f32 %v1855, 0.5
    %v1858 = vmul.f32 %v1856, %v1638
    %v1859 = vmul.f32 %v1857, %v1639
    %v1860 = vmul.f32 %v1754, %v1802
    %v1861 = vmul.f32 %v1755, %v1803
    %v1862 = vadd.f32 %v1858, %v1860
    %v1863 = vadd.f32 %v1859, %v1861
    %v1864 = vld [vmem:[%s1701 + $0x18] sm:$0xff]
    %v1865 = vunpack.c.l.bf16 %v1864
    %v1866 = vunpack.c.h.bf16 %v1864
    %1867 = vmatprep.subr.bf16.mxu0 0
    %1868 = vmatpush1.bf16.msra.mxu0 %v955
    %1869 = vmatprep.subr.bf16.mxu0 0
    %1870 = vmatpush1.bf16.msra.mxu0 %v956
    %1871 = vmatprep.subr.bf16.mxu0 0
    %1872 = vmatpush1.bf16.msra.mxu0 %v957
    %1873 = vmatprep.subr.bf16.mxu0 0
    %1874 = vmatpush1.bf16.msra.mxu0 %v958
    %1875 = vmatprep.subr.bf16.mxu0 0
    %1876 = vmatpush1.bf16.msra.mxu0 %v959
    %1877 = vmatprep.subr.bf16.mxu0 0
    %1878 = vmatpush1.bf16.msra.mxu0 %v960
    %1879 = vmatprep.subr.bf16.mxu0 0
    %1880 = vmatpush1.bf16.msra.mxu0 %v961
    %1881 = vmatprep.subr.bf16.mxu0 0
    %1882 = vmatpush1.bf16.msra.mxu0 %v962
    %1883 = vmatprep.subr.bf16.mxu0 0
    %1884 = vmatpush1.bf16.msra.mxu0 0
    %1885 = vmatprep.subr.bf16.mxu0 0
    %1886 = vmatpush1.bf16.msra.mxu0 0
    %1887 = vmatprep.subr.bf16.mxu0 0
    %1888 = vmatpush1.bf16.msra.mxu0 0
    %1889 = vmatprep.subr.bf16.mxu0 0
    %1890 = vmatpush1.bf16.msra.mxu0 0
    %1891 = vmatprep.subr.bf16.mxu0 0
    %1892 = vmatpush1.bf16.msra.mxu0 0
    %1893 = vmatprep.subr.bf16.mxu0 0
    %1894 = vmatpush1.bf16.msra.mxu0 0
    %1895 = vmatprep.subr.bf16.mxu0 0
    %1896 = vmatpush1.bf16.msra.mxu0 0
    %1897 = vmatprep.subr.bf16.mxu0 0
    %1898 = vmatpush1.bf16.msra.mxu0 0
    %1899 = vmatprep.mubr.bf16.mxu0 0
    %1900 = vmatmul.mubr.bf16.gmra.mrb[0].mxu0 %v1700
    %v1901 = vpop.f32.mrb[0].mxu0
    %v1902 = vadd.f32 0.0, %v1901
    %v1903 = vpop.f32.mrb[0].mxu0
    %v1904 = vpop.f32.mrb[0].mxu0
    %v1905 = vadd.f32 0.0, %v1904
    %v1906 = vpop.f32.mrb[0].mxu0
    %1907 = vdwg.mxu0
    %v1908 = vadd.f32 %v1865, %v1902
    %v1909 = vadd.f32 %v1866, %v1905
    %v1910 = vmul.f32 %v1908, 0.5
    %v1911 = vmul.f32 %v1909, 0.5
    %v1912 = vtanh.pop %v1910
    %v1913 = vtanh.pop %v1911
    %v1914 = vmul.f32 %v1912, 0.5
    %v1915 = vmul.f32 %v1913, 0.5
    %v1916 = vadd.f32 %v1914, 0.5
    %v1917 = vadd.f32 %v1915, 0.5
    %v1918 = vtanh.pop %v1862
    %v1919 = vtanh.pop %v1863
    %v1920 = vmul.f32 %v1916, %v1918
    %v1921 = vmul.f32 %v1917, %v1919
    %v1922 = vadd.f32 %v1698, %v1920
    %v1923 = vadd.f32 %v1699, %v1921
    %v1924 = vpack.c.bf16 %v1921, %v1920
    %s1925 = scalar_lea.vmem [#allocation2], 160
    %v1926 = vld [vmem:[%s1925] sm:$0xff]
    %v1927 = vunpack.c.l.bf16 %v1926
    %v1928 = vunpack.c.h.bf16 %v1926
    %1929 = vmatprep.subr.bf16.mxu0 0
    %1930 = vmatpush1.bf16.msra.mxu0 %v601
    %1931 = vmatprep.subr.bf16.mxu0 0
    %1932 = vmatpush1.bf16.msra.mxu0 %v602
    %1933 = vmatprep.subr.bf16.mxu0 0
    %1934 = vmatpush1.bf16.msra.mxu0 %v603
    %1935 = vmatprep.subr.bf16.mxu0 0
    %1936 = vmatpush1.bf16.msra.mxu0 %v604
    %1937 = vmatprep.subr.bf16.mxu0 0
    %1938 = vmatpush1.bf16.msra.mxu0 %v605
    %1939 = vmatprep.subr.bf16.mxu0 0
    %1940 = vmatpush1.bf16.msra.mxu0 %v606
    %1941 = vmatprep.subr.bf16.mxu0 0
    %1942 = vmatpush1.bf16.msra.mxu0 %v607
    %1943 = vmatprep.subr.bf16.mxu0 0
    %1944 = vmatpush1.bf16.msra.mxu0 %v608
    %1945 = vmatprep.subr.bf16.mxu0 0
    %1946 = vmatpush1.bf16.msra.mxu0 0
    %1947 = vmatprep.subr.bf16.mxu0 0
    %1948 = vmatpush1.bf16.msra.mxu0 0
    %1949 = vmatprep.subr.bf16.mxu0 0
    %1950 = vmatpush1.bf16.msra.mxu0 0
    %1951 = vmatprep.subr.bf16.mxu0 0
    %1952 = vmatpush1.bf16.msra.mxu0 0
    %1953 = vmatprep.subr.bf16.mxu0 0
    %1954 = vmatpush1.bf16.msra.mxu0 0
    %1955 = vmatprep.subr.bf16.mxu0 0
    %1956 = vmatpush1.bf16.msra.mxu0 0
    %1957 = vmatprep.subr.bf16.mxu0 0
    %1958 = vmatpush1.bf16.msra.mxu0 0
    %1959 = vmatprep.subr.bf16.mxu0 0
    %1960 = vmatpush1.bf16.msra.mxu0 0
    %1961 = vmatprep.mubr.bf16.mxu0 0
    %1962 = vmatmul.mubr.bf16.gmra.mrb[0].mxu0 %v1924
    %v1963 = vpop.f32.mrb[0].mxu0
    %v1964 = vadd.f32 0.0, %v1963
    %v1965 = vpop.f32.mrb[0].mxu0
    %v1966 = vpop.f32.mrb[0].mxu0
    %v1967 = vadd.f32 0.0, %v1966
    %v1968 = vpop.f32.mrb[0].mxu0
    %1969 = vdwg.mxu0
    %v1970 = vadd.f32 %v1927, %v1964
    %v1971 = vadd.f32 %v1928, %v1967
    %v1972 = vmul.f32 %v1970, 0.5
    %v1973 = vmul.f32 %v1971, 0.5
    %v1974 = vtanh.pop %v1972
    %v1975 = vtanh.pop %v1973
    %v1976 = vmul.f32 %v1974, 0.5
    %v1977 = vmul.f32 %v1975, 0.5
    %v1978 = vadd.f32 %v1976, 0.5
    %v1979 = vadd.f32 %v1977, 0.5
    %v1980 = vld [vmem:[%s1925 + $0x10] sm:$0xff]
    %v1981 = vunpack.c.l.bf16 %v1980
    %v1982 = vunpack.c.h.bf16 %v1980
    %1983 = vmatprep.subr.bf16.mxu0 0
    %1984 = vmatpush1.bf16.msra.mxu0 %v719
    %1985 = vmatprep.subr.bf16.mxu0 0
    %1986 = vmatpush1.bf16.msra.mxu0 %v720
    %1987 = vmatprep.subr.bf16.mxu0 0
    %1988 = vmatpush1.bf16.msra.mxu0 %v721
    %1989 = vmatprep.subr.bf16.mxu0 0
    %1990 = vmatpush1.bf16.msra.mxu0 %v722
    %1991 = vmatprep.subr.bf16.mxu0 0
    %1992 = vmatpush1.bf16.msra.mxu0 %v723
    %1993 = vmatprep.subr.bf16.mxu0 0
    %1994 = vmatpush1.bf16.msra.mxu0 %v724
    %1995 = vmatprep.subr.bf16.mxu0 0
    %1996 = vmatpush1.bf16.msra.mxu0 %v725
    %1997 = vmatprep.subr.bf16.mxu0 0
    %1998 = vmatpush1.bf16.msra.mxu0 %v726
    %1999 = vmatprep.subr.bf16.mxu0 0
    %2000 = vmatpush1.bf16.msra.mxu0 0
    %2001 = vmatprep.subr.bf16.mxu0 0
    %2002 = vmatpush1.bf16.msra.mxu0 0
    %2003 = vmatprep.subr.bf16.mxu0 0
    %2004 = vmatpush1.bf16.msra.mxu0 0
    %2005 = vmatprep.subr.bf16.mxu0 0
    %2006 = vmatpush1.bf16.msra.mxu0 0
    %2007 = vmatprep.subr.bf16.mxu0 0
    %2008 = vmatpush1.bf16.msra.mxu0 0
    %2009 = vmatprep.subr.bf16.mxu0 0
    %2010 = vmatpush1.bf16.msra.mxu0 0
    %2011 = vmatprep.subr.bf16.mxu0 0
    %2012 = vmatpush1.bf16.msra.mxu0 0
    %2013 = vmatprep.subr.bf16.mxu0 0
    %2014 = vmatpush1.bf16.msra.mxu0 0
    %2015 = vmatprep.mubr.bf16.mxu0 0
    %2016 = vmatmul.mubr.bf16.gmra.mrb[0].mxu0 %v1924
    %v2017 = vpop.f32.mrb[0].mxu0
    %v2018 = vadd.f32 0.0, %v2017
    %v2019 = vpop.f32.mrb[0].mxu0
    %v2020 = vpop.f32.mrb[0].mxu0
    %v2021 = vadd.f32 0.0, %v2020
    %v2022 = vpop.f32.mrb[0].mxu0
    %2023 = vdwg.mxu0
    %v2024 = vadd.f32 %v1981, %v2018
    %v2025 = vadd.f32 %v1982, %v2021
    %v2026 = vtanh.pop %v2024
    %v2027 = vtanh.pop %v2025
    %v2028 = vld [vmem:[%s1925 + $0x8] sm:$0xff]
    %v2029 = vunpack.c.l.bf16 %v2028
    %v2030 = vunpack.c.h.bf16 %v2028
    %2031 = vmatprep.subr.bf16.mxu0 0
    %2032 = vmatpush1.bf16.msra.mxu0 %v831
    %2033 = vmatprep.subr.bf16.mxu0 0
    %2034 = vmatpush1.bf16.msra.mxu0 %v832
    %2035 = vmatprep.subr.bf16.mxu0 0
    %2036 = vmatpush1.bf16.msra.mxu0 %v833
    %2037 = vmatprep.subr.bf16.mxu0 0
    %2038 = vmatpush1.bf16.msra.mxu0 %v834
    %2039 = vmatprep.subr.bf16.mxu0 0
    %2040 = vmatpush1.bf16.msra.mxu0 %v835
    %2041 = vmatprep.subr.bf16.mxu0 0
    %2042 = vmatpush1.bf16.msra.mxu0 %v836
    %2043 = vmatprep.subr.bf16.mxu0 0
    %2044 = vmatpush1.bf16.msra.mxu0 %v837
    %2045 = vmatprep.subr.bf16.mxu0 0
    %2046 = vmatpush1.bf16.msra.mxu0 %v838
    %2047 = vmatprep.subr.bf16.mxu0 0
    %2048 = vmatpush1.bf16.msra.mxu0 0
    %2049 = vmatprep.subr.bf16.mxu0 0
    %2050 = vmatpush1.bf16.msra.mxu0 0
    %2051 = vmatprep.subr.bf16.mxu0 0
    %2052 = vmatpush1.bf16.msra.mxu0 0
    %2053 = vmatprep.subr.bf16.mxu0 0
    %2054 = vmatpush1.bf16.msra.mxu0 0
    %2055 = vmatprep.subr.bf16.mxu0 0
    %2056 = vmatpush1.bf16.msra.mxu0 0
    %2057 = vmatprep.subr.bf16.mxu0 0
    %2058 = vmatpush1.bf16.msra.mxu0 0
    %2059 = vmatprep.subr.bf16.mxu0 0
    %2060 = vmatpush1.bf16.msra.mxu0 0
    %2061 = vmatprep.subr.bf16.mxu0 0
    %2062 = vmatpush1.bf16.msra.mxu0 0
    %2063 = vmatprep.mubr.bf16.mxu0 0
    %2064 = vmatmul.mubr.bf16.gmra.mrb[0].mxu0 %v1924
    %v2065 = vpop.f32.mrb[0].mxu0
    %v2066 = vadd.f32 0.0, %v2065
    %v2067 = vpop.f32.mrb[0].mxu0
    %v2068 = vpop.f32.mrb[0].mxu0
    %v2069 = vadd.f32 0.0, %v2068
    %v2070 = vpop.f32.mrb[0].mxu0
    %2071 = vdwg.mxu0
    %v2072 = vadd.f32 %v2029, %v2066
    %v2073 = vadd.f32 %v2030, %v2069
    %v2074 = vmul.f32 %v2072, 0.5
    %v2075 = vmul.f32 %v2073, 0.5
    %v2076 = vtanh.pop %v2074
    %v2077 = vtanh.pop %v2075
    %v2078 = vmul.f32 %v2076, 0.5
    %v2079 = vmul.f32 %v2077, 0.5
    %v2080 = vadd.f32 %v2078, 0.5
    %v2081 = vadd.f32 %v2079, 0.5
    %v2082 = vmul.f32 %v2080, %v1862
    %v2083 = vmul.f32 %v2081, %v1863
    %v2084 = vmul.f32 %v1978, %v2026
    %v2085 = vmul.f32 %v1979, %v2027
    %v2086 = vadd.f32 %v2082, %v2084
    %v2087 = vadd.f32 %v2083, %v2085
    %v2088 = vld [vmem:[%s1925 + $0x18] sm:$0xff]
    %v2089 = vunpack.c.l.bf16 %v2088
    %v2090 = vunpack.c.h.bf16 %v2088
    %2091 = vmatprep.subr.bf16.mxu0 0
    %2092 = vmatpush1.bf16.msra.mxu0 %v955
    %2093 = vmatprep.subr.bf16.mxu0 0
    %2094 = vmatpush1.bf16.msra.mxu0 %v956
    %2095 = vmatprep.subr.bf16.mxu0 0
    %2096 = vmatpush1.bf16.msra.mxu0 %v957
    %2097 = vmatprep.subr.bf16.mxu0 0
    %2098 = vmatpush1.bf16.msra.mxu0 %v958
    %2099 = vmatprep.subr.bf16.mxu0 0
    %2100 = vmatpush1.bf16.msra.mxu0 %v959
    %2101 = vmatprep.subr.bf16.mxu0 0
    %2102 = vmatpush1.bf16.msra.mxu0 %v960
    %2103 = vmatprep.subr.bf16.mxu0 0
    %2104 = vmatpush1.bf16.msra.mxu0 %v961
    %2105 = vmatprep.subr.bf16.mxu0 0
    %2106 = vmatpush1.bf16.msra.mxu0 %v962
    %2107 = vmatprep.subr.bf16.mxu0 0
    %2108 = vmatpush1.bf16.msra.mxu0 0
    %2109 = vmatprep.subr.bf16.mxu0 0
    %2110 = vmatpush1.bf16.msra.mxu0 0
    %2111 = vmatprep.subr.bf16.mxu0 0
    %2112 = vmatpush1.bf16.msra.mxu0 0
    %2113 = vmatprep.subr.bf16.mxu0 0
    %2114 = vmatpush1.bf16.msra.mxu0 0
    %2115 = vmatprep.subr.bf16.mxu0 0
    %2116 = vmatpush1.bf16.msra.mxu0 0
    %2117 = vmatprep.subr.bf16.mxu0 0
    %2118 = vmatpush1.bf16.msra.mxu0 0
    %2119 = vmatprep.subr.bf16.mxu0 0
    %2120 = vmatpush1.bf16.msra.mxu0 0
    %2121 = vmatprep.subr.bf16.mxu0 0
    %2122 = vmatpush1.bf16.msra.mxu0 0
    %2123 = vmatprep.mubr.bf16.mxu0 0
    %2124 = vmatmul.mubr.bf16.gmra.mrb[0].mxu0 %v1924
    %v2125 = vpop.f32.mrb[0].mxu0
    %v2126 = vadd.f32 0.0, %v2125
    %v2127 = vpop.f32.mrb[0].mxu0
    %v2128 = vpop.f32.mrb[0].mxu0
    %v2129 = vadd.f32 0.0, %v2128
    %v2130 = vpop.f32.mrb[0].mxu0
    %2131 = vdwg.mxu0
    %v2132 = vadd.f32 %v2089, %v2126
    %v2133 = vadd.f32 %v2090, %v2129
    %v2134 = vmul.f32 %v2132, 0.5
    %v2135 = vmul.f32 %v2133, 0.5
    %v2136 = vtanh.pop %v2134
    %v2137 = vtanh.pop %v2135
    %v2138 = vmul.f32 %v2136, 0.5
    %v2139 = vmul.f32 %v2137, 0.5
    %v2140 = vadd.f32 %v2138, 0.5
    %v2141 = vadd.f32 %v2139, 0.5
    %v2142 = vtanh.pop %v2086
    %v2143 = vtanh.pop %v2087
    %v2144 = vmul.f32 %v2140, %v2142
    %v2145 = vmul.f32 %v2141, %v2143
    %v2146 = vadd.f32 %v1922, %v2144
    %v2147 = vadd.f32 %v1923, %v2145
    %v2148 = vpack.c.bf16 %v2145, %v2144
    %s2149 = scalar_lea.vmem [#allocation2], 192
    %v2150 = vld [vmem:[%s2149] sm:$0xff]
    %v2151 = vunpack.c.l.bf16 %v2150
    %v2152 = vunpack.c.h.bf16 %v2150
    %2153 = vmatprep.subr.bf16.mxu0 0
    %2154 = vmatpush1.bf16.msra.mxu0 %v601
    %2155 = vmatprep.subr.bf16.mxu0 0
    %2156 = vmatpush1.bf16.msra.mxu0 %v602
    %2157 = vmatprep.subr.bf16.mxu0 0
    %2158 = vmatpush1.bf16.msra.mxu0 %v603
    %2159 = vmatprep.subr.bf16.mxu0 0
    %2160 = vmatpush1.bf16.msra.mxu0 %v604
    %2161 = vmatprep.subr.bf16.mxu0 0
    %2162 = vmatpush1.bf16.msra.mxu0 %v605
    %2163 = vmatprep.subr.bf16.mxu0 0
    %2164 = vmatpush1.bf16.msra.mxu0 %v606
    %2165 = vmatprep.subr.bf16.mxu0 0
    %2166 = vmatpush1.bf16.msra.mxu0 %v607
    %2167 = vmatprep.subr.bf16.mxu0 0
    %2168 = vmatpush1.bf16.msra.mxu0 %v608
    %2169 = vmatprep.subr.bf16.mxu0 0
    %2170 = vmatpush1.bf16.msra.mxu0 0
    %2171 = vmatprep.subr.bf16.mxu0 0
    %2172 = vmatpush1.bf16.msra.mxu0 0
    %2173 = vmatprep.subr.bf16.mxu0 0
    %2174 = vmatpush1.bf16.msra.mxu0 0
    %2175 = vmatprep.subr.bf16.mxu0 0
    %2176 = vmatpush1.bf16.msra.mxu0 0
    %2177 = vmatprep.subr.bf16.mxu0 0
    %2178 = vmatpush1.bf16.msra.mxu0 0
    %2179 = vmatprep.subr.bf16.mxu0 0
    %2180 = vmatpush1.bf16.msra.mxu0 0
    %2181 = vmatprep.subr.bf16.mxu0 0
    %2182 = vmatpush1.bf16.msra.mxu0 0
    %2183 = vmatprep.subr.bf16.mxu0 0
    %2184 = vmatpush1.bf16.msra.mxu0 0
    %2185 = vmatprep.mubr.bf16.mxu0 0
    %2186 = vmatmul.mubr.bf16.gmra.mrb[0].mxu0 %v2148
    %v2187 = vpop.f32.mrb[0].mxu0
    %v2188 = vadd.f32 0.0, %v2187
    %v2189 = vpop.f32.mrb[0].mxu0
    %v2190 = vpop.f32.mrb[0].mxu0
    %v2191 = vadd.f32 0.0, %v2190
    %v2192 = vpop.f32.mrb[0].mxu0
    %2193 = vdwg.mxu0
    %v2194 = vadd.f32 %v2151, %v2188
    %v2195 = vadd.f32 %v2152, %v2191
    %v2196 = vmul.f32 %v2194, 0.5
    %v2197 = vmul.f32 %v2195, 0.5
    %v2198 = vtanh.pop %v2196
    %v2199 = vtanh.pop %v2197
    %v2200 = vmul.f32 %v2198, 0.5
    %v2201 = vmul.f32 %v2199, 0.5
    %v2202 = vadd.f32 %v2200, 0.5
    %v2203 = vadd.f32 %v2201, 0.5
    %v2204 = vld [vmem:[%s2149 + $0x10] sm:$0xff]
    %v2205 = vunpack.c.l.bf16 %v2204
    %v2206 = vunpack.c.h.bf16 %v2204
    %2207 = vmatprep.subr.bf16.mxu0 0
    %2208 = vmatpush1.bf16.msra.mxu0 %v719
    %2209 = vmatprep.subr.bf16.mxu0 0
    %2210 = vmatpush1.bf16.msra.mxu0 %v720
    %2211 = vmatprep.subr.bf16.mxu0 0
    %2212 = vmatpush1.bf16.msra.mxu0 %v721
    %2213 = vmatprep.subr.bf16.mxu0 0
    %2214 = vmatpush1.bf16.msra.mxu0 %v722
    %2215 = vmatprep.subr.bf16.mxu0 0
    %2216 = vmatpush1.bf16.msra.mxu0 %v723
    %2217 = vmatprep.subr.bf16.mxu0 0
    %2218 = vmatpush1.bf16.msra.mxu0 %v724
    %2219 = vmatprep.subr.bf16.mxu0 0
    %2220 = vmatpush1.bf16.msra.mxu0 %v725
    %2221 = vmatprep.subr.bf16.mxu0 0
    %2222 = vmatpush1.bf16.msra.mxu0 %v726
    %2223 = vmatprep.subr.bf16.mxu0 0
    %2224 = vmatpush1.bf16.msra.mxu0 0
    %2225 = vmatprep.subr.bf16.mxu0 0
    %2226 = vmatpush1.bf16.msra.mxu0 0
    %2227 = vmatprep.subr.bf16.mxu0 0
    %2228 = vmatpush1.bf16.msra.mxu0 0
    %2229 = vmatprep.subr.bf16.mxu0 0
    %2230 = vmatpush1.bf16.msra.mxu0 0
    %2231 = vmatprep.subr.bf16.mxu0 0
    %2232 = vmatpush1.bf16.msra.mxu0 0
    %2233 = vmatprep.subr.bf16.mxu0 0
    %2234 = vmatpush1.bf16.msra.mxu0 0
    %2235 = vmatprep.subr.bf16.mxu0 0
    %2236 = vmatpush1.bf16.msra.mxu0 0
    %2237 = vmatprep.subr.bf16.mxu0 0
    %2238 = vmatpush1.bf16.msra.mxu0 0
    %2239 = vmatprep.mubr.bf16.mxu0 0
    %2240 = vmatmul.mubr.bf16.gmra.mrb[0].mxu0 %v2148
    %v2241 = vpop.f32.mrb[0].mxu0
    %v2242 = vadd.f32 0.0, %v2241
    %v2243 = vpop.f32.mrb[0].mxu0
    %v2244 = vpop.f32.mrb[0].mxu0
    %v2245 = vadd.f32 0.0, %v2244
    %v2246 = vpop.f32.mrb[0].mxu0
    %2247 = vdwg.mxu0
    %v2248 = vadd.f32 %v2205, %v2242
    %v2249 = vadd.f32 %v2206, %v2245
    %v2250 = vtanh.pop %v2248
    %v2251 = vtanh.pop %v2249
    %v2252 = vld [vmem:[%s2149 + $0x8] sm:$0xff]
    %v2253 = vunpack.c.l.bf16 %v2252
    %v2254 = vunpack.c.h.bf16 %v2252
    %2255 = vmatprep.subr.bf16.mxu0 0
    %2256 = vmatpush1.bf16.msra.mxu0 %v831
    %2257 = vmatprep.subr.bf16.mxu0 0
    %2258 = vmatpush1.bf16.msra.mxu0 %v832
    %2259 = vmatprep.subr.bf16.mxu0 0
    %2260 = vmatpush1.bf16.msra.mxu0 %v833
    %2261 = vmatprep.subr.bf16.mxu0 0
    %2262 = vmatpush1.bf16.msra.mxu0 %v834
    %2263 = vmatprep.subr.bf16.mxu0 0
    %2264 = vmatpush1.bf16.msra.mxu0 %v835
    %2265 = vmatprep.subr.bf16.mxu0 0
    %2266 = vmatpush1.bf16.msra.mxu0 %v836
    %2267 = vmatprep.subr.bf16.mxu0 0
    %2268 = vmatpush1.bf16.msra.mxu0 %v837
    %2269 = vmatprep.subr.bf16.mxu0 0
    %2270 = vmatpush1.bf16.msra.mxu0 %v838
    %2271 = vmatprep.subr.bf16.mxu0 0
    %2272 = vmatpush1.bf16.msra.mxu0 0
    %2273 = vmatprep.subr.bf16.mxu0 0
    %2274 = vmatpush1.bf16.msra.mxu0 0
    %2275 = vmatprep.subr.bf16.mxu0 0
    %2276 = vmatpush1.bf16.msra.mxu0 0
    %2277 = vmatprep.subr.bf16.mxu0 0
    %2278 = vmatpush1.bf16.msra.mxu0 0
    %2279 = vmatprep.subr.bf16.mxu0 0
    %2280 = vmatpush1.bf16.msra.mxu0 0
    %2281 = vmatprep.subr.bf16.mxu0 0
    %2282 = vmatpush1.bf16.msra.mxu0 0
    %2283 = vmatprep.subr.bf16.mxu0 0
    %2284 = vmatpush1.bf16.msra.mxu0 0
    %2285 = vmatprep.subr.bf16.mxu0 0
    %2286 = vmatpush1.bf16.msra.mxu0 0
    %2287 = vmatprep.mubr.bf16.mxu0 0
    %2288 = vmatmul.mubr.bf16.gmra.mrb[0].mxu0 %v2148
    %v2289 = vpop.f32.mrb[0].mxu0
    %v2290 = vadd.f32 0.0, %v2289
    %v2291 = vpop.f32.mrb[0].mxu0
    %v2292 = vpop.f32.mrb[0].mxu0
    %v2293 = vadd.f32 0.0, %v2292
    %v2294 = vpop.f32.mrb[0].mxu0
    %2295 = vdwg.mxu0
    %v2296 = vadd.f32 %v2253, %v2290
    %v2297 = vadd.f32 %v2254, %v2293
    %v2298 = vmul.f32 %v2296, 0.5
    %v2299 = vmul.f32 %v2297, 0.5
    %v2300 = vtanh.pop %v2298
    %v2301 = vtanh.pop %v2299
    %v2302 = vmul.f32 %v2300, 0.5
    %v2303 = vmul.f32 %v2301, 0.5
    %v2304 = vadd.f32 %v2302, 0.5
    %v2305 = vadd.f32 %v2303, 0.5
    %v2306 = vmul.f32 %v2304, %v2086
    %v2307 = vmul.f32 %v2305, %v2087
    %v2308 = vmul.f32 %v2202, %v2250
    %v2309 = vmul.f32 %v2203, %v2251
    %v2310 = vadd.f32 %v2306, %v2308
    %v2311 = vadd.f32 %v2307, %v2309
    %v2312 = vld [vmem:[%s2149 + $0x18] sm:$0xff]
    %v2313 = vunpack.c.l.bf16 %v2312
    %v2314 = vunpack.c.h.bf16 %v2312
    %2315 = vmatprep.subr.bf16.mxu0 0
    %2316 = vmatpush1.bf16.msra.mxu0 %v955
    %2317 = vmatprep.subr.bf16.mxu0 0
    %2318 = vmatpush1.bf16.msra.mxu0 %v956
    %2319 = vmatprep.subr.bf16.mxu0 0
    %2320 = vmatpush1.bf16.msra.mxu0 %v957
    %2321 = vmatprep.subr.bf16.mxu0 0
    %2322 = vmatpush1.bf16.msra.mxu0 %v958
    %2323 = vmatprep.subr.bf16.mxu0 0
    %2324 = vmatpush1.bf16.msra.mxu0 %v959
    %2325 = vmatprep.subr.bf16.mxu0 0
    %2326 = vmatpush1.bf16.msra.mxu0 %v960
    %2327 = vmatprep.subr.bf16.mxu0 0
    %2328 = vmatpush1.bf16.msra.mxu0 %v961
    %2329 = vmatprep.subr.bf16.mxu0 0
    %2330 = vmatpush1.bf16.msra.mxu0 %v962
    %2331 = vmatprep.subr.bf16.mxu0 0
    %2332 = vmatpush1.bf16.msra.mxu0 0
    %2333 = vmatprep.subr.bf16.mxu0 0
    %2334 = vmatpush1.bf16.msra.mxu0 0
    %2335 = vmatprep.subr.bf16.mxu0 0
    %2336 = vmatpush1.bf16.msra.mxu0 0
    %2337 = vmatprep.subr.bf16.mxu0 0
    %2338 = vmatpush1.bf16.msra.mxu0 0
    %2339 = vmatprep.subr.bf16.mxu0 0
    %2340 = vmatpush1.bf16.msra.mxu0 0
    %2341 = vmatprep.subr.bf16.mxu0 0
    %2342 = vmatpush1.bf16.msra.mxu0 0
    %2343 = vmatprep.subr.bf16.mxu0 0
    %2344 = vmatpush1.bf16.msra.mxu0 0
    %2345 = vmatprep.subr.bf16.mxu0 0
    %2346 = vmatpush1.bf16.msra.mxu0 0
    %2347 = vmatprep.mubr.bf16.mxu0 0
    %2348 = vmatmul.mubr.bf16.gmra.mrb[0].mxu0 %v2148
    %v2349 = vpop.f32.mrb[0].mxu0
    %v2350 = vadd.f32 0.0, %v2349
    %v2351 = vpop.f32.mrb[0].mxu0
    %v2352 = vpop.f32.mrb[0].mxu0
    %v2353 = vadd.f32 0.0, %v2352
    %v2354 = vpop.f32.mrb[0].mxu0
    %2355 = vdwg.mxu0
    %v2356 = vadd.f32 %v2313, %v2350
    %v2357 = vadd.f32 %v2314, %v2353
    %v2358 = vmul.f32 %v2356, 0.5
    %v2359 = vmul.f32 %v2357, 0.5
    %v2360 = vtanh.pop %v2358
    %v2361 = vtanh.pop %v2359
    %v2362 = vmul.f32 %v2360, 0.5
    %v2363 = vmul.f32 %v2361, 0.5
    %v2364 = vadd.f32 %v2362, 0.5
    %v2365 = vadd.f32 %v2363, 0.5
    %v2366 = vtanh.pop %v2310
    %v2367 = vtanh.pop %v2311
    %v2368 = vmul.f32 %v2364, %v2366
    %v2369 = vmul.f32 %v2365, %v2367
    %v2370 = vadd.f32 %v2146, %v2368
    %v2371 = vadd.f32 %v2147, %v2369
    %v2372 = vpack.c.bf16 %v2369, %v2368
    %s2373 = scalar_lea.vmem [#allocation2], 224
    %v2374 = vld [vmem:[%s2373] sm:$0xff]
    %v2375 = vunpack.c.l.bf16 %v2374
    %v2376 = vunpack.c.h.bf16 %v2374
    %2377 = vmatprep.subr.bf16.mxu0 0
    %2378 = vmatpush1.bf16.msra.mxu0 %v601
    %2379 = vmatprep.subr.bf16.mxu0 0
    %2380 = vmatpush1.bf16.msra.mxu0 %v602
    %2381 = vmatprep.subr.bf16.mxu0 0
    %2382 = vmatpush1.bf16.msra.mxu0 %v603
    %2383 = vmatprep.subr.bf16.mxu0 0
    %2384 = vmatpush1.bf16.msra.mxu0 %v604
    %2385 = vmatprep.subr.bf16.mxu0 0
    %2386 = vmatpush1.bf16.msra.mxu0 %v605
    %2387 = vmatprep.subr.bf16.mxu0 0
    %2388 = vmatpush1.bf16.msra.mxu0 %v606
    %2389 = vmatprep.subr.bf16.mxu0 0
    %2390 = vmatpush1.bf16.msra.mxu0 %v607
    %2391 = vmatprep.subr.bf16.mxu0 0
    %2392 = vmatpush1.bf16.msra.mxu0 %v608
    %2393 = vmatprep.subr.bf16.mxu0 0
    %2394 = vmatpush1.bf16.msra.mxu0 0
    %2395 = vmatprep.subr.bf16.mxu0 0
    %2396 = vmatpush1.bf16.msra.mxu0 0
    %2397 = vmatprep.subr.bf16.mxu0 0
    %2398 = vmatpush1.bf16.msra.mxu0 0
    %2399 = vmatprep.subr.bf16.mxu0 0
    %2400 = vmatpush1.bf16.msra.mxu0 0
    %2401 = vmatprep.subr.bf16.mxu0 0
    %2402 = vmatpush1.bf16.msra.mxu0 0
    %2403 = vmatprep.subr.bf16.mxu0 0
    %2404 = vmatpush1.bf16.msra.mxu0 0
    %2405 = vmatprep.subr.bf16.mxu0 0
    %2406 = vmatpush1.bf16.msra.mxu0 0
    %2407 = vmatprep.subr.bf16.mxu0 0
    %2408 = vmatpush1.bf16.msra.mxu0 0
    %2409 = vmatprep.mubr.bf16.mxu0 0
    %2410 = vmatmul.mubr.bf16.gmra.mrb[0].mxu0 %v2372
    %v2411 = vpop.f32.mrb[0].mxu0
    %v2412 = vadd.f32 0.0, %v2411
    %v2413 = vpop.f32.mrb[0].mxu0
    %v2414 = vpop.f32.mrb[0].mxu0
    %v2415 = vadd.f32 0.0, %v2414
    %v2416 = vpop.f32.mrb[0].mxu0
    %2417 = vdwg.mxu0
    %v2418 = vadd.f32 %v2375, %v2412
    %v2419 = vadd.f32 %v2376, %v2415
    %v2420 = vmul.f32 %v2418, 0.5
    %v2421 = vmul.f32 %v2419, 0.5
    %v2422 = vtanh.pop %v2420
    %v2423 = vtanh.pop %v2421
    %v2424 = vmul.f32 %v2422, 0.5
    %v2425 = vmul.f32 %v2423, 0.5
    %v2426 = vadd.f32 %v2424, 0.5
    %v2427 = vadd.f32 %v2425, 0.5
    %v2428 = vld [vmem:[%s2373 + $0x10] sm:$0xff]
    %v2429 = vunpack.c.l.bf16 %v2428
    %v2430 = vunpack.c.h.bf16 %v2428
    %2431 = vmatprep.subr.bf16.mxu0 0
    %2432 = vmatpush1.bf16.msra.mxu0 %v719
    %2433 = vmatprep.subr.bf16.mxu0 0
    %2434 = vmatpush1.bf16.msra.mxu0 %v720
    %2435 = vmatprep.subr.bf16.mxu0 0
    %2436 = vmatpush1.bf16.msra.mxu0 %v721
    %2437 = vmatprep.subr.bf16.mxu0 0
    %2438 = vmatpush1.bf16.msra.mxu0 %v722
    %2439 = vmatprep.subr.bf16.mxu0 0
    %2440 = vmatpush1.bf16.msra.mxu0 %v723
    %2441 = vmatprep.subr.bf16.mxu0 0
    %2442 = vmatpush1.bf16.msra.mxu0 %v724
    %2443 = vmatprep.subr.bf16.mxu0 0
    %2444 = vmatpush1.bf16.msra.mxu0 %v725
    %2445 = vmatprep.subr.bf16.mxu0 0
    %2446 = vmatpush1.bf16.msra.mxu0 %v726
    %2447 = vmatprep.subr.bf16.mxu0 0
    %2448 = vmatpush1.bf16.msra.mxu0 0
    %2449 = vmatprep.subr.bf16.mxu0 0
    %2450 = vmatpush1.bf16.msra.mxu0 0
    %2451 = vmatprep.subr.bf16.mxu0 0
    %2452 = vmatpush1.bf16.msra.mxu0 0
    %2453 = vmatprep.subr.bf16.mxu0 0
    %2454 = vmatpush1.bf16.msra.mxu0 0
    %2455 = vmatprep.subr.bf16.mxu0 0
    %2456 = vmatpush1.bf16.msra.mxu0 0
    %2457 = vmatprep.subr.bf16.mxu0 0
    %2458 = vmatpush1.bf16.msra.mxu0 0
    %2459 = vmatprep.subr.bf16.mxu0 0
    %2460 = vmatpush1.bf16.msra.mxu0 0
    %2461 = vmatprep.subr.bf16.mxu0 0
    %2462 = vmatpush1.bf16.msra.mxu0 0
    %2463 = vmatprep.mubr.bf16.mxu0 0
    %2464 = vmatmul.mubr.bf16.gmra.mrb[0].mxu0 %v2372
    %v2465 = vpop.f32.mrb[0].mxu0
    %v2466 = vadd.f32 0.0, %v2465
    %v2467 = vpop.f32.mrb[0].mxu0
    %v2468 = vpop.f32.mrb[0].mxu0
    %v2469 = vadd.f32 0.0, %v2468
    %v2470 = vpop.f32.mrb[0].mxu0
    %2471 = vdwg.mxu0
    %v2472 = vadd.f32 %v2429, %v2466
    %v2473 = vadd.f32 %v2430, %v2469
    %v2474 = vtanh.pop %v2472
    %v2475 = vtanh.pop %v2473
    %v2476 = vld [vmem:[%s2373 + $0x8] sm:$0xff]
    %v2477 = vunpack.c.l.bf16 %v2476
    %v2478 = vunpack.c.h.bf16 %v2476
    %2479 = vmatprep.subr.bf16.mxu0 0
    %2480 = vmatpush1.bf16.msra.mxu0 %v831
    %2481 = vmatprep.subr.bf16.mxu0 0
    %2482 = vmatpush1.bf16.msra.mxu0 %v832
    %2483 = vmatprep.subr.bf16.mxu0 0
    %2484 = vmatpush1.bf16.msra.mxu0 %v833
    %2485 = vmatprep.subr.bf16.mxu0 0
    %2486 = vmatpush1.bf16.msra.mxu0 %v834
    %2487 = vmatprep.subr.bf16.mxu0 0
    %2488 = vmatpush1.bf16.msra.mxu0 %v835
    %2489 = vmatprep.subr.bf16.mxu0 0
    %2490 = vmatpush1.bf16.msra.mxu0 %v836
    %2491 = vmatprep.subr.bf16.mxu0 0
    %2492 = vmatpush1.bf16.msra.mxu0 %v837
    %2493 = vmatprep.subr.bf16.mxu0 0
    %2494 = vmatpush1.bf16.msra.mxu0 %v838
    %2495 = vmatprep.subr.bf16.mxu0 0
    %2496 = vmatpush1.bf16.msra.mxu0 0
    %2497 = vmatprep.subr.bf16.mxu0 0
    %2498 = vmatpush1.bf16.msra.mxu0 0
    %2499 = vmatprep.subr.bf16.mxu0 0
    %2500 = vmatpush1.bf16.msra.mxu0 0
    %2501 = vmatprep.subr.bf16.mxu0 0
    %2502 = vmatpush1.bf16.msra.mxu0 0
    %2503 = vmatprep.subr.bf16.mxu0 0
    %2504 = vmatpush1.bf16.msra.mxu0 0
    %2505 = vmatprep.subr.bf16.mxu0 0
    %2506 = vmatpush1.bf16.msra.mxu0 0
    %2507 = vmatprep.subr.bf16.mxu0 0
    %2508 = vmatpush1.bf16.msra.mxu0 0
    %2509 = vmatprep.subr.bf16.mxu0 0
    %2510 = vmatpush1.bf16.msra.mxu0 0
    %2511 = vmatprep.mubr.bf16.mxu0 0
    %2512 = vmatmul.mubr.bf16.gmra.mrb[0].mxu0 %v2372
    %v2513 = vpop.f32.mrb[0].mxu0
    %v2514 = vadd.f32 0.0, %v2513
    %v2515 = vpop.f32.mrb[0].mxu0
    %v2516 = vpop.f32.mrb[0].mxu0
    %v2517 = vadd.f32 0.0, %v2516
    %v2518 = vpop.f32.mrb[0].mxu0
    %2519 = vdwg.mxu0
    %v2520 = vadd.f32 %v2477, %v2514
    %v2521 = vadd.f32 %v2478, %v2517
    %v2522 = vmul.f32 %v2520, 0.5
    %v2523 = vmul.f32 %v2521, 0.5
    %v2524 = vtanh.pop %v2522
    %v2525 = vtanh.pop %v2523
    %v2526 = vmul.f32 %v2524, 0.5
    %v2527 = vmul.f32 %v2525, 0.5
    %v2528 = vadd.f32 %v2526, 0.5
    %v2529 = vadd.f32 %v2527, 0.5
    %v2530 = vmul.f32 %v2528, %v2310
    %v2531 = vmul.f32 %v2529, %v2311
    %v2532 = vmul.f32 %v2426, %v2474
    %v2533 = vmul.f32 %v2427, %v2475
    %v2534 = vadd.f32 %v2530, %v2532
    %v2535 = vadd.f32 %v2531, %v2533
    %v2536 = vld [vmem:[%s2373 + $0x18] sm:$0xff]
    %v2537 = vunpack.c.l.bf16 %v2536
    %v2538 = vunpack.c.h.bf16 %v2536
    %2539 = vmatprep.subr.bf16.mxu0 0
    %2540 = vmatpush1.bf16.msra.mxu0 %v955
    %2541 = vmatprep.subr.bf16.mxu0 0
    %2542 = vmatpush1.bf16.msra.mxu0 %v956
    %2543 = vmatprep.subr.bf16.mxu0 0
    %2544 = vmatpush1.bf16.msra.mxu0 %v957
    %2545 = vmatprep.subr.bf16.mxu0 0
    %2546 = vmatpush1.bf16.msra.mxu0 %v958
    %2547 = vmatprep.subr.bf16.mxu0 0
    %2548 = vmatpush1.bf16.msra.mxu0 %v959
    %2549 = vmatprep.subr.bf16.mxu0 0
    %2550 = vmatpush1.bf16.msra.mxu0 %v960
    %2551 = vmatprep.subr.bf16.mxu0 0
    %2552 = vmatpush1.bf16.msra.mxu0 %v961
    %2553 = vmatprep.subr.bf16.mxu0 0
    %2554 = vmatpush1.bf16.msra.mxu0 %v962
    %2555 = vmatprep.subr.bf16.mxu0 0
    %2556 = vmatpush1.bf16.msra.mxu0 0
    %2557 = vmatprep.subr.bf16.mxu0 0
    %2558 = vmatpush1.bf16.msra.mxu0 0
    %2559 = vmatprep.subr.bf16.mxu0 0
    %2560 = vmatpush1.bf16.msra.mxu0 0
    %2561 = vmatprep.subr.bf16.mxu0 0
    %2562 = vmatpush1.bf16.msra.mxu0 0
    %2563 = vmatprep.subr.bf16.mxu0 0
    %2564 = vmatpush1.bf16.msra.mxu0 0
    %2565 = vmatprep.subr.bf16.mxu0 0
    %2566 = vmatpush1.bf16.msra.mxu0 0
    %2567 = vmatprep.subr.bf16.mxu0 0
    %2568 = vmatpush1.bf16.msra.mxu0 0
    %2569 = vmatprep.subr.bf16.mxu0 0
    %2570 = vmatpush1.bf16.msra.mxu0 0
    %2571 = vmatprep.mubr.bf16.mxu0 0
    %2572 = vmatmul.mubr.bf16.gmra.mrb[0].mxu0 %v2372
    %v2573 = vpop.f32.mrb[0].mxu0
    %v2574 = vadd.f32 0.0, %v2573
    %v2575 = vpop.f32.mrb[0].mxu0
    %v2576 = vpop.f32.mrb[0].mxu0
    %v2577 = vadd.f32 0.0, %v2576
    %v2578 = vpop.f32.mrb[0].mxu0
    %2579 = vdwg.mxu0
    %v2580 = vadd.f32 %v2537, %v2574
    %v2581 = vadd.f32 %v2538, %v2577
    %v2582 = vmul.f32 %v2580, 0.5
    %v2583 = vmul.f32 %v2581, 0.5
    %v2584 = vtanh.pop %v2582
    %v2585 = vtanh.pop %v2583
    %v2586 = vmul.f32 %v2584, 0.5
    %v2587 = vmul.f32 %v2585, 0.5
    %v2588 = vadd.f32 %v2586, 0.5
    %v2589 = vadd.f32 %v2587, 0.5
    %v2590 = vtanh.pop %v2534
    %v2591 = vtanh.pop %v2535
    %v2592 = vmul.f32 %v2588, %v2590
    %v2593 = vmul.f32 %v2589, %v2591
    %v2594 = vadd.f32 %v2370, %v2592
    %v2595 = vadd.f32 %v2371, %v2593
    %v2596 = vpack.c.bf16 %v2593, %v2592
    %2597 = vst [vmem:[#allocation3] sm:$0xff] %v2596
    %2598 = vst [vmem:[#allocation4] sm:$0xff] %v2534
    %2599 = vst [vmem:[#allocation4 + $0x8] sm:$0xff] %v2535
    %2600 = vst [vmem:[#allocation5] sm:$0xff] %v2594
    %2601 = vst [vmem:[#allocation5 + $0x8] sm:$0xff] %v2595
    // Predicated region
    $region70: #{tpu_custom_call.1} parent=1 // pred_check
      %p2602 = pneg %p119
    $region71: #{tpu_custom_call.1} parent=1 // pred_check_branch
      %2604 = sbr.rel (%p2602) target = $region73
    $region72: #{tpu_custom_call.1} parent=1 // pred_region
      %v2605 = vpack.c.bf16 %v2595, %v2594
      %v2606 = vld [vmem:[#allocation12] sm:$0xf]
      %v2607 = vld [vmem:[#allocation12 + $0x4] sm:$0xf]
      %v2608 = vld [vmem:[#allocation12 + $0x8] sm:$0xf]
      %v2609 = vld [vmem:[#allocation12 + $0xc] sm:$0xf]
      %v2610 = vld [vmem:[#allocation12 + $0x10] sm:$0xf]
      %v2611 = vld [vmem:[#allocation12 + $0x14] sm:$0xf]
      %v2612 = vld [vmem:[#allocation12 + $0x18] sm:$0xf]
      %v2613 = vld [vmem:[#allocation12 + $0x1c] sm:$0xf]
      %v2614 = vld [vmem:[#allocation12 + $0x20] sm:$0xf]
      %v2615 = vld [vmem:[#allocation12 + $0x24] sm:$0xf]
      %v2616 = vld [vmem:[#allocation12 + $0x28] sm:$0xf]
      %v2617 = vld [vmem:[#allocation12 + $0x2c] sm:$0xf]
      %v2618 = vld [vmem:[#allocation12 + $0x30] sm:$0xf]
      %v2619 = vld [vmem:[#allocation12 + $0x34] sm:$0xf]
      %v2620 = vld [vmem:[#allocation12 + $0x38] sm:$0xf]
      %v2621 = vld [vmem:[#allocation12 + $0x3c] sm:$0xf]
      %v2622 = vld [vmem:[%s5] sm:$0x1]
      %v2624 = vlaneseq
      %v2625 = vshrl.u32 %v2624, 7
      %v2626 = vsub.s32 0, %v2625
      %v2627 = vrot.slane %v2622, %v2626
      %v2645 = vunpack.c.l.b16 %v2606
      %v2646 = vunpack.c.l.b16 %v2607
      %v2647 = vunpack.c.l.b16 %v2608
      %v2648 = vunpack.c.l.b16 %v2609
      %v2649 = vunpack.c.l.b16 %v2610
      %v2650 = vunpack.c.l.b16 %v2611
      %v2651 = vunpack.c.l.b16 %v2612
      %v2652 = vunpack.c.l.b16 %v2613
      %v2653 = vunpack.c.l.b16 %v2614
      %v2654 = vunpack.c.l.b16 %v2615
      %v2655 = vunpack.c.l.b16 %v2616
      %v2656 = vunpack.c.l.b16 %v2617
      %v2657 = vunpack.c.l.b16 %v2618
      %v2658 = vunpack.c.l.b16 %v2619
      %v2659 = vunpack.c.l.b16 %v2620
      %v2660 = vunpack.c.l.b16 %v2621
      %v2661 = vpack.c.b16 %v2646, %v2645
      %v2662 = vpack.c.b16 %v2648, %v2647
      %v2663 = vpack.c.b16 %v2650, %v2649
      %v2664 = vpack.c.b16 %v2652, %v2651
      %v2665 = vpack.c.b16 %v2654, %v2653
      %v2666 = vpack.c.b16 %v2656, %v2655
      %v2667 = vpack.c.b16 %v2658, %v2657
      %v2668 = vpack.c.b16 %v2660, %v2659
      %2677 = vmatprep.subr.bf16.mxu0 0
      %2678 = vmatpush1.bf16.msra.mxu0 %v2661
      %2679 = vmatprep.subr.bf16.mxu0 0
      %2680 = vmatpush1.bf16.msra.mxu0 %v2662
      %2681 = vmatprep.subr.bf16.mxu0 0
      %2682 = vmatpush1.bf16.msra.mxu0 %v2663
      %2683 = vmatprep.subr.bf16.mxu0 0
      %2684 = vmatpush1.bf16.msra.mxu0 %v2664
      %2685 = vmatprep.subr.bf16.mxu0 0
      %2686 = vmatpush1.bf16.msra.mxu0 %v2665
      %2687 = vmatprep.subr.bf16.mxu0 0
      %2688 = vmatpush1.bf16.msra.mxu0 %v2666
      %2689 = vmatprep.subr.bf16.mxu0 0
      %2690 = vmatpush1.bf16.msra.mxu0 %v2667
      %2691 = vmatprep.subr.bf16.mxu0 0
      %2692 = vmatpush1.bf16.msra.mxu0 %v2668
      %2693 = vmatprep.subr.bf16.mxu0 0
      %2694 = vmatpush1.bf16.msra.mxu0 0
      %2695 = vmatprep.subr.bf16.mxu0 0
      %2696 = vmatpush1.bf16.msra.mxu0 0
      %2697 = vmatprep.subr.bf16.mxu0 0
      %2698 = vmatpush1.bf16.msra.mxu0 0
      %2699 = vmatprep.subr.bf16.mxu0 0
      %2700 = vmatpush1.bf16.msra.mxu0 0
      %2701 = vmatprep.subr.bf16.mxu0 0
      %2702 = vmatpush1.bf16.msra.mxu0 0
      %2703 = vmatprep.subr.bf16.mxu0 0
      %2704 = vmatpush1.bf16.msra.mxu0 0
      %2705 = vmatprep.subr.bf16.mxu0 0
      %2706 = vmatpush1.bf16.msra.mxu0 0
      %2707 = vmatprep.subr.bf16.mxu0 0
      %2708 = vmatpush1.bf16.msra.mxu0 0
      %2709 = vmatprep.mubr.bf16.mxu0 0
      %2710 = vmatmul.mubr.bf16.gmra.mrb[0].mxu0 %v2605
      %v2711 = vpop.f32.mrb[0].mxu0
      %v2712 = vadd.f32 %v2627, %v2711
      %v2713 = vpop.f32.mrb[0].mxu0
      %v2714 = vpop.f32.mrb[0].mxu0
      %v2715 = vadd.f32 %v2627, %v2714
      %v2716 = vpop.f32.mrb[0].mxu0
      %2717 = vdwg.mxu0
      %v2718 = vmax.f32 %v2712, 0.0
      %v2719 = vmax.f32 %v2715, 0.0
      %v2720 = vpack.c.bf16 %v2719, %v2718
      %v2721 = vld [vmem:[#allocation14] sm:$0xf]
      %v2722 = vld [vmem:[#allocation14 + $0x4] sm:$0xf]
      %v2723 = vld [vmem:[#allocation14 + $0x8] sm:$0xf]
      %v2724 = vld [vmem:[#allocation14 + $0xc] sm:$0xf]
      %v2725 = vld [vmem:[#allocation14 + $0x10] sm:$0xf]
      %v2726 = vld [vmem:[#allocation14 + $0x14] sm:$0xf]
      %v2727 = vld [vmem:[#allocation14 + $0x18] sm:$0xf]
      %v2728 = vld [vmem:[#allocation14 + $0x1c] sm:$0xf]
      %v2729 = vld [vmem:[#allocation14 + $0x20] sm:$0xf]
      %v2730 = vld [vmem:[#allocation14 + $0x24] sm:$0xf]
      %v2731 = vld [vmem:[#allocation14 + $0x28] sm:$0xf]
      %v2732 = vld [vmem:[#allocation14 + $0x2c] sm:$0xf]
      %v2733 = vld [vmem:[#allocation14 + $0x30] sm:$0xf]
      %v2734 = vld [vmem:[#allocation14 + $0x34] sm:$0xf]
      %v2735 = vld [vmem:[#allocation14 + $0x38] sm:$0xf]
      %v2736 = vld [vmem:[#allocation14 + $0x3c] sm:$0xf]
      %v2737 = vld [vmem:[%s7] sm:$0x1]
      %v2739 = vlaneseq
      %v2740 = vshrl.u32 %v2739, 7
      %v2741 = vsub.s32 0, %v2740
      %v2742 = vrot.slane %v2737, %v2741
      %v2760 = vunpack.c.l.b16 %v2721
      %v2761 = vunpack.c.l.b16 %v2722
      %v2762 = vunpack.c.l.b16 %v2723
      %v2763 = vunpack.c.l.b16 %v2724
      %v2764 = vunpack.c.l.b16 %v2725
      %v2765 = vunpack.c.l.b16 %v2726
      %v2766 = vunpack.c.l.b16 %v2727
      %v2767 = vunpack.c.l.b16 %v2728
      %v2768 = vunpack.c.l.b16 %v2729
      %v2769 = vunpack.c.l.b16 %v2730
      %v2770 = vunpack.c.l.b16 %v2731
      %v2771 = vunpack.c.l.b16 %v2732
      %v2772 = vunpack.c.l.b16 %v2733
      %v2773 = vunpack.c.l.b16 %v2734
      %v2774 = vunpack.c.l.b16 %v2735
      %v2775 = vunpack.c.l.b16 %v2736
      %v2776 = vpack.c.b16 %v2761, %v2760
      %v2777 = vpack.c.b16 %v2763, %v2762
      %v2778 = vpack.c.b16 %v2765, %v2764
      %v2779 = vpack.c.b16 %v2767, %v2766
      %v2780 = vpack.c.b16 %v2769, %v2768
      %v2781 = vpack.c.b16 %v2771, %v2770
      %v2782 = vpack.c.b16 %v2773, %v2772
      %v2783 = vpack.c.b16 %v2775, %v2774
      %2792 = vmatprep.subr.bf16.mxu0 0
      %2793 = vmatpush1.bf16.msra.mxu0 %v2776
      %2794 = vmatprep.subr.bf16.mxu0 0
      %2795 = vmatpush1.bf16.msra.mxu0 %v2777
      %2796 = vmatprep.subr.bf16.mxu0 0
      %2797 = vmatpush1.bf16.msra.mxu0 %v2778
      %2798 = vmatprep.subr.bf16.mxu0 0
      %2799 = vmatpush1.bf16.msra.mxu0 %v2779
      %2800 = vmatprep.subr.bf16.mxu0 0
      %2801 = vmatpush1.bf16.msra.mxu0 %v2780
      %2802 = vmatprep.subr.bf16.mxu0 0
      %2803 = vmatpush1.bf16.msra.mxu0 %v2781
      %2804 = vmatprep.subr.bf16.mxu0 0
      %2805 = vmatpush1.bf16.msra.mxu0 %v2782
      %2806 = vmatprep.subr.bf16.mxu0 0
      %2807 = vmatpush1.bf16.msra.mxu0 %v2783
      %2808 = vmatprep.subr.bf16.mxu0 0
      %2809 = vmatpush1.bf16.msra.mxu0 0
      %2810 = vmatprep.subr.bf16.mxu0 0
      %2811 = vmatpush1.bf16.msra.mxu0 0
      %2812 = vmatprep.subr.bf16.mxu0 0
      %2813 = vmatpush1.bf16.msra.mxu0 0
      %2814 = vmatprep.subr.bf16.mxu0 0
      %2815 = vmatpush1.bf16.msra.mxu0 0
      %2816 = vmatprep.subr.bf16.mxu0 0
      %2817 = vmatpush1.bf16.msra.mxu0 0
      %2818 = vmatprep.subr.bf16.mxu0 0
      %2819 = vmatpush1.bf16.msra.mxu0 0
      %2820 = vmatprep.subr.bf16.mxu0 0
      %2821 = vmatpush1.bf16.msra.mxu0 0
      %2822 = vmatprep.subr.bf16.mxu0 0
      %2823 = vmatpush1.bf16.msra.mxu0 0
      %2824 = vmatprep.mubr.bf16.mxu0 0
      %2825 = vmatmul.mubr.bf16.gmra.mrb[0].mxu0 %v2720
      %v2826 = vpop.f32.mrb[0].mxu0
      %v2827 = vadd.f32 %v2742, %v2826
      %v2828 = vpop.f32.mrb[0].mxu0
      %v2829 = vpop.f32.mrb[0].mxu0
      %v2830 = vadd.f32 %v2742, %v2829
      %v2831 = vpop.f32.mrb[0].mxu0
      %2832 = vdwg.mxu0
      %v2833 = vmax.f32 %v2827, 0.0
      %v2834 = vmax.f32 %v2830, 0.0
      %v2835 = vpack.c.bf16 %v2834, %v2833
      %v2836 = vld [vmem:[#allocation15] sm:$0xf]
      %v2837 = vld [vmem:[#allocation15 + $0x4] sm:$0xf]
      %v2838 = vld [vmem:[#allocation15 + $0x8] sm:$0xf]
      %v2839 = vld [vmem:[#allocation15 + $0xc] sm:$0xf]
      %v2840 = vld [vmem:[#allocation15 + $0x10] sm:$0xf]
      %v2841 = vld [vmem:[#allocation15 + $0x14] sm:$0xf]
      %v2842 = vld [vmem:[#allocation15 + $0x18] sm:$0xf]
      %v2843 = vld [vmem:[#allocation15 + $0x1c] sm:$0xf]
      %v2844 = vld [vmem:[#allocation15 + $0x20] sm:$0xf]
      %v2845 = vld [vmem:[#allocation15 + $0x24] sm:$0xf]
      %v2846 = vld [vmem:[#allocation15 + $0x28] sm:$0xf]
      %v2847 = vld [vmem:[#allocation15 + $0x2c] sm:$0xf]
      %v2848 = vld [vmem:[#allocation15 + $0x30] sm:$0xf]
      %v2849 = vld [vmem:[#allocation15 + $0x34] sm:$0xf]
      %v2850 = vld [vmem:[#allocation15 + $0x38] sm:$0xf]
      %v2851 = vld [vmem:[#allocation15 + $0x3c] sm:$0xf]
      %v2852 = vld [vmem:[%s9] sm:$0x1]
      %v2854 = vlaneseq
      %v2855 = vshrl.u32 %v2854, 7
      %v2856 = vsub.s32 0, %v2855
      %v2857 = vrot.slane %v2852, %v2856
      %v2875 = vunpack.c.l.b16 %v2836
      %v2876 = vunpack.c.l.b16 %v2837
      %v2877 = vunpack.c.l.b16 %v2838
      %v2878 = vunpack.c.l.b16 %v2839
      %v2879 = vunpack.c.l.b16 %v2840
      %v2880 = vunpack.c.l.b16 %v2841
      %v2881 = vunpack.c.l.b16 %v2842
      %v2882 = vunpack.c.l.b16 %v2843
      %v2883 = vunpack.c.l.b16 %v2844
      %v2884 = vunpack.c.l.b16 %v2845
      %v2885 = vunpack.c.l.b16 %v2846
      %v2886 = vunpack.c.l.b16 %v2847
      %v2887 = vunpack.c.l.b16 %v2848
      %v2888 = vunpack.c.l.b16 %v2849
      %v2889 = vunpack.c.l.b16 %v2850
      %v2890 = vunpack.c.l.b16 %v2851
      %v2891 = vpack.c.b16 %v2876, %v2875
      %v2892 = vpack.c.b16 %v2878, %v2877
      %v2893 = vpack.c.b16 %v2880, %v2879
      %v2894 = vpack.c.b16 %v2882, %v2881
      %v2895 = vpack.c.b16 %v2884, %v2883
      %v2896 = vpack.c.b16 %v2886, %v2885
      %v2897 = vpack.c.b16 %v2888, %v2887
      %v2898 = vpack.c.b16 %v2890, %v2889
      %2907 = vmatprep.subr.bf16.mxu0 0
      %2908 = vmatpush1.bf16.msra.mxu0 %v2891
      %2909 = vmatprep.subr.bf16.mxu0 0
      %2910 = vmatpush1.bf16.msra.mxu0 %v2892
      %2911 = vmatprep.subr.bf16.mxu0 0
      %2912 = vmatpush1.bf16.msra.mxu0 %v2893
      %2913 = vmatprep.subr.bf16.mxu0 0
      %2914 = vmatpush1.bf16.msra.mxu0 %v2894
      %2915 = vmatprep.subr.bf16.mxu0 0
      %2916 = vmatpush1.bf16.msra.mxu0 %v2895
      %2917 = vmatprep.subr.bf16.mxu0 0
      %2918 = vmatpush1.bf16.msra.mxu0 %v2896
      %2919 = vmatprep.subr.bf16.mxu0 0
      %2920 = vmatpush1.bf16.msra.mxu0 %v2897
      %2921 = vmatprep.subr.bf16.mxu0 0
      %2922 = vmatpush1.bf16.msra.mxu0 %v2898
      %2923 = vmatprep.subr.bf16.mxu0 0
      %2924 = vmatpush1.bf16.msra.mxu0 0
      %2925 = vmatprep.subr.bf16.mxu0 0
      %2926 = vmatpush1.bf16.msra.mxu0 0
      %2927 = vmatprep.subr.bf16.mxu0 0
      %2928 = vmatpush1.bf16.msra.mxu0 0
      %2929 = vmatprep.subr.bf16.mxu0 0
      %2930 = vmatpush1.bf16.msra.mxu0 0
      %2931 = vmatprep.subr.bf16.mxu0 0
      %2932 = vmatpush1.bf16.msra.mxu0 0
      %2933 = vmatprep.subr.bf16.mxu0 0
      %2934 = vmatpush1.bf16.msra.mxu0 0
      %2935 = vmatprep.subr.bf16.mxu0 0
      %2936 = vmatpush1.bf16.msra.mxu0 0
      %2937 = vmatprep.subr.bf16.mxu0 0
      %2938 = vmatpush1.bf16.msra.mxu0 0
      %2939 = vmatprep.mubr.bf16.mxu0 0
      %2940 = vmatmul.mubr.bf16.gmra.mrb[0].mxu0 %v2835
      %v2941 = vpop.f32.mrb[0].mxu0
      %v2942 = vadd.f32 %v2857, %v2941
      %v2943 = vpop.f32.mrb[0].mxu0
      %v2944 = vpop.f32.mrb[0].mxu0
      %v2945 = vadd.f32 %v2857, %v2944
      %v2946 = vpop.f32.mrb[0].mxu0
      %2947 = vdwg.mxu0
      %2948 = vst [vmem:[#allocation17] sm:$0xff] %v2942
      %2949 = vst [vmem:[#allocation17 + $0x8] sm:$0xff] %v2945
    $region73: #{tpu_custom_call.1} parent=1 // pred_fallthru
      _
    // Predicated region
    $region74: #{tpu_custom_call.1} parent=1 // pred_check
      _
    $region75: #{tpu_custom_call.1} parent=1 // pred_check_branch
      %2951 = sbr.rel (0) target = $region77
    $region76: #{tpu_custom_call.1} parent=1 // pred_region
      %s2953 = ssub.s32 256, 256
      %2954 = vsyncadd [#allocation8], %s2953
      %s2955 = sshll.u32 [#allocation17], 4
      %s2956 = int_to_ptr.vmem [resolvable:$true] %s2955
      %2961 = dma.vmem_to_hbm [thread:$0]  %s2956, 256, %s10, [#allocation8], 128, 128, 8
    $region77: #{tpu_custom_call.1} parent=1 // pred_fallthru
      _
    // Predicated region
    $region78: #{tpu_custom_call.1} parent=1 // pred_check
      _
    $region79: #{tpu_custom_call.1} parent=1 // pred_check_branch
      %2963 = sbr.rel (0) target = $region81
    $region80: #{tpu_custom_call.1} parent=1 // pred_region
      %2964 = dma.done [#allocation8], 256
    $region81: #{tpu_custom_call.1} parent=1 // pred_fallthru
      _
    %2965 = vsyncpa [#allocation7], 1
    %2966 = vsyncpa [#allocation10], 1
    %2967 = vsyncpa [#allocation13], 1
    %2968 = vsyncpa [#allocation16], 1
    %2969 = vsyncpa [#allocation8], 1

</llo_original>
